<compile_context>
chip_gen: v6e
topology: v6e:2x2x1
jax: 0.10.0
libtpu: 0.0.40
codegen_flags: <defaults>
</compile_context>

<pallas_src>
import jax
import jax.numpy as jnp
from jax.experimental import pallas as pl
from jax.experimental.pallas import tpu as pltpu

# ----------------------------- configuration --------------------------------
B = 2                     # batch
DIM = 32                  # dim
DIM_OUT = 64              # dim_out  (!= DIM -> exercises the proj branch)
NUM_HEADS = 4
HEAD_DIM = DIM // NUM_HEADS
MLP_RATIO = 4.0
MLP_HIDDEN = int(DIM * MLP_RATIO)
THW = (2, 4, 4)           # (T, H, W) token grid
SEQ = 1 + THW[0] * THW[1] * THW[2]    # +1 cls token (has_cls_embed=True)
SCALE = HEAD_DIM ** (-0.5)
EPS = 1e-5
INV_SQRT2 = 0.7071067811865476


def _layernorm(x, gamma, beta):
    # x: (R, C), gamma/beta: (1, C)
    mu = jnp.mean(x, axis=-1, keepdims=True)
    xc = x - mu
    var = jnp.mean(xc * xc, axis=-1, keepdims=True)
    return xc * jax.lax.rsqrt(var + EPS) * gamma + beta


# ------------------------------ fused kernel ---------------------------------
def _make_fused_kernel(batch, n_valid, n_pad):
    def kernel(x_ref, g1_ref, b1_ref, wqkv_ref, wproj_ref, bproj_ref,
               g2_ref, b2_ref, w1p_ref, b1p_ref, w2_ref, bb2_ref, out_ref):
        # --- parameter loads hoisted once (single grid step) ------------------
        g1, b1 = g1_ref[...], b1_ref[...]
        g2, b2 = g2_ref[...], b2_ref[...]
        wqkv = wqkv_ref[...]              # (C, 3C)  q columns pre-scaled by SCALE
        wproj = wproj_ref[...]            # (C, C)
        bproj = bproj_ref[...]            # (1, C)
        w1p = w1p_ref[...]                # (C, MLP_HIDDEN + DIM_OUT)  fc1 || proj
        b1p = b1p_ref[...]                # (1, MLP_HIDDEN + DIM_OUT)
        w2 = w2_ref[...]                  # (MLP_HIDDEN, DIM_OUT)
        bb2 = bb2_ref[...]                # (1, DIM_OUT)

        x = x_ref[...]                    # (batch * n_pad, C) — batch folded to rows

        # --- shared row-wise path: LN1 + ONE qkv matmul over the whole slab ---
        xn = _layernorm(x, g1, b1)
        qkv = jnp.dot(xn, wqkv, preferred_element_type=jnp.float32)   # (R, 3C)

        # additive key mask for padded rows, hoisted and reused by all (b, h)
        col = jax.lax.broadcasted_iota(jnp.int32, (1, n_pad), 1)
        kbias = jnp.where(col < n_valid, 0.0, -1e30).astype(jnp.float32)

        # --- per-(batch, head) score / PV matmuls (fully unrolled) ------------
        attn_rows = []
        for b in range(batch):
            r0 = b * n_pad                                   # sublane-aligned offset
            acc = jnp.zeros((n_pad, DIM), jnp.float32)
            for h in range(NUM_HEADS):
                lo = h * HEAD_DIM
                q = qkv[r0:r0 + n_pad, lo:lo + HEAD_DIM]                     # (NP, hd)
                k = qkv[r0:r0 + n_pad, DIM + lo:DIM + lo + HEAD_DIM]         # (NP, hd)
                v = qkv[r0:r0 + n_pad, 2 * DIM + lo:2 * DIM + lo + HEAD_DIM] # (NP, hd)

                # scores (NP, NP): contract on head_dim, no k.T materialization.
                # SCALE already folded into the q weight columns.
                s = jax.lax.dot_general(q, k, (((1,), (1,)), ((), ())),
                                        preferred_element_type=jnp.float32)
                s = s + kbias                               # mask padded key columns
                s = s - jnp.max(s, axis=-1, keepdims=True)
                p = jnp.exp(s)
                # normalize with the EUP reciprocal (approx=True -> vrcp slot)
                p = p * pl.reciprocal(jnp.sum(p, axis=-1, keepdims=True),
                                      approx=True)
                o = jnp.dot(p, v, preferred_element_type=jnp.float32)         # (NP, hd)
                # fold the head output straight through its sublane-aligned 8-row
                # block of wproj -> avoids the 8-lane head concat entirely.
                acc = acc + jnp.dot(o, wproj[lo:lo + HEAD_DIM, :],
                                    preferred_element_type=jnp.float32)
            attn_rows.append(acc)
        attn = jnp.concatenate(attn_rows, axis=0) + bproj    # (R, C), aligned row concat

        y = x + attn                                         # residual (identity pool)

        # --- shared MLP + block-projection path (one merged matmul) -----------
        yn = _layernorm(y, g2, b2)
        r = jnp.dot(yn, w1p, preferred_element_type=jnp.float32) + b1p   # (R, 192)
        hdn = r[:, :MLP_HIDDEN]                              # lane-128 aligned split: free
        xp = r[:, MLP_HIDDEN:]                               # (R, DIM_OUT)
        hdn = 0.5 * hdn * (1.0 + jax.lax.erf(hdn * INV_SQRT2))   # exact GELU
        m = jnp.dot(hdn, w2, preferred_element_type=jnp.float32) + bb2
        out_ref[...] = xp + m                                # (R, DIM_OUT)

    return kernel


# ------------------------------ wrapper --------------------------------------
def prepare_params(p):
    """One-time weight prep (NOT per-forward): fuse q|k|v with SCALE folded into q,
    and fuse fc1 || block-proj columns."""
    return {
        "g1": p["g1"], "b1": p["b1"], "g2": p["g2"], "b2": p["b2"],
        "wqkv": jnp.concatenate([p["wq"] * SCALE, p["wk"], p["wv"]], axis=1),
        "wproj": p["wproj"], "bproj": p["bproj"],
        "w1p": jnp.concatenate([p["w1"], p["wp"]], axis=1),
        "b1p": jnp.concatenate([p["bb1"], p["bp"]], axis=1),
        "w2": p["w2"], "bb2": p["bb2"],
    }


def multiscale_block_forward(x, prep):
    Bn, N, C = x.shape
    NP = -(-N // 8) * 8          # pad each batch to a sublane multiple (33 -> 40)
    R = Bn * NP
    # flatten batch into rows so all shared matmuls run once on a (R, C) slab
    x_flat = jnp.pad(x, ((0, 0), (0, NP - N), (0, 0))).reshape(R, C)

    par = lambda i: (0, 0)
    H2 = MLP_HIDDEN + DIM_OUT

    out_flat = pl.pallas_call(
        _make_fused_kernel(Bn, N, NP),
        out_shape=jax.ShapeDtypeStruct((R, DIM_OUT), jnp.float32),
        grid_spec=pltpu.PrefetchScalarGridSpec(
            num_scalar_prefetch=0, grid=(1,),
            in_specs=[
                pl.BlockSpec((R, C), par),                  # x (flattened + padded)
                pl.BlockSpec((1, C), par),                  # g1
                pl.BlockSpec((1, C), par),                  # b1
                pl.BlockSpec((C, 3 * C), par),              # wq|wk|wv (q pre-scaled)
                pl.BlockSpec((C, C), par),                  # wproj
                pl.BlockSpec((1, C), par),                  # bproj
                pl.BlockSpec((1, C), par),                  # g2
                pl.BlockSpec((1, C), par),                  # b2
                pl.BlockSpec((C, H2), par),                 # w1 || wp
                pl.BlockSpec((1, H2), par),                 # bb1 || bp
                pl.BlockSpec((MLP_HIDDEN, DIM_OUT), par),   # w2
                pl.BlockSpec((1, DIM_OUT), par),            # bb2
            ],
            out_specs=pl.BlockSpec((R, DIM_OUT), par),
        ),
        compiler_params=pltpu.CompilerParams(dimension_semantics=("arbitrary",)),
        cost_estimate=pl.CostEstimate(flops=3_500_000, transcendentals=24_000,
                                      bytes_accessed=110_000),
    )(x_flat, prep["g1"], prep["b1"], prep["wqkv"], prep["wproj"], prep["bproj"],
      prep["g2"], prep["b2"], prep["w1p"], prep["b1p"], prep["w2"], prep["bb2"])

    out = out_flat.reshape(Bn, NP, DIM_OUT)[:, :N, :]
    return out, list(THW)   # thw_shape unchanged (no q-pooling under defaults)


# --------------------------- pure-JAX reference ------------------------------
def reference(x, p):
    def ln(v, g, b):
        mu = v.mean(-1, keepdims=True)
        var = ((v - mu) ** 2).mean(-1, keepdims=True)
        return (v - mu) / jnp.sqrt(var + EPS) * g + b

    xn = ln(x, p["g1"][0], p["b1"][0])
    q, k, v = xn @ p["wq"], xn @ p["wk"], xn @ p["wv"]
    hsplit = lambda t: t.reshape(B, SEQ, NUM_HEADS, HEAD_DIM).transpose(0, 2, 1, 3)
    qh, kh, vh = hsplit(q), hsplit(k), hsplit(v)
    s = jnp.einsum("bhnd,bhmd->bhnm", qh, kh) * SCALE
    a = jax.nn.softmax(s, axis=-1)
    o = jnp.einsum("bhnm,bhmd->bhnd", a, vh).transpose(0, 2, 1, 3).reshape(B, SEQ, DIM)
    y = x + (o @ p["wproj"] + p["bproj"][0])
    yn = ln(y, p["g2"][0], p["b2"][0])
    h = yn @ p["w1"] + p["bb1"][0]
    h = 0.5 * h * (1.0 + jax.lax.erf(h * INV_SQRT2))
    m = h @ p["w2"] + p["bb2"][0]
    xp = yn @ p["wp"] + p["bp"][0]
    return xp + m


# ------------------------------ parameters -----------------------------------
def init_params(key):
    ks = jax.random.split(key, 8)
    n = lambda k, shape: (0.02 * jax.random.normal(k, shape, jnp.float32))
    return {
        # LayerNorm1 / LayerNorm2
        "g1": jnp.ones((1, DIM), jnp.float32), "b1": jnp.zeros((1, DIM), jnp.float32),
        "g2": jnp.ones((1, DIM), jnp.float32), "b2": jnp.zeros((1, DIM), jnp.float32),
        # qkv Linear(dim, 3*dim, bias=False) split into q/k/v column blocks, (in, out)
        "wq": n(ks[0], (DIM, DIM)), "wk": n(ks[1], (DIM, DIM)), "wv": n(ks[2], (DIM, DIM)),
        # attention proj Linear(dim, dim)
        "wproj": n(ks[3], (DIM, DIM)), "bproj": jnp.zeros((1, DIM), jnp.float32),
        # Mlp: fc1 (dim -> hidden), fc2 (hidden -> dim_out)
        "w1": n(ks[4], (DIM, MLP_HIDDEN)), "bb1": jnp.zeros((1, MLP_HIDDEN), jnp.float32),
        "w2": n(ks[5], (MLP_HIDDEN, DIM_OUT)), "bb2": jnp.zeros((1, DIM_OUT), jnp.float32),
        # block proj Linear(dim, dim_out)  (dim != dim_out)
        "wp": n(ks[6], (DIM, DIM_OUT)), "bp": jnp.zeros((1, DIM_OUT), jnp.float32),
    }


if __name__ == "__main__":
    key = jax.random.PRNGKey(0)
    kx, kp = jax.random.split(key)
    x = jax.random.normal(kx, (B, SEQ, DIM), jnp.float32)
    params = init_params(kp)
    prep = prepare_params(params)          # one-time weight fusion / scaling

    out, thw_new = multiscale_block_forward(x, prep)
    out = jax.block_until_ready(out)

    ref = reference(x, params)
    assert out.shape == (B, SEQ, DIM_OUT), out.shape
    assert thw_new == list(THW)
    assert jnp.allclose(out, ref, rtol=1e-4, atol=1e-4), float(jnp.max(jnp.abs(out - ref)))
    print("KERNEL_OK")
</pallas_src>

<mosaic_0001>
module attributes {stable_mosaic.version = 11 : i64} {
  func.func @kernel(%arg0: i32, %arg1: memref<80x32xf32, #tpu.memory_space<vmem>>, %arg2: memref<1x32xf32, #tpu.memory_space<vmem>>, %arg3: memref<1x32xf32, #tpu.memory_space<vmem>>, %arg4: memref<32x96xf32, #tpu.memory_space<vmem>>, %arg5: memref<32x32xf32, #tpu.memory_space<vmem>>, %arg6: memref<1x32xf32, #tpu.memory_space<vmem>>, %arg7: memref<1x32xf32, #tpu.memory_space<vmem>>, %arg8: memref<1x32xf32, #tpu.memory_space<vmem>>, %arg9: memref<32x192xf32, #tpu.memory_space<vmem>>, %arg10: memref<1x192xf32, #tpu.memory_space<vmem>>, %arg11: memref<128x64xf32, #tpu.memory_space<vmem>>, %arg12: memref<1x64xf32, #tpu.memory_space<vmem>>, %arg13: memref<80x64xf32, #tpu.memory_space<vmem>>) attributes {dimension_semantics = [#tpu.dimension_semantics<arbitrary>], iteration_bounds = array<i64: 1>, scalar_prefetch = 0 : i64, scratch_operands = 0 : i64, tpu.core_type = #tpu.core_type<tc>, window_params = [{pipeline_mode = #tpu.pipeline_mode<synchronous>, transform_indices = @transform_0, window_bounds = array<i64: 80, 32>}, {pipeline_mode = #tpu.pipeline_mode<synchronous>, transform_indices = @transform_1, window_bounds = array<i64: 1, 32>}, {pipeline_mode = #tpu.pipeline_mode<synchronous>, transform_indices = @transform_2, window_bounds = array<i64: 1, 32>}, {pipeline_mode = #tpu.pipeline_mode<synchronous>, transform_indices = @transform_3, window_bounds = array<i64: 32, 96>}, {pipeline_mode = #tpu.pipeline_mode<synchronous>, transform_indices = @transform_4, window_bounds = array<i64: 32, 32>}, {pipeline_mode = #tpu.pipeline_mode<synchronous>, transform_indices = @transform_5, window_bounds = array<i64: 1, 32>}, {pipeline_mode = #tpu.pipeline_mode<synchronous>, transform_indices = @transform_6, window_bounds = array<i64: 1, 32>}, {pipeline_mode = #tpu.pipeline_mode<synchronous>, transform_indices = @transform_7, window_bounds = array<i64: 1, 32>}, {pipeline_mode = #tpu.pipeline_mode<synchronous>, transform_indices = @transform_8, window_bounds = array<i64: 32, 192>}, {pipeline_mode = #tpu.pipeline_mode<synchronous>, transform_indices = @transform_9, window_bounds = array<i64: 1, 192>}, {pipeline_mode = #tpu.pipeline_mode<synchronous>, transform_indices = @transform_10, window_bounds = array<i64: 128, 64>}, {pipeline_mode = #tpu.pipeline_mode<synchronous>, transform_indices = @transform_11, window_bounds = array<i64: 1, 64>}, {pipeline_mode = #tpu.pipeline_mode<synchronous>, transform_indices = @transform_12, window_bounds = array<i64: 80, 64>}]} {
    %c0 = arith.constant 0 : index
    %c0_0 = arith.constant 0 : index
    %0 = vector.load %arg2[%c0, %c0_0] : memref<1x32xf32, #tpu.memory_space<vmem>>, vector<1x32xf32>
    %c0_1 = arith.constant 0 : index
    %c0_2 = arith.constant 0 : index
    %1 = vector.load %arg3[%c0_1, %c0_2] : memref<1x32xf32, #tpu.memory_space<vmem>>, vector<1x32xf32>
    %c0_3 = arith.constant 0 : index
    %c0_4 = arith.constant 0 : index
    %2 = vector.load %arg7[%c0_3, %c0_4] : memref<1x32xf32, #tpu.memory_space<vmem>>, vector<1x32xf32>
    %c0_5 = arith.constant 0 : index
    %c0_6 = arith.constant 0 : index
    %3 = vector.load %arg8[%c0_5, %c0_6] : memref<1x32xf32, #tpu.memory_space<vmem>>, vector<1x32xf32>
    %c0_7 = arith.constant 0 : index
    %c0_8 = arith.constant 0 : index
    %4 = vector.load %arg4[%c0_7, %c0_8] : memref<32x96xf32, #tpu.memory_space<vmem>>, vector<32x96xf32>
    %c0_9 = arith.constant 0 : index
    %c0_10 = arith.constant 0 : index
    %5 = vector.load %arg5[%c0_9, %c0_10] : memref<32x32xf32, #tpu.memory_space<vmem>>, vector<32x32xf32>
    %c0_11 = arith.constant 0 : index
    %c0_12 = arith.constant 0 : index
    %6 = vector.load %arg6[%c0_11, %c0_12] : memref<1x32xf32, #tpu.memory_space<vmem>>, vector<1x32xf32>
    %c0_13 = arith.constant 0 : index
    %c0_14 = arith.constant 0 : index
    %7 = vector.load %arg9[%c0_13, %c0_14] : memref<32x192xf32, #tpu.memory_space<vmem>>, vector<32x192xf32>
    %c0_15 = arith.constant 0 : index
    %c0_16 = arith.constant 0 : index
    %8 = vector.load %arg10[%c0_15, %c0_16] : memref<1x192xf32, #tpu.memory_space<vmem>>, vector<1x192xf32>
    %c0_17 = arith.constant 0 : index
    %c0_18 = arith.constant 0 : index
    %9 = vector.load %arg11[%c0_17, %c0_18] : memref<128x64xf32, #tpu.memory_space<vmem>>, vector<128x64xf32>
    %c0_19 = arith.constant 0 : index
    %c0_20 = arith.constant 0 : index
    %10 = vector.load %arg12[%c0_19, %c0_20] : memref<1x64xf32, #tpu.memory_space<vmem>>, vector<1x64xf32>
    %c0_21 = arith.constant 0 : index
    %c0_22 = arith.constant 0 : index
    %11 = vector.load %arg1[%c0_21, %c0_22] : memref<80x32xf32, #tpu.memory_space<vmem>>, vector<80x32xf32>
    %cst = arith.constant dense<0.000000e+00> : vector<80xf32>
    %12 = vector.multi_reduction <add>, %11, %cst [1] : vector<80x32xf32> to vector<80xf32>
    %13 = vector.shape_cast %12 : vector<80xf32> to vector<80x1xf32>
    %cst_23 = arith.constant 3.200000e+01 : f32
    %14 = vector.broadcast %cst_23 : f32 to vector<80x1xf32>
    %15 = arith.divf %13, %14 : vector<80x1xf32>
    %16 = vector.broadcast %15 : vector<80x1xf32> to vector<80x32xf32>
    %17 = arith.subf %11, %16 : vector<80x32xf32>
    %18 = arith.mulf %17, %17 : vector<80x32xf32>
    %cst_24 = arith.constant dense<0.000000e+00> : vector<80xf32>
    %19 = vector.multi_reduction <add>, %18, %cst_24 [1] : vector<80x32xf32> to vector<80xf32>
    %20 = vector.shape_cast %19 : vector<80xf32> to vector<80x1xf32>
    %cst_25 = arith.constant 3.200000e+01 : f32
    %21 = vector.broadcast %cst_25 : f32 to vector<80x1xf32>
    %22 = arith.divf %20, %21 : vector<80x1xf32>
    %cst_26 = arith.constant 9.99999974E-6 : f32
    %23 = vector.broadcast %cst_26 : f32 to vector<80x1xf32>
    %24 = arith.addf %22, %23 : vector<80x1xf32>
    %25 = math.rsqrt %24 : vector<80x1xf32>
    %26 = vector.broadcast %25 : vector<80x1xf32> to vector<80x32xf32>
    %27 = arith.mulf %17, %26 : vector<80x32xf32>
    %28 = vector.broadcast %0 : vector<1x32xf32> to vector<80x32xf32>
    %29 = arith.mulf %27, %28 : vector<80x32xf32>
    %30 = vector.broadcast %1 : vector<1x32xf32> to vector<80x32xf32>
    %31 = arith.addf %29, %30 : vector<80x32xf32>
    %cst_27 = arith.constant dense<0.000000e+00> : vector<80x96xf32>
    %32 = tpu.matmul %31, %4, %cst_27 {dimension_numbers = #tpu.dot_dimension_numbers<[1], [0], [0], [1], [0, 0, 1, 1], [], []>} : vector<80x32xf32>, vector<32x96xf32>, vector<80x96xf32> -> vector<80x96xf32>
    %33 = tpu.iota {dimensions = array<i32: 1>} : vector<1x40xi32>
    %c33_i32 = arith.constant 33 : i32
    %34 = vector.broadcast %c33_i32 : i32 to vector<1x40xi32>
    %35 = arith.cmpi slt, %33, %34 : vector<1x40xi32>
    %cst_28 = arith.constant 0.000000e+00 : f32
    %cst_29 = arith.constant -1.000000e+30 : f32
    %36 = vector.broadcast %cst_28 : f32 to vector<1x40xf32>
    %37 = vector.broadcast %cst_29 : f32 to vector<1x40xf32>
    %38 = arith.select %35, %36, %37 : vector<1x40xi1>, vector<1x40xf32>
    %cst_30 = arith.constant 0.000000e+00 : f32
    %39 = vector.broadcast %cst_30 : f32 to vector<40x32xf32>
    %40 = vector.extract_strided_slice %32 {offsets = [0, 0], sizes = [40, 8], strides = [1, 1]} : vector<80x96xf32> to vector<40x8xf32>
    %41 = vector.extract_strided_slice %32 {offsets = [0, 32], sizes = [40, 8], strides = [1, 1]} : vector<80x96xf32> to vector<40x8xf32>
    %42 = vector.extract_strided_slice %32 {offsets = [0, 64], sizes = [40, 8], strides = [1, 1]} : vector<80x96xf32> to vector<40x8xf32>
    %cst_31 = arith.constant dense<0.000000e+00> : vector<40x40xf32>
    %43 = tpu.matmul %40, %41, %cst_31 {dimension_numbers = #tpu.dot_dimension_numbers<[1], [1], [0], [0], [0, 0, 1, 0], [], []>} : vector<40x8xf32>, vector<40x8xf32>, vector<40x40xf32> -> vector<40x40xf32>
    %44 = vector.broadcast %38 : vector<1x40xf32> to vector<40x40xf32>
    %45 = arith.addf %43, %44 : vector<40x40xf32>
    %cst_32 = arith.constant dense<0xFF800000> : vector<40xf32>
    %46 = vector.multi_reduction <maximumf>, %45, %cst_32 [1] : vector<40x40xf32> to vector<40xf32>
    %47 = vector.shape_cast %46 : vector<40xf32> to vector<40x1xf32>
    %48 = vector.broadcast %47 : vector<40x1xf32> to vector<40x40xf32>
    %49 = arith.subf %45, %48 : vector<40x40xf32>
    %50 = math.exp %49 : vector<40x40xf32>
    %cst_33 = arith.constant dense<0.000000e+00> : vector<40xf32>
    %51 = vector.multi_reduction <add>, %50, %cst_33 [1] : vector<40x40xf32> to vector<40xf32>
    %52 = vector.shape_cast %51 : vector<40xf32> to vector<40x1xf32>
    %53 = tpu.reciprocal %52 {approx = true} : vector<40x1xf32> -> vector<40x1xf32>
    %54 = vector.broadcast %53 : vector<40x1xf32> to vector<40x40xf32>
    %55 = arith.mulf %50, %54 : vector<40x40xf32>
    %cst_34 = arith.constant dense<0.000000e+00> : vector<40x8xf32>
    %56 = tpu.matmul %55, %42, %cst_34 {dimension_numbers = #tpu.dot_dimension_numbers<[1], [0], [0], [1], [0, 0, 1, 1], [], []>} : vector<40x40xf32>, vector<40x8xf32>, vector<40x8xf32> -> vector<40x8xf32>
    %57 = vector.extract_strided_slice %5 {offsets = [0, 0], sizes = [8, 32], strides = [1, 1]} : vector<32x32xf32> to vector<8x32xf32>
    %cst_35 = arith.constant dense<0.000000e+00> : vector<40x32xf32>
    %58 = tpu.matmul %56, %57, %cst_35 {dimension_numbers = #tpu.dot_dimension_numbers<[1], [0], [0], [1], [0, 0, 1, 1], [], []>} : vector<40x8xf32>, vector<8x32xf32>, vector<40x32xf32> -> vector<40x32xf32>
    %59 = arith.addf %39, %58 : vector<40x32xf32>
    %60 = vector.extract_strided_slice %32 {offsets = [0, 8], sizes = [40, 8], strides = [1, 1]} : vector<80x96xf32> to vector<40x8xf32>
    %61 = vector.extract_strided_slice %32 {offsets = [0, 40], sizes = [40, 8], strides = [1, 1]} : vector<80x96xf32> to vector<40x8xf32>
    %62 = vector.extract_strided_slice %32 {offsets = [0, 72], sizes = [40, 8], strides = [1, 1]} : vector<80x96xf32> to vector<40x8xf32>
    %cst_36 = arith.constant dense<0.000000e+00> : vector<40x40xf32>
    %63 = tpu.matmul %60, %61, %cst_36 {dimension_numbers = #tpu.dot_dimension_numbers<[1], [1], [0], [0], [0, 0, 1, 0], [], []>} : vector<40x8xf32>, vector<40x8xf32>, vector<40x40xf32> -> vector<40x40xf32>
    %64 = vector.broadcast %38 : vector<1x40xf32> to vector<40x40xf32>
    %65 = arith.addf %63, %64 : vector<40x40xf32>
    %cst_37 = arith.constant dense<0xFF800000> : vector<40xf32>
    %66 = vector.multi_reduction <maximumf>, %65, %cst_37 [1] : vector<40x40xf32> to vector<40xf32>
    %67 = vector.shape_cast %66 : vector<40xf32> to vector<40x1xf32>
    %68 = vector.broadcast %67 : vector<40x1xf32> to vector<40x40xf32>
    %69 = arith.subf %65, %68 : vector<40x40xf32>
    %70 = math.exp %69 : vector<40x40xf32>
    %cst_38 = arith.constant dense<0.000000e+00> : vector<40xf32>
    %71 = vector.multi_reduction <add>, %70, %cst_38 [1] : vector<40x40xf32> to vector<40xf32>
    %72 = vector.shape_cast %71 : vector<40xf32> to vector<40x1xf32>
    %73 = tpu.reciprocal %72 {approx = true} : vector<40x1xf32> -> vector<40x1xf32>
    %74 = vector.broadcast %73 : vector<40x1xf32> to vector<40x40xf32>
    %75 = arith.mulf %70, %74 : vector<40x40xf32>
    %cst_39 = arith.constant dense<0.000000e+00> : vector<40x8xf32>
    %76 = tpu.matmul %75, %62, %cst_39 {dimension_numbers = #tpu.dot_dimension_numbers<[1], [0], [0], [1], [0, 0, 1, 1], [], []>} : vector<40x40xf32>, vector<40x8xf32>, vector<40x8xf32> -> vector<40x8xf32>
    %77 = vector.extract_strided_slice %5 {offsets = [8, 0], sizes = [8, 32], strides = [1, 1]} : vector<32x32xf32> to vector<8x32xf32>
    %cst_40 = arith.constant dense<0.000000e+00> : vector<40x32xf32>
    %78 = tpu.matmul %76, %77, %cst_40 {dimension_numbers = #tpu.dot_dimension_numbers<[1], [0], [0], [1], [0, 0, 1, 1], [], []>} : vector<40x8xf32>, vector<8x32xf32>, vector<40x32xf32> -> vector<40x32xf32>
    %79 = arith.addf %59, %78 : vector<40x32xf32>
    %80 = vector.extract_strided_slice %32 {offsets = [0, 16], sizes = [40, 8], strides = [1, 1]} : vector<80x96xf32> to vector<40x8xf32>
    %81 = vector.extract_strided_slice %32 {offsets = [0, 48], sizes = [40, 8], strides = [1, 1]} : vector<80x96xf32> to vector<40x8xf32>
    %82 = vector.extract_strided_slice %32 {offsets = [0, 80], sizes = [40, 8], strides = [1, 1]} : vector<80x96xf32> to vector<40x8xf32>
    %cst_41 = arith.constant dense<0.000000e+00> : vector<40x40xf32>
    %83 = tpu.matmul %80, %81, %cst_41 {dimension_numbers = #tpu.dot_dimension_numbers<[1], [1], [0], [0], [0, 0, 1, 0], [], []>} : vector<40x8xf32>, vector<40x8xf32>, vector<40x40xf32> -> vector<40x40xf32>
    %84 = vector.broadcast %38 : vector<1x40xf32> to vector<40x40xf32>
    %85 = arith.addf %83, %84 : vector<40x40xf32>
    %cst_42 = arith.constant dense<0xFF800000> : vector<40xf32>
    %86 = vector.multi_reduction <maximumf>, %85, %cst_42 [1] : vector<40x40xf32> to vector<40xf32>
    %87 = vector.shape_cast %86 : vector<40xf32> to vector<40x1xf32>
    %88 = vector.broadcast %87 : vector<40x1xf32> to vector<40x40xf32>
    %89 = arith.subf %85, %88 : vector<40x40xf32>
    %90 = math.exp %89 : vector<40x40xf32>
    %cst_43 = arith.constant dense<0.000000e+00> : vector<40xf32>
    %91 = vector.multi_reduction <add>, %90, %cst_43 [1] : vector<40x40xf32> to vector<40xf32>
    %92 = vector.shape_cast %91 : vector<40xf32> to vector<40x1xf32>
    %93 = tpu.reciprocal %92 {approx = true} : vector<40x1xf32> -> vector<40x1xf32>
    %94 = vector.broadcast %93 : vector<40x1xf32> to vector<40x40xf32>
    %95 = arith.mulf %90, %94 : vector<40x40xf32>
    %cst_44 = arith.constant dense<0.000000e+00> : vector<40x8xf32>
    %96 = tpu.matmul %95, %82, %cst_44 {dimension_numbers = #tpu.dot_dimension_numbers<[1], [0], [0], [1], [0, 0, 1, 1], [], []>} : vector<40x40xf32>, vector<40x8xf32>, vector<40x8xf32> -> vector<40x8xf32>
    %97 = vector.extract_strided_slice %5 {offsets = [16, 0], sizes = [8, 32], strides = [1, 1]} : vector<32x32xf32> to vector<8x32xf32>
    %cst_45 = arith.constant dense<0.000000e+00> : vector<40x32xf32>
    %98 = tpu.matmul %96, %97, %cst_45 {dimension_numbers = #tpu.dot_dimension_numbers<[1], [0], [0], [1], [0, 0, 1, 1], [], []>} : vector<40x8xf32>, vector<8x32xf32>, vector<40x32xf32> -> vector<40x32xf32>
    %99 = arith.addf %79, %98 : vector<40x32xf32>
    %100 = vector.extract_strided_slice %32 {offsets = [0, 24], sizes = [40, 8], strides = [1, 1]} : vector<80x96xf32> to vector<40x8xf32>
    %101 = vector.extract_strided_slice %32 {offsets = [0, 56], sizes = [40, 8], strides = [1, 1]} : vector<80x96xf32> to vector<40x8xf32>
    %102 = vector.extract_strided_slice %32 {offsets = [0, 88], sizes = [40, 8], strides = [1, 1]} : vector<80x96xf32> to vector<40x8xf32>
    %cst_46 = arith.constant dense<0.000000e+00> : vector<40x40xf32>
    %103 = tpu.matmul %100, %101, %cst_46 {dimension_numbers = #tpu.dot_dimension_numbers<[1], [1], [0], [0], [0, 0, 1, 0], [], []>} : vector<40x8xf32>, vector<40x8xf32>, vector<40x40xf32> -> vector<40x40xf32>
    %104 = vector.broadcast %38 : vector<1x40xf32> to vector<40x40xf32>
    %105 = arith.addf %103, %104 : vector<40x40xf32>
    %cst_47 = arith.constant dense<0xFF800000> : vector<40xf32>
    %106 = vector.multi_reduction <maximumf>, %105, %cst_47 [1] : vector<40x40xf32> to vector<40xf32>
    %107 = vector.shape_cast %106 : vector<40xf32> to vector<40x1xf32>
    %108 = vector.broadcast %107 : vector<40x1xf32> to vector<40x40xf32>
    %109 = arith.subf %105, %108 : vector<40x40xf32>
    %110 = math.exp %109 : vector<40x40xf32>
    %cst_48 = arith.constant dense<0.000000e+00> : vector<40xf32>
    %111 = vector.multi_reduction <add>, %110, %cst_48 [1] : vector<40x40xf32> to vector<40xf32>
    %112 = vector.shape_cast %111 : vector<40xf32> to vector<40x1xf32>
    %113 = tpu.reciprocal %112 {approx = true} : vector<40x1xf32> -> vector<40x1xf32>
    %114 = vector.broadcast %113 : vector<40x1xf32> to vector<40x40xf32>
    %115 = arith.mulf %110, %114 : vector<40x40xf32>
    %cst_49 = arith.constant dense<0.000000e+00> : vector<40x8xf32>
    %116 = tpu.matmul %115, %102, %cst_49 {dimension_numbers = #tpu.dot_dimension_numbers<[1], [0], [0], [1], [0, 0, 1, 1], [], []>} : vector<40x40xf32>, vector<40x8xf32>, vector<40x8xf32> -> vector<40x8xf32>
    %117 = vector.extract_strided_slice %5 {offsets = [24, 0], sizes = [8, 32], strides = [1, 1]} : vector<32x32xf32> to vector<8x32xf32>
    %cst_50 = arith.constant dense<0.000000e+00> : vector<40x32xf32>
    %118 = tpu.matmul %116, %117, %cst_50 {dimension_numbers = #tpu.dot_dimension_numbers<[1], [0], [0], [1], [0, 0, 1, 1], [], []>} : vector<40x8xf32>, vector<8x32xf32>, vector<40x32xf32> -> vector<40x32xf32>
    %119 = arith.addf %99, %118 : vector<40x32xf32>
    %cst_51 = arith.constant 0.000000e+00 : f32
    %120 = vector.broadcast %cst_51 : f32 to vector<40x32xf32>
    %121 = vector.extract_strided_slice %32 {offsets = [40, 0], sizes = [40, 8], strides = [1, 1]} : vector<80x96xf32> to vector<40x8xf32>
    %122 = vector.extract_strided_slice %32 {offsets = [40, 32], sizes = [40, 8], strides = [1, 1]} : vector<80x96xf32> to vector<40x8xf32>
    %123 = vector.extract_strided_slice %32 {offsets = [40, 64], sizes = [40, 8], strides = [1, 1]} : vector<80x96xf32> to vector<40x8xf32>
    %cst_52 = arith.constant dense<0.000000e+00> : vector<40x40xf32>
    %124 = tpu.matmul %121, %122, %cst_52 {dimension_numbers = #tpu.dot_dimension_numbers<[1], [1], [0], [0], [0, 0, 1, 0], [], []>} : vector<40x8xf32>, vector<40x8xf32>, vector<40x40xf32> -> vector<40x40xf32>
    %125 = vector.broadcast %38 : vector<1x40xf32> to vector<40x40xf32>
    %126 = arith.addf %124, %125 : vector<40x40xf32>
    %cst_53 = arith.constant dense<0xFF800000> : vector<40xf32>
    %127 = vector.multi_reduction <maximumf>, %126, %cst_53 [1] : vector<40x40xf32> to vector<40xf32>
    %128 = vector.shape_cast %127 : vector<40xf32> to vector<40x1xf32>
    %129 = vector.broadcast %128 : vector<40x1xf32> to vector<40x40xf32>
    %130 = arith.subf %126, %129 : vector<40x40xf32>
    %131 = math.exp %130 : vector<40x40xf32>
    %cst_54 = arith.constant dense<0.000000e+00> : vector<40xf32>
    %132 = vector.multi_reduction <add>, %131, %cst_54 [1] : vector<40x40xf32> to vector<40xf32>
    %133 = vector.shape_cast %132 : vector<40xf32> to vector<40x1xf32>
    %134 = tpu.reciprocal %133 {approx = true} : vector<40x1xf32> -> vector<40x1xf32>
    %135 = vector.broadcast %134 : vector<40x1xf32> to vector<40x40xf32>
    %136 = arith.mulf %131, %135 : vector<40x40xf32>
    %cst_55 = arith.constant dense<0.000000e+00> : vector<40x8xf32>
    %137 = tpu.matmul %136, %123, %cst_55 {dimension_numbers = #tpu.dot_dimension_numbers<[1], [0], [0], [1], [0, 0, 1, 1], [], []>} : vector<40x40xf32>, vector<40x8xf32>, vector<40x8xf32> -> vector<40x8xf32>
    %138 = vector.extract_strided_slice %5 {offsets = [0, 0], sizes = [8, 32], strides = [1, 1]} : vector<32x32xf32> to vector<8x32xf32>
    %cst_56 = arith.constant dense<0.000000e+00> : vector<40x32xf32>
    %139 = tpu.matmul %137, %138, %cst_56 {dimension_numbers = #tpu.dot_dimension_numbers<[1], [0], [0], [1], [0, 0, 1, 1], [], []>} : vector<40x8xf32>, vector<8x32xf32>, vector<40x32xf32> -> vector<40x32xf32>
    %140 = arith.addf %120, %139 : vector<40x32xf32>
    %141 = vector.extract_strided_slice %32 {offsets = [40, 8], sizes = [40, 8], strides = [1, 1]} : vector<80x96xf32> to vector<40x8xf32>
    %142 = vector.extract_strided_slice %32 {offsets = [40, 40], sizes = [40, 8], strides = [1, 1]} : vector<80x96xf32> to vector<40x8xf32>
    %143 = vector.extract_strided_slice %32 {offsets = [40, 72], sizes = [40, 8], strides = [1, 1]} : vector<80x96xf32> to vector<40x8xf32>
    %cst_57 = arith.constant dense<0.000000e+00> : vector<40x40xf32>
    %144 = tpu.matmul %141, %142, %cst_57 {dimension_numbers = #tpu.dot_dimension_numbers<[1], [1], [0], [0], [0, 0, 1, 0], [], []>} : vector<40x8xf32>, vector<40x8xf32>, vector<40x40xf32> -> vector<40x40xf32>
    %145 = vector.broadcast %38 : vector<1x40xf32> to vector<40x40xf32>
    %146 = arith.addf %144, %145 : vector<40x40xf32>
    %cst_58 = arith.constant dense<0xFF800000> : vector<40xf32>
    %147 = vector.multi_reduction <maximumf>, %146, %cst_58 [1] : vector<40x40xf32> to vector<40xf32>
    %148 = vector.shape_cast %147 : vector<40xf32> to vector<40x1xf32>
    %149 = vector.broadcast %148 : vector<40x1xf32> to vector<40x40xf32>
    %150 = arith.subf %146, %149 : vector<40x40xf32>
    %151 = math.exp %150 : vector<40x40xf32>
    %cst_59 = arith.constant dense<0.000000e+00> : vector<40xf32>
    %152 = vector.multi_reduction <add>, %151, %cst_59 [1] : vector<40x40xf32> to vector<40xf32>
    %153 = vector.shape_cast %152 : vector<40xf32> to vector<40x1xf32>
    %154 = tpu.reciprocal %153 {approx = true} : vector<40x1xf32> -> vector<40x1xf32>
    %155 = vector.broadcast %154 : vector<40x1xf32> to vector<40x40xf32>
    %156 = arith.mulf %151, %155 : vector<40x40xf32>
    %cst_60 = arith.constant dense<0.000000e+00> : vector<40x8xf32>
    %157 = tpu.matmul %156, %143, %cst_60 {dimension_numbers = #tpu.dot_dimension_numbers<[1], [0], [0], [1], [0, 0, 1, 1], [], []>} : vector<40x40xf32>, vector<40x8xf32>, vector<40x8xf32> -> vector<40x8xf32>
    %158 = vector.extract_strided_slice %5 {offsets = [8, 0], sizes = [8, 32], strides = [1, 1]} : vector<32x32xf32> to vector<8x32xf32>
    %cst_61 = arith.constant dense<0.000000e+00> : vector<40x32xf32>
    %159 = tpu.matmul %157, %158, %cst_61 {dimension_numbers = #tpu.dot_dimension_numbers<[1], [0], [0], [1], [0, 0, 1, 1], [], []>} : vector<40x8xf32>, vector<8x32xf32>, vector<40x32xf32> -> vector<40x32xf32>
    %160 = arith.addf %140, %159 : vector<40x32xf32>
    %161 = vector.extract_strided_slice %32 {offsets = [40, 16], sizes = [40, 8], strides = [1, 1]} : vector<80x96xf32> to vector<40x8xf32>
    %162 = vector.extract_strided_slice %32 {offsets = [40, 48], sizes = [40, 8], strides = [1, 1]} : vector<80x96xf32> to vector<40x8xf32>
    %163 = vector.extract_strided_slice %32 {offsets = [40, 80], sizes = [40, 8], strides = [1, 1]} : vector<80x96xf32> to vector<40x8xf32>
    %cst_62 = arith.constant dense<0.000000e+00> : vector<40x40xf32>
    %164 = tpu.matmul %161, %162, %cst_62 {dimension_numbers = #tpu.dot_dimension_numbers<[1], [1], [0], [0], [0, 0, 1, 0], [], []>} : vector<40x8xf32>, vector<40x8xf32>, vector<40x40xf32> -> vector<40x40xf32>
    %165 = vector.broadcast %38 : vector<1x40xf32> to vector<40x40xf32>
    %166 = arith.addf %164, %165 : vector<40x40xf32>
    %cst_63 = arith.constant dense<0xFF800000> : vector<40xf32>
    %167 = vector.multi_reduction <maximumf>, %166, %cst_63 [1] : vector<40x40xf32> to vector<40xf32>
    %168 = vector.shape_cast %167 : vector<40xf32> to vector<40x1xf32>
    %169 = vector.broadcast %168 : vector<40x1xf32> to vector<40x40xf32>
    %170 = arith.subf %166, %169 : vector<40x40xf32>
    %171 = math.exp %170 : vector<40x40xf32>
    %cst_64 = arith.constant dense<0.000000e+00> : vector<40xf32>
    %172 = vector.multi_reduction <add>, %171, %cst_64 [1] : vector<40x40xf32> to vector<40xf32>
    %173 = vector.shape_cast %172 : vector<40xf32> to vector<40x1xf32>
    %174 = tpu.reciprocal %173 {approx = true} : vector<40x1xf32> -> vector<40x1xf32>
    %175 = vector.broadcast %174 : vector<40x1xf32> to vector<40x40xf32>
    %176 = arith.mulf %171, %175 : vector<40x40xf32>
    %cst_65 = arith.constant dense<0.000000e+00> : vector<40x8xf32>
    %177 = tpu.matmul %176, %163, %cst_65 {dimension_numbers = #tpu.dot_dimension_numbers<[1], [0], [0], [1], [0, 0, 1, 1], [], []>} : vector<40x40xf32>, vector<40x8xf32>, vector<40x8xf32> -> vector<40x8xf32>
    %178 = vector.extract_strided_slice %5 {offsets = [16, 0], sizes = [8, 32], strides = [1, 1]} : vector<32x32xf32> to vector<8x32xf32>
    %cst_66 = arith.constant dense<0.000000e+00> : vector<40x32xf32>
    %179 = tpu.matmul %177, %178, %cst_66 {dimension_numbers = #tpu.dot_dimension_numbers<[1], [0], [0], [1], [0, 0, 1, 1], [], []>} : vector<40x8xf32>, vector<8x32xf32>, vector<40x32xf32> -> vector<40x32xf32>
    %180 = arith.addf %160, %179 : vector<40x32xf32>
    %181 = vector.extract_strided_slice %32 {offsets = [40, 24], sizes = [40, 8], strides = [1, 1]} : vector<80x96xf32> to vector<40x8xf32>
    %182 = vector.extract_strided_slice %32 {offsets = [40, 56], sizes = [40, 8], strides = [1, 1]} : vector<80x96xf32> to vector<40x8xf32>
    %183 = vector.extract_strided_slice %32 {offsets = [40, 88], sizes = [40, 8], strides = [1, 1]} : vector<80x96xf32> to vector<40x8xf32>
    %cst_67 = arith.constant dense<0.000000e+00> : vector<40x40xf32>
    %184 = tpu.matmul %181, %182, %cst_67 {dimension_numbers = #tpu.dot_dimension_numbers<[1], [1], [0], [0], [0, 0, 1, 0], [], []>} : vector<40x8xf32>, vector<40x8xf32>, vector<40x40xf32> -> vector<40x40xf32>
    %185 = vector.broadcast %38 : vector<1x40xf32> to vector<40x40xf32>
    %186 = arith.addf %184, %185 : vector<40x40xf32>
    %cst_68 = arith.constant dense<0xFF800000> : vector<40xf32>
    %187 = vector.multi_reduction <maximumf>, %186, %cst_68 [1] : vector<40x40xf32> to vector<40xf32>
    %188 = vector.shape_cast %187 : vector<40xf32> to vector<40x1xf32>
    %189 = vector.broadcast %188 : vector<40x1xf32> to vector<40x40xf32>
    %190 = arith.subf %186, %189 : vector<40x40xf32>
    %191 = math.exp %190 : vector<40x40xf32>
    %cst_69 = arith.constant dense<0.000000e+00> : vector<40xf32>
    %192 = vector.multi_reduction <add>, %191, %cst_69 [1] : vector<40x40xf32> to vector<40xf32>
    %193 = vector.shape_cast %192 : vector<40xf32> to vector<40x1xf32>
    %194 = tpu.reciprocal %193 {approx = true} : vector<40x1xf32> -> vector<40x1xf32>
    %195 = vector.broadcast %194 : vector<40x1xf32> to vector<40x40xf32>
    %196 = arith.mulf %191, %195 : vector<40x40xf32>
    %cst_70 = arith.constant dense<0.000000e+00> : vector<40x8xf32>
    %197 = tpu.matmul %196, %183, %cst_70 {dimension_numbers = #tpu.dot_dimension_numbers<[1], [0], [0], [1], [0, 0, 1, 1], [], []>} : vector<40x40xf32>, vector<40x8xf32>, vector<40x8xf32> -> vector<40x8xf32>
    %198 = vector.extract_strided_slice %5 {offsets = [24, 0], sizes = [8, 32], strides = [1, 1]} : vector<32x32xf32> to vector<8x32xf32>
    %cst_71 = arith.constant dense<0.000000e+00> : vector<40x32xf32>
    %199 = tpu.matmul %197, %198, %cst_71 {dimension_numbers = #tpu.dot_dimension_numbers<[1], [0], [0], [1], [0, 0, 1, 1], [], []>} : vector<40x8xf32>, vector<8x32xf32>, vector<40x32xf32> -> vector<40x32xf32>
    %200 = arith.addf %180, %199 : vector<40x32xf32>
    %201 = tpu.concatenate %119, %200 in 0 : vector<40x32xf32>, vector<40x32xf32> -> vector<80x32xf32>
    %202 = vector.broadcast %6 : vector<1x32xf32> to vector<80x32xf32>
    %203 = arith.addf %201, %202 : vector<80x32xf32>
    %204 = arith.addf %11, %203 : vector<80x32xf32>
    %cst_72 = arith.constant dense<0.000000e+00> : vector<80xf32>
    %205 = vector.multi_reduction <add>, %204, %cst_72 [1] : vector<80x32xf32> to vector<80xf32>
    %206 = vector.shape_cast %205 : vector<80xf32> to vector<80x1xf32>
    %cst_73 = arith.constant 3.200000e+01 : f32
    %207 = vector.broadcast %cst_73 : f32 to vector<80x1xf32>
    %208 = arith.divf %206, %207 : vector<80x1xf32>
    %209 = vector.broadcast %208 : vector<80x1xf32> to vector<80x32xf32>
    %210 = arith.subf %204, %209 : vector<80x32xf32>
    %211 = arith.mulf %210, %210 : vector<80x32xf32>
    %cst_74 = arith.constant dense<0.000000e+00> : vector<80xf32>
    %212 = vector.multi_reduction <add>, %211, %cst_74 [1] : vector<80x32xf32> to vector<80xf32>
    %213 = vector.shape_cast %212 : vector<80xf32> to vector<80x1xf32>
    %cst_75 = arith.constant 3.200000e+01 : f32
    %214 = vector.broadcast %cst_75 : f32 to vector<80x1xf32>
    %215 = arith.divf %213, %214 : vector<80x1xf32>
    %cst_76 = arith.constant 9.99999974E-6 : f32
    %216 = vector.broadcast %cst_76 : f32 to vector<80x1xf32>
    %217 = arith.addf %215, %216 : vector<80x1xf32>
    %218 = math.rsqrt %217 : vector<80x1xf32>
    %219 = vector.broadcast %218 : vector<80x1xf32> to vector<80x32xf32>
    %220 = arith.mulf %210, %219 : vector<80x32xf32>
    %221 = vector.broadcast %2 : vector<1x32xf32> to vector<80x32xf32>
    %222 = arith.mulf %220, %221 : vector<80x32xf32>
    %223 = vector.broadcast %3 : vector<1x32xf32> to vector<80x32xf32>
    %224 = arith.addf %222, %223 : vector<80x32xf32>
    %cst_77 = arith.constant dense<0.000000e+00> : vector<80x192xf32>
    %225 = tpu.matmul %224, %7, %cst_77 {dimension_numbers = #tpu.dot_dimension_numbers<[1], [0], [0], [1], [0, 0, 1, 1], [], []>} : vector<80x32xf32>, vector<32x192xf32>, vector<80x192xf32> -> vector<80x192xf32>
    %226 = vector.broadcast %8 : vector<1x192xf32> to vector<80x192xf32>
    %227 = arith.addf %225, %226 : vector<80x192xf32>
    %228 = vector.extract_strided_slice %227 {offsets = [0, 0], sizes = [80, 128], strides = [1, 1]} : vector<80x192xf32> to vector<80x128xf32>
    %229 = vector.extract_strided_slice %227 {offsets = [0, 128], sizes = [80, 64], strides = [1, 1]} : vector<80x192xf32> to vector<80x64xf32>
    %cst_78 = arith.constant 5.000000e-01 : f32
    %230 = vector.broadcast %cst_78 : f32 to vector<80x128xf32>
    %231 = arith.mulf %230, %228 : vector<80x128xf32>
    %cst_79 = arith.constant 0.707106769 : f32
    %232 = vector.broadcast %cst_79 : f32 to vector<80x128xf32>
    %233 = arith.mulf %228, %232 : vector<80x128xf32>
    %234 = math.erf %233 : vector<80x128xf32>
    %cst_80 = arith.constant 1.000000e+00 : f32
    %235 = vector.broadcast %cst_80 : f32 to vector<80x128xf32>
    %236 = arith.addf %235, %234 : vector<80x128xf32>
    %237 = arith.mulf %231, %236 : vector<80x128xf32>
    %cst_81 = arith.constant dense<0.000000e+00> : vector<80x64xf32>
    %238 = tpu.matmul %237, %9, %cst_81 {dimension_numbers = #tpu.dot_dimension_numbers<[1], [0], [0], [1], [0, 0, 1, 1], [], []>} : vector<80x128xf32>, vector<128x64xf32>, vector<80x64xf32> -> vector<80x64xf32>
    %239 = vector.broadcast %10 : vector<1x64xf32> to vector<80x64xf32>
    %240 = arith.addf %238, %239 : vector<80x64xf32>
    %241 = arith.addf %229, %240 : vector<80x64xf32>
    %c0_82 = arith.constant 0 : index
    %c0_83 = arith.constant 0 : index
    %242 = vector.load %arg13[%c0_82, %c0_83] : memref<80x64xf32, #tpu.memory_space<vmem>>, vector<80x64xf32>
    tpu.vector_store %arg13[%c0_82, %c0_83], %241 {strides = array<i32>} : memref<80x64xf32, #tpu.memory_space<vmem>>, vector<80x64xf32>,
    return
  }
  func.func @transform_0(%arg0: i32) -> (i32, i32) {
    %c0_i32 = arith.constant 0 : i32
    %c0_i32_0 = arith.constant 0 : i32
    %c0_i32_1 = arith.constant 0 : i32
    return %c0_i32, %c0_i32_0 : i32, i32
  }
  func.func @transform_1(%arg0: i32) -> (i32, i32) {
    %c0_i32 = arith.constant 0 : i32
    %c0_i32_0 = arith.constant 0 : i32
    %c0_i32_1 = arith.constant 0 : i32
    return %c0_i32, %c0_i32_0 : i32, i32
  }
  func.func @transform_2(%arg0: i32) -> (i32, i32) {
    %c0_i32 = arith.constant 0 : i32
    %c0_i32_0 = arith.constant 0 : i32
    %c0_i32_1 = arith.constant 0 : i32
    return %c0_i32, %c0_i32_0 : i32, i32
  }
  func.func @transform_3(%arg0: i32) -> (i32, i32) {
    %c0_i32 = arith.constant 0 : i32
    %c0_i32_0 = arith.constant 0 : i32
    %c0_i32_1 = arith.constant 0 : i32
    return %c0_i32, %c0_i32_0 : i32, i32
  }
  func.func @transform_4(%arg0: i32) -> (i32, i32) {
    %c0_i32 = arith.constant 0 : i32
    %c0_i32_0 = arith.constant 0 : i32
    %c0_i32_1 = arith.constant 0 : i32
    return %c0_i32, %c0_i32_0 : i32, i32
  }
  func.func @transform_5(%arg0: i32) -> (i32, i32) {
    %c0_i32 = arith.constant 0 : i32
    %c0_i32_0 = arith.constant 0 : i32
    %c0_i32_1 = arith.constant 0 : i32
    return %c0_i32, %c0_i32_0 : i32, i32
  }
  func.func @transform_6(%arg0: i32) -> (i32, i32) {
    %c0_i32 = arith.constant 0 : i32
    %c0_i32_0 = arith.constant 0 : i32
    %c0_i32_1 = arith.constant 0 : i32
    return %c0_i32, %c0_i32_0 : i32, i32
  }
  func.func @transform_7(%arg0: i32) -> (i32, i32) {
    %c0_i32 = arith.constant 0 : i32
    %c0_i32_0 = arith.constant 0 : i32
    %c0_i32_1 = arith.constant 0 : i32
    return %c0_i32, %c0_i32_0 : i32, i32
  }
  func.func @transform_8(%arg0: i32) -> (i32, i32) {
    %c0_i32 = arith.constant 0 : i32
    %c0_i32_0 = arith.constant 0 : i32
    %c0_i32_1 = arith.constant 0 : i32
    return %c0_i32, %c0_i32_0 : i32, i32
  }
  func.func @transform_9(%arg0: i32) -> (i32, i32) {
    %c0_i32 = arith.constant 0 : i32
    %c0_i32_0 = arith.constant 0 : i32
    %c0_i32_1 = arith.constant 0 : i32
    return %c0_i32, %c0_i32_0 : i32, i32
  }
  func.func @transform_10(%arg0: i32) -> (i32, i32) {
    %c0_i32 = arith.constant 0 : i32
    %c0_i32_0 = arith.constant 0 : i32
    %c0_i32_1 = arith.constant 0 : i32
    return %c0_i32, %c0_i32_0 : i32, i32
  }
  func.func @transform_11(%arg0: i32) -> (i32, i32) {
    %c0_i32 = arith.constant 0 : i32
    %c0_i32_0 = arith.constant 0 : i32
    %c0_i32_1 = arith.constant 0 : i32
    return %c0_i32, %c0_i32_0 : i32, i32
  }
  func.func @transform_12(%arg0: i32) -> (i32, i32) {
    %c0_i32 = arith.constant 0 : i32
    %c0_i32_0 = arith.constant 0 : i32
    %c0_i32_1 = arith.constant 0 : i32
    return %c0_i32, %c0_i32_0 : i32, i32
  }
}

</mosaic_0001>

<llo_original>
// kernel: tpu_custom_call.1
$region0: #{tpu_custom_call.1}
  #allocation0 [shape = 'u32[]', space=smem, size = 0x4, offset = 0x4, fixed_abs, tag = 'smem constant byte address 0x4 - core index']
  #allocation1 [shape = 'u32[144,128]{1,0:T(1,128)}', space=vmem, size = 0x12000, scoped, tag = 'internal scratch']
  %s0 = inlined_call_operand.vmem [shape: f32[80,32], index: 0, kind: input, shape index: {}]
  %s1 = inlined_call_operand.vmem [shape: f32[1,32], index: 1, kind: input, shape index: {}]
  %s2 = inlined_call_operand.vmem [shape: f32[1,32], index: 2, kind: input, shape index: {}]
  %s3 = inlined_call_operand.vmem [shape: f32[32,96], index: 3, kind: input, shape index: {}]
  %s4 = inlined_call_operand.vmem [shape: f32[32,32], index: 4, kind: input, shape index: {}]
  %s5 = inlined_call_operand.vmem [shape: f32[1,32], index: 5, kind: input, shape index: {}]
  %s6 = inlined_call_operand.vmem [shape: f32[1,32], index: 6, kind: input, shape index: {}]
  %s7 = inlined_call_operand.vmem [shape: f32[1,32], index: 7, kind: input, shape index: {}]
  %s8 = inlined_call_operand.vmem [shape: f32[32,192], index: 8, kind: input, shape index: {}]
  %s9 = inlined_call_operand.vmem [shape: f32[1,192], index: 9, kind: input, shape index: {}]
  %s10 = inlined_call_operand.vmem [shape: f32[128,64], index: 10, kind: input, shape index: {}]
  %s11 = inlined_call_operand.vmem [shape: f32[1,64], index: 11, kind: input, shape index: {}]
  %s12 = inlined_call_operand.vmem [shape: f32[80,64], index: 12, kind: output, shape index: {}]
  %s13 = sld [smem:[#allocation0]]
  $region58: #{tpu_custom_call.1} parent=0
    _
  %s15 = ssub.s32 1, %s13
  %s16 = scalar_select 0, %s15, %s13
  // Predicated region
  $region2: #{tpu_custom_call.1} parent=0 // pred_check
    _
  $region3: #{tpu_custom_call.1} parent=0 // pred_check_branch
    %18 = sbr.rel (0) target = $region5
  $region4: #{tpu_custom_call.1} parent=0 // pred_region
    _
  $region5: #{tpu_custom_call.1} parent=0 // pred_fallthru
    _
  // Predicated region
  $region6: #{tpu_custom_call.1} parent=0 // pred_check
    _
  $region7: #{tpu_custom_call.1} parent=0 // pred_check_branch
    %20 = sbr.rel (0) target = $region9
  $region8: #{tpu_custom_call.1} parent=0 // pred_region
    _
  $region9: #{tpu_custom_call.1} parent=0 // pred_fallthru
    _
  // Predicated region
  $region10: #{tpu_custom_call.1} parent=0 // pred_check
    _
  $region11: #{tpu_custom_call.1} parent=0 // pred_check_branch
    %22 = sbr.rel (0) target = $region13
  $region12: #{tpu_custom_call.1} parent=0 // pred_region
    _
  $region13: #{tpu_custom_call.1} parent=0 // pred_fallthru
    _
  // Predicated region
  $region14: #{tpu_custom_call.1} parent=0 // pred_check
    _
  $region15: #{tpu_custom_call.1} parent=0 // pred_check_branch
    %24 = sbr.rel (0) target = $region17
  $region16: #{tpu_custom_call.1} parent=0 // pred_region
    _
  $region17: #{tpu_custom_call.1} parent=0 // pred_fallthru
    _
  // Predicated region
  $region18: #{tpu_custom_call.1} parent=0 // pred_check
    _
  $region19: #{tpu_custom_call.1} parent=0 // pred_check_branch
    %26 = sbr.rel (0) target = $region21
  $region20: #{tpu_custom_call.1} parent=0 // pred_region
    _
  $region21: #{tpu_custom_call.1} parent=0 // pred_fallthru
    _
  // Predicated region
  $region22: #{tpu_custom_call.1} parent=0 // pred_check
    _
  $region23: #{tpu_custom_call.1} parent=0 // pred_check_branch
    %28 = sbr.rel (0) target = $region25
  $region24: #{tpu_custom_call.1} parent=0 // pred_region
    _
  $region25: #{tpu_custom_call.1} parent=0 // pred_fallthru
    _
  // Predicated region
  $region26: #{tpu_custom_call.1} parent=0 // pred_check
    _
  $region27: #{tpu_custom_call.1} parent=0 // pred_check_branch
    %30 = sbr.rel (0) target = $region29
  $region28: #{tpu_custom_call.1} parent=0 // pred_region
    _
  $region29: #{tpu_custom_call.1} parent=0 // pred_fallthru
    _
  // Predicated region
  $region30: #{tpu_custom_call.1} parent=0 // pred_check
    _
  $region31: #{tpu_custom_call.1} parent=0 // pred_check_branch
    %32 = sbr.rel (0) target = $region33
  $region32: #{tpu_custom_call.1} parent=0 // pred_region
    _
  $region33: #{tpu_custom_call.1} parent=0 // pred_fallthru
    _
  // Predicated region
  $region34: #{tpu_custom_call.1} parent=0 // pred_check
    _
  $region35: #{tpu_custom_call.1} parent=0 // pred_check_branch
    %34 = sbr.rel (0) target = $region37
  $region36: #{tpu_custom_call.1} parent=0 // pred_region
    _
  $region37: #{tpu_custom_call.1} parent=0 // pred_fallthru
    _
  // Predicated region
  $region38: #{tpu_custom_call.1} parent=0 // pred_check
    _
  $region39: #{tpu_custom_call.1} parent=0 // pred_check_branch
    %36 = sbr.rel (0) target = $region41
  $region40: #{tpu_custom_call.1} parent=0 // pred_region
    _
  $region41: #{tpu_custom_call.1} parent=0 // pred_fallthru
    _
  // Predicated region
  $region42: #{tpu_custom_call.1} parent=0 // pred_check
    _
  $region43: #{tpu_custom_call.1} parent=0 // pred_check_branch
    %38 = sbr.rel (0) target = $region45
  $region44: #{tpu_custom_call.1} parent=0 // pred_region
    _
  $region45: #{tpu_custom_call.1} parent=0 // pred_fallthru
    _
  // Predicated region
  $region46: #{tpu_custom_call.1} parent=0 // pred_check
    _
  $region47: #{tpu_custom_call.1} parent=0 // pred_check_branch
    %40 = sbr.rel (0) target = $region49
  $region48: #{tpu_custom_call.1} parent=0 // pred_region
    _
  $region49: #{tpu_custom_call.1} parent=0 // pred_fallthru
    _
  %v41 = vld [vmem:[%s1] sm:$0x1]
  %v42 = vld [vmem:[%s2] sm:$0x1]
  %v43 = vld [vmem:[%s6] sm:$0x1]
  %v44 = vld [vmem:[%s7] sm:$0x1]
  %v45 = vld [vmem:[%s3] sm:$0xff]
  %v46 = vld [vmem:[%s3 + $0x8] sm:$0xff]
  %v47 = vld [vmem:[%s3 + $0x10] sm:$0xff]
  %v48 = vld [vmem:[%s3 + $0x18] sm:$0xff]
  %v49 = vld [vmem:[%s4] sm:$0xff]
  %v50 = vld [vmem:[%s4 + $0x8] sm:$0xff]
  %v51 = vld [vmem:[%s4 + $0x10] sm:$0xff]
  %v52 = vld [vmem:[%s4 + $0x18] sm:$0xff]
  %v53 = vld [vmem:[%s5] sm:$0x1]
  %v54 = vld [vmem:[%s8] sm:$0xff]
  %v55 = vld [vmem:[%s8 + $0x8] sm:$0xff]
  %v56 = vld [vmem:[%s8 + $0x10] sm:$0xff]
  %v57 = vld [vmem:[%s8 + $0x18] sm:$0xff]
  %v58 = vld [vmem:[%s8 + $0x20] sm:$0xff]
  %v59 = vld [vmem:[%s8 + $0x28] sm:$0xff]
  %v60 = vld [vmem:[%s8 + $0x30] sm:$0xff]
  %v61 = vld [vmem:[%s8 + $0x38] sm:$0xff]
  %v62 = vld [vmem:[%s9] sm:$0x3]
  %v63 = vld [vmem:[%s10] sm:$0xff]
  %v64 = vld [vmem:[%s10 + $0x8] sm:$0xff]
  %v65 = vld [vmem:[%s10 + $0x10] sm:$0xff]
  %v66 = vld [vmem:[%s10 + $0x18] sm:$0xff]
  %v67 = vld [vmem:[%s10 + $0x20] sm:$0xff]
  %v68 = vld [vmem:[%s10 + $0x28] sm:$0xff]
  %v69 = vld [vmem:[%s10 + $0x30] sm:$0xff]
  %v70 = vld [vmem:[%s10 + $0x38] sm:$0xff]
  %v71 = vld [vmem:[%s10 + $0x40] sm:$0xff]
  %v72 = vld [vmem:[%s10 + $0x48] sm:$0xff]
  %v73 = vld [vmem:[%s10 + $0x50] sm:$0xff]
  %v74 = vld [vmem:[%s10 + $0x58] sm:$0xff]
  %v75 = vld [vmem:[%s10 + $0x60] sm:$0xff]
  %v76 = vld [vmem:[%s10 + $0x68] sm:$0xff]
  %v77 = vld [vmem:[%s10 + $0x70] sm:$0xff]
  %v78 = vld [vmem:[%s10 + $0x78] sm:$0xff]
  %v79 = vld [vmem:[%s11] sm:$0x1]
  %v80 = vld [vmem:[%s0] sm:$0xff]
  %v81 = vld [vmem:[%s0 + $0x8] sm:$0xff]
  %v82 = vld [vmem:[%s0 + $0x10] sm:$0xff]
  %v83 = vld [vmem:[%s0 + $0x18] sm:$0xff]
  %v84 = vld [vmem:[%s0 + $0x20] sm:$0xff]
  %v85 = vld [vmem:[%s0 + $0x28] sm:$0xff]
  %v86 = vld [vmem:[%s0 + $0x30] sm:$0xff]
  %v87 = vld [vmem:[%s0 + $0x38] sm:$0xff]
  %v88 = vld [vmem:[%s0 + $0x40] sm:$0xff]
  %v89 = vld [vmem:[%s0 + $0x48] sm:$0xff]
  %vm90 = vcmask 261120
  %v91 = vsel %vm90, %v80, 0.0
  %92 = vadd.xlane.f32.xlu0 %v91
  %v93 = vpop.xlane.xlu0 %92
  %v94 = vsel %vm90, %v81, 0.0
  %95 = vadd.xlane.f32.xlu0 %v94
  %v96 = vpop.xlane.xlu0 %95
  %v97 = vsel %vm90, %v82, 0.0
  %98 = vadd.xlane.f32.xlu0 %v97
  %v99 = vpop.xlane.xlu0 %98
  %v100 = vsel %vm90, %v83, 0.0
  %101 = vadd.xlane.f32.xlu0 %v100
  %v102 = vpop.xlane.xlu0 %101
  %v103 = vsel %vm90, %v84, 0.0
  %104 = vadd.xlane.f32.xlu0 %v103
  %v105 = vpop.xlane.xlu0 %104
  %v106 = vsel %vm90, %v85, 0.0
  %107 = vadd.xlane.f32.xlu0 %v106
  %v108 = vpop.xlane.xlu0 %107
  %v109 = vsel %vm90, %v86, 0.0
  %110 = vadd.xlane.f32.xlu0 %v109
  %v111 = vpop.xlane.xlu0 %110
  %v112 = vsel %vm90, %v87, 0.0
  %113 = vadd.xlane.f32.xlu0 %v112
  %v114 = vpop.xlane.xlu0 %113
  %v115 = vsel %vm90, %v88, 0.0
  %116 = vadd.xlane.f32.xlu0 %v115
  %v117 = vpop.xlane.xlu0 %116
  %v118 = vsel %vm90, %v89, 0.0
  %119 = vadd.xlane.f32.xlu0 %v118
  %v120 = vpop.xlane.xlu0 %119
  %v121 = vrcp.pop 32.0
  %v122 = vmul.f32 %v93, %v121
  %v123 = vmul.f32 %v96, %v121
  %v124 = vmul.f32 %v99, %v121
  %v125 = vmul.f32 %v102, %v121
  %v126 = vmul.f32 %v105, %v121
  %v127 = vmul.f32 %v108, %v121
  %v128 = vmul.f32 %v111, %v121
  %v129 = vmul.f32 %v114, %v121
  %v130 = vmul.f32 %v117, %v121
  %v131 = vmul.f32 %v120, %v121
  %v132 = vsub.f32 %v80, %v122
  %v133 = vsub.f32 %v81, %v123
  %v134 = vsub.f32 %v82, %v124
  %v135 = vsub.f32 %v83, %v125
  %v136 = vsub.f32 %v84, %v126
  %v137 = vsub.f32 %v85, %v127
  %v138 = vsub.f32 %v86, %v128
  %v139 = vsub.f32 %v87, %v129
  %v140 = vsub.f32 %v88, %v130
  %v141 = vsub.f32 %v89, %v131
  %v142 = vmul.f32 %v132, %v132
  %v143 = vmul.f32 %v133, %v133
  %v144 = vmul.f32 %v134, %v134
  %v145 = vmul.f32 %v135, %v135
  %v146 = vmul.f32 %v136, %v136
  %v147 = vmul.f32 %v137, %v137
  %v148 = vmul.f32 %v138, %v138
  %v149 = vmul.f32 %v139, %v139
  %v150 = vmul.f32 %v140, %v140
  %v151 = vmul.f32 %v141, %v141
  %v152 = vsel %vm90, %v142, 0.0
  %153 = vadd.xlane.f32.xlu0 %v152
  %v154 = vpop.xlane.xlu0 %153
  %v155 = vsel %vm90, %v143, 0.0
  %156 = vadd.xlane.f32.xlu0 %v155
  %v157 = vpop.xlane.xlu0 %156
  %v158 = vsel %vm90, %v144, 0.0
  %159 = vadd.xlane.f32.xlu0 %v158
  %v160 = vpop.xlane.xlu0 %159
  %v161 = vsel %vm90, %v145, 0.0
  %162 = vadd.xlane.f32.xlu0 %v161
  %v163 = vpop.xlane.xlu0 %162
  %v164 = vsel %vm90, %v146, 0.0
  %165 = vadd.xlane.f32.xlu0 %v164
  %v166 = vpop.xlane.xlu0 %165
  %v167 = vsel %vm90, %v147, 0.0
  %168 = vadd.xlane.f32.xlu0 %v167
  %v169 = vpop.xlane.xlu0 %168
  %v170 = vsel %vm90, %v148, 0.0
  %171 = vadd.xlane.f32.xlu0 %v170
  %v172 = vpop.xlane.xlu0 %171
  %v173 = vsel %vm90, %v149, 0.0
  %174 = vadd.xlane.f32.xlu0 %v173
  %v175 = vpop.xlane.xlu0 %174
  %v176 = vsel %vm90, %v150, 0.0
  %177 = vadd.xlane.f32.xlu0 %v176
  %v178 = vpop.xlane.xlu0 %177
  %v179 = vsel %vm90, %v151, 0.0
  %180 = vadd.xlane.f32.xlu0 %v179
  %v181 = vpop.xlane.xlu0 %180
  %v182 = vmul.f32 %v154, %v121
  %v183 = vmul.f32 %v157, %v121
  %v184 = vmul.f32 %v160, %v121
  %v185 = vmul.f32 %v163, %v121
  %v186 = vmul.f32 %v166, %v121
  %v187 = vmul.f32 %v169, %v121
  %v188 = vmul.f32 %v172, %v121
  %v189 = vmul.f32 %v175, %v121
  %v190 = vmul.f32 %v178, %v121
  %v191 = vmul.f32 %v181, %v121
  %v192 = vadd.f32 %v182, 1e-05
  %v193 = vadd.f32 %v183, 1e-05
  %v194 = vadd.f32 %v184, 1e-05
  %v195 = vadd.f32 %v185, 1e-05
  %v196 = vadd.f32 %v186, 1e-05
  %v197 = vadd.f32 %v187, 1e-05
  %v198 = vadd.f32 %v188, 1e-05
  %v199 = vadd.f32 %v189, 1e-05
  %v200 = vadd.f32 %v190, 1e-05
  %v201 = vadd.f32 %v191, 1e-05
  %v202 = vrsqrt.pop %v192
  %v203 = vrsqrt.pop %v193
  %v204 = vrsqrt.pop %v194
  %v205 = vrsqrt.pop %v195
  %v206 = vrsqrt.pop %v196
  %v207 = vrsqrt.pop %v197
  %v208 = vrsqrt.pop %v198
  %v209 = vrsqrt.pop %v199
  %v210 = vrsqrt.pop %v200
  %v211 = vrsqrt.pop %v201
  %v212 = vmul.f32 %v132, %v202
  %v213 = vmul.f32 %v133, %v203
  %v214 = vmul.f32 %v134, %v204
  %v215 = vmul.f32 %v135, %v205
  %v216 = vmul.f32 %v136, %v206
  %v217 = vmul.f32 %v137, %v207
  %v218 = vmul.f32 %v138, %v208
  %v219 = vmul.f32 %v139, %v209
  %v220 = vmul.f32 %v140, %v210
  %v221 = vmul.f32 %v141, %v211
  %v223 = vlaneseq
  %v224 = vshrl.u32 %v223, 7
  %v225 = vsub.s32 0, %v224
  %v226 = vrot.slane %v41, %v225
  %v228 = vmul.f32 %v212, %v226
  %v229 = vmul.f32 %v213, %v226
  %v230 = vmul.f32 %v214, %v226
  %v231 = vmul.f32 %v215, %v226
  %v232 = vmul.f32 %v216, %v226
  %v233 = vmul.f32 %v217, %v226
  %v234 = vmul.f32 %v218, %v226
  %v235 = vmul.f32 %v219, %v226
  %v236 = vmul.f32 %v220, %v226
  %v237 = vmul.f32 %v221, %v226
  %v239 = vlaneseq
  %v240 = vshrl.u32 %v239, 7
  %v241 = vsub.s32 0, %v240
  %v242 = vrot.slane %v42, %v241
  %v244 = vadd.f32 %v228, %v242
  %v245 = vadd.f32 %v229, %v242
  %v246 = vadd.f32 %v230, %v242
  %v247 = vadd.f32 %v231, %v242
  %v248 = vadd.f32 %v232, %v242
  %v249 = vadd.f32 %v233, %v242
  %v250 = vadd.f32 %v234, %v242
  %v251 = vadd.f32 %v235, %v242
  %v252 = vadd.f32 %v236, %v242
  %v253 = vadd.f32 %v237, %v242
  %v255 = vsel %vm90, %v244, 0
  %v258 = vsel %vm90, %v245, 0
  %v261 = vsel %vm90, %v246, 0
  %v264 = vsel %vm90, %v247, 0
  %v267 = vsel %vm90, %v248, 0
  %v270 = vsel %vm90, %v249, 0
  %v273 = vsel %vm90, %v250, 0
  %v276 = vsel %vm90, %v251, 0
  %v279 = vsel %vm90, %v252, 0
  %v282 = vsel %vm90, %v253, 0
  %284 = vmatprep.subr.mxu0 0.0
  %285 = vmatpush1.msra.mxu0 0.0
  %286 = vmatprep.subr.mxu0 0.0
  %287 = vmatpush1.msra.mxu0 0.0
  %288 = vmatprep.subr.mxu0 0.0
  %289 = vmatpush1.msra.mxu0 0.0
  %290 = vmatprep.subr.mxu0 0.0
  %291 = vmatpush1.msra.mxu0 0.0
  %292 = vmatprep.subr.mxu0 0.0
  %293 = vmatpush1.msra.mxu0 0.0
  %294 = vmatprep.subr.mxu0 0.0
  %295 = vmatpush1.msra.mxu0 0.0
  %296 = vmatprep.subr.mxu0 0.0
  %297 = vmatpush1.msra.mxu0 0.0
  %298 = vmatprep.subr.mxu0 0.0
  %299 = vmatpush1.msra.mxu0 0.0
  %300 = vmatprep.subr.mxu0 0.0
  %301 = vmatpush1.msra.mxu0 0.0
  %302 = vmatprep.subr.mxu0 0.0
  %303 = vmatpush1.msra.mxu0 0.0
  %304 = vmatprep.subr.mxu0 0.0
  %305 = vmatpush1.msra.mxu0 0.0
  %306 = vmatprep.subr.mxu0 0.0
  %307 = vmatpush1.msra.mxu0 0.0
  %308 = vmatprep.subr.mxu0 0.0
  %309 = vmatpush1.msra.mxu0 %v48
  %310 = vmatprep.subr.mxu0 0.0
  %311 = vmatpush1.msra.mxu0 %v47
  %312 = vmatprep.subr.mxu0 0.0
  %313 = vmatpush1.msra.mxu0 %v46
  %314 = vmatprep.subr.mxu0 0.0
  %315 = vmatpush1.msra.mxu0 %v45
  %316 = vmatprep.subr.mxu0 0.0
  %317 = vmatpush2.msra.mxu0 0.0
  %318 = vmatprep.subr.mxu0 0.0
  %319 = vmatpush2.msra.mxu0 0.0
  %320 = vmatprep.subr.mxu0 0.0
  %321 = vmatpush2.msra.mxu0 0.0
  %322 = vmatprep.subr.mxu0 0.0
  %323 = vmatpush2.msra.mxu0 0.0
  %324 = vmatprep.subr.mxu0 0.0
  %325 = vmatpush2.msra.mxu0 0.0
  %326 = vmatprep.subr.mxu0 0.0
  %327 = vmatpush2.msra.mxu0 0.0
  %328 = vmatprep.subr.mxu0 0.0
  %329 = vmatpush2.msra.mxu0 0.0
  %330 = vmatprep.subr.mxu0 0.0
  %331 = vmatpush2.msra.mxu0 0.0
  %332 = vmatprep.subr.mxu0 0.0
  %333 = vmatpush2.msra.mxu0 0.0
  %334 = vmatprep.subr.mxu0 0.0
  %335 = vmatpush2.msra.mxu0 0.0
  %336 = vmatprep.subr.mxu0 0.0
  %337 = vmatpush2.msra.mxu0 0.0
  %338 = vmatprep.subr.mxu0 0.0
  %339 = vmatpush2.msra.mxu0 0.0
  %340 = vmatprep.subr.mxu0 0.0
  %341 = vmatpush2.msra.mxu0 0.0
  %342 = vmatprep.subr.mxu0 0.0
  %343 = vmatpush2.msra.mxu0 0.0
  %344 = vmatprep.subr.mxu0 0.0
  %345 = vmatpush2.msra.mxu0 0.0
  %346 = vmatprep.subr.mxu0 0.0
  %347 = vmatpush2.msra.mxu0 0.0
  %348 = vmatprep.mubr.f32.mxu0 0.0
  %349 = vmatmul.mubr.f32.gmra.mxu0 %v255
  %v350 = vpop.f32.mrf.mxu0
  %v351 = vadd.f32 0.0, %v350
  %v352 = vpop.f32.mrf.mxu0
  %353 = vmatprep.mubr.f32.mxu0 0.0
  %354 = vmatmul.mubr.f32.gmra.mxu0 %v258
  %v355 = vpop.f32.mrf.mxu0
  %v356 = vadd.f32 0.0, %v355
  %v357 = vpop.f32.mrf.mxu0
  %358 = vmatprep.mubr.f32.mxu0 0.0
  %359 = vmatmul.mubr.f32.gmra.mxu0 %v261
  %v360 = vpop.f32.mrf.mxu0
  %v361 = vadd.f32 0.0, %v360
  %v362 = vpop.f32.mrf.mxu0
  %363 = vmatprep.mubr.f32.mxu0 0.0
  %364 = vmatmul.mubr.f32.gmra.mxu0 %v264
  %v365 = vpop.f32.mrf.mxu0
  %v366 = vadd.f32 0.0, %v365
  %v367 = vpop.f32.mrf.mxu0
  %368 = vmatprep.mubr.f32.mxu0 0.0
  %369 = vmatmul.mubr.f32.gmra.mxu0 %v267
  %v370 = vpop.f32.mrf.mxu0
  %v371 = vadd.f32 0.0, %v370
  %v372 = vpop.f32.mrf.mxu0
  %373 = vmatprep.mubr.f32.mxu0 0.0
  %374 = vmatmul.mubr.f32.gmra.mxu0 %v270
  %v375 = vpop.f32.mrf.mxu0
  %v376 = vadd.f32 0.0, %v375
  %v377 = vpop.f32.mrf.mxu0
  %378 = vmatprep.mubr.f32.mxu0 0.0
  %379 = vmatmul.mubr.f32.gmra.mxu0 %v273
  %v380 = vpop.f32.mrf.mxu0
  %v381 = vadd.f32 0.0, %v380
  %v382 = vpop.f32.mrf.mxu0
  %383 = vmatprep.mubr.f32.mxu0 0.0
  %384 = vmatmul.mubr.f32.gmra.mxu0 %v276
  %v385 = vpop.f32.mrf.mxu0
  %v386 = vadd.f32 0.0, %v385
  %v387 = vpop.f32.mrf.mxu0
  %388 = vmatprep.mubr.f32.mxu0 0.0
  %389 = vmatmul.mubr.f32.gmra.mxu0 %v279
  %v390 = vpop.f32.mrf.mxu0
  %v391 = vadd.f32 0.0, %v390
  %v392 = vpop.f32.mrf.mxu0
  %393 = vmatprep.mubr.f32.mxu0 0.0
  %394 = vmatmul.mubr.f32.gmra.mxu0 %v282
  %v395 = vpop.f32.mrf.mxu0
  %v396 = vadd.f32 0.0, %v395
  %v397 = vpop.f32.mrf.mxu0
  %398 = vdwg.mxu0
  %v399 = vlaneseq
  %v400 = vand.u32 %v399, 127
  %vm401 = vcmp.lt.s32.totalorder %v400, 33
  %v402 = vsel %vm401, 0.0, -1e+30
  %408 = vrot.lane.b32.xlu0 %v351, 96
  %v409 = vpop.permute.xlu0 %408
  %410 = vrot.lane.b32.xlu0 %v356, 96
  %v411 = vpop.permute.xlu0 %410
  %412 = vrot.lane.b32.xlu0 %v361, 96
  %v413 = vpop.permute.xlu0 %412
  %414 = vrot.lane.b32.xlu0 %v366, 96
  %v415 = vpop.permute.xlu0 %414
  %416 = vrot.lane.b32.xlu0 %v371, 96
  %v417 = vpop.permute.xlu0 %416
  %vm418 = vcmask 64512
  %v419 = vsel %vm418, %v351, 0
  %v421 = vsel %vm418, %v356, 0
  %v423 = vsel %vm418, %v361, 0
  %v425 = vsel %vm418, %v366, 0
  %v427 = vsel %vm418, %v371, 0
  %v429 = vsel %vm418, %v409, 0
  %v431 = vsel %vm418, %v411, 0
  %v433 = vsel %vm418, %v413, 0
  %v435 = vsel %vm418, %v415, 0
  %v437 = vsel %vm418, %v417, 0
  %439 = vmatprep.subr.mxu0 0.0
  %440 = vmatpush1.xpose.msra.mxu0 0.0
  %441 = vmatprep.subr.mxu0 0.0
  %442 = vmatpush1.xpose.msra.mxu0 0.0
  %443 = vmatprep.subr.mxu0 0.0
  %444 = vmatpush1.xpose.msra.mxu0 0.0
  %445 = vmatprep.subr.mxu0 0.0
  %446 = vmatpush1.xpose.msra.mxu0 0.0
  %447 = vmatprep.subr.mxu0 0.0
  %448 = vmatpush1.xpose.msra.mxu0 0.0
  %449 = vmatprep.subr.mxu0 0.0
  %450 = vmatpush1.xpose.msra.mxu0 0.0
  %451 = vmatprep.subr.mxu0 0.0
  %452 = vmatpush1.xpose.msra.mxu0 0.0
  %453 = vmatprep.subr.mxu0 0.0
  %454 = vmatpush1.xpose.msra.mxu0 0.0
  %455 = vmatprep.subr.mxu0 0.0
  %456 = vmatpush1.xpose.msra.mxu0 0.0
  %457 = vmatprep.subr.mxu0 0.0
  %458 = vmatpush1.xpose.msra.mxu0 0.0
  %459 = vmatprep.subr.mxu0 0.0
  %460 = vmatpush1.xpose.msra.mxu0 0.0
  %461 = vmatprep.subr.mxu0 0.0
  %462 = vmatpush1.xpose.msra.mxu0 %v437
  %463 = vmatprep.subr.mxu0 0.0
  %464 = vmatpush1.xpose.msra.mxu0 %v435
  %465 = vmatprep.subr.mxu0 0.0
  %466 = vmatpush1.xpose.msra.mxu0 %v433
  %467 = vmatprep.subr.mxu0 0.0
  %468 = vmatpush1.xpose.msra.mxu0 %v431
  %469 = vmatprep.subr.mxu0 0.0
  %470 = vmatpush1.xpose.msra.mxu0 %v429
  %471 = vmatprep.subr.mxu0 0.0
  %472 = vmatpush2.xpose.msra.mxu0 0.0
  %473 = vmatprep.subr.mxu0 0.0
  %474 = vmatpush2.xpose.msra.mxu0 0.0
  %475 = vmatprep.subr.mxu0 0.0
  %476 = vmatpush2.xpose.msra.mxu0 0.0
  %477 = vmatprep.subr.mxu0 0.0
  %478 = vmatpush2.xpose.msra.mxu0 0.0
  %479 = vmatprep.subr.mxu0 0.0
  %480 = vmatpush2.xpose.msra.mxu0 0.0
  %481 = vmatprep.subr.mxu0 0.0
  %482 = vmatpush2.xpose.msra.mxu0 0.0
  %483 = vmatprep.subr.mxu0 0.0
  %484 = vmatpush2.xpose.msra.mxu0 0.0
  %485 = vmatprep.subr.mxu0 0.0
  %486 = vmatpush2.xpose.msra.mxu0 0.0
  %487 = vmatprep.subr.mxu0 0.0
  %488 = vmatpush2.xpose.msra.mxu0 0.0
  %489 = vmatprep.subr.mxu0 0.0
  %490 = vmatpush2.xpose.msra.mxu0 0.0
  %491 = vmatprep.subr.mxu0 0.0
  %492 = vmatpush2.xpose.msra.mxu0 0.0
  %493 = vmatprep.subr.mxu0 0.0
  %494 = vmatpush2.xpose.msra.mxu0 0.0
  %495 = vmatprep.subr.mxu0 0.0
  %496 = vmatpush2.xpose.msra.mxu0 0.0
  %497 = vmatprep.subr.mxu0 0.0
  %498 = vmatpush2.xpose.msra.mxu0 0.0
  %499 = vmatprep.subr.mxu0 0.0
  %500 = vmatpush2.xpose.msra.mxu0 0.0
  %501 = vmatprep.subr.mxu0 0.0
  %502 = vmatpush2.xpose.msra.mxu0 0.0
  %503 = vmatprep.mubr.f32.mxu0 0.0
  %504 = vmatmul.mubr.f32.gmra.mxu0 %v419
  %v505 = vpop.f32.mrf.mxu0
  %v506 = vadd.f32 %v402, %v505
  %v507 = vpop.f32.mrf.mxu0
  %508 = vmatprep.mubr.f32.mxu0 0.0
  %509 = vmatmul.mubr.f32.gmra.mxu0 %v421
  %v510 = vpop.f32.mrf.mxu0
  %v511 = vadd.f32 %v402, %v510
  %v512 = vpop.f32.mrf.mxu0
  %513 = vmatprep.mubr.f32.mxu0 0.0
  %514 = vmatmul.mubr.f32.gmra.mxu0 %v423
  %v515 = vpop.f32.mrf.mxu0
  %v516 = vadd.f32 %v402, %v515
  %v517 = vpop.f32.mrf.mxu0
  %518 = vmatprep.mubr.f32.mxu0 0.0
  %519 = vmatmul.mubr.f32.gmra.mxu0 %v425
  %v520 = vpop.f32.mrf.mxu0
  %v521 = vadd.f32 %v402, %v520
  %v522 = vpop.f32.mrf.mxu0
  %523 = vmatprep.mubr.f32.mxu0 0.0
  %524 = vmatmul.mubr.f32.gmra.mxu0 %v427
  %v525 = vpop.f32.mrf.mxu0
  %v526 = vadd.f32 %v402, %v525
  %v527 = vpop.f32.mrf.mxu0
  %528 = vdwg.mxu0
  %vm529 = vcmask 326656
  %v530 = vsel %vm529, %v506, -inf
  %531 = vmax.xlane.f32.xlu0 %v530
  %v532 = vpop.xlane.xlu0 %531
  %v533 = vsel %vm529, %v511, -inf
  %534 = vmax.xlane.f32.xlu0 %v533
  %v535 = vpop.xlane.xlu0 %534
  %v536 = vsel %vm529, %v516, -inf
  %537 = vmax.xlane.f32.xlu0 %v536
  %v538 = vpop.xlane.xlu0 %537
  %v539 = vsel %vm529, %v521, -inf
  %540 = vmax.xlane.f32.xlu0 %v539
  %v541 = vpop.xlane.xlu0 %540
  %v542 = vsel %vm529, %v526, -inf
  %543 = vmax.xlane.f32.xlu0 %v542
  %v544 = vpop.xlane.xlu0 %543
  %v545 = vsub.f32 %v506, %v532
  %v546 = vsub.f32 %v511, %v535
  %v547 = vsub.f32 %v516, %v538
  %v548 = vsub.f32 %v521, %v541
  %v549 = vsub.f32 %v526, %v544
  %v550 = vmul.f32 %v545, 1.442695
  %v551 = vpow.pop %v550
  %v552 = vmul.f32 %v546, 1.442695
  %v553 = vpow.pop %v552
  %v554 = vmul.f32 %v547, 1.442695
  %v555 = vpow.pop %v554
  %v556 = vmul.f32 %v548, 1.442695
  %v557 = vpow.pop %v556
  %v558 = vmul.f32 %v549, 1.442695
  %v559 = vpow.pop %v558
  %v560 = vsel %vm529, %v551, 0.0
  %561 = vadd.xlane.f32.xlu0 %v560
  %v562 = vpop.xlane.xlu0 %561
  %v563 = vsel %vm529, %v553, 0.0
  %564 = vadd.xlane.f32.xlu0 %v563
  %v565 = vpop.xlane.xlu0 %564
  %v566 = vsel %vm529, %v555, 0.0
  %567 = vadd.xlane.f32.xlu0 %v566
  %v568 = vpop.xlane.xlu0 %567
  %v569 = vsel %vm529, %v557, 0.0
  %570 = vadd.xlane.f32.xlu0 %v569
  %v571 = vpop.xlane.xlu0 %570
  %v572 = vsel %vm529, %v559, 0.0
  %573 = vadd.xlane.f32.xlu0 %v572
  %v574 = vpop.xlane.xlu0 %573
  %v575 = vrcp.pop %v562
  %v576 = vrcp.pop %v565
  %v577 = vrcp.pop %v568
  %v578 = vrcp.pop %v571
  %v579 = vrcp.pop %v574
  %v580 = vmul.f32 %v551, %v575
  %v581 = vmul.f32 %v553, %v576
  %v582 = vmul.f32 %v555, %v577
  %v583 = vmul.f32 %v557, %v578
  %v584 = vmul.f32 %v559, %v579
  %585 = vrot.lane.b32.xlu0 %v351, 64
  %v586 = vpop.permute.xlu0 %585
  %587 = vrot.lane.b32.xlu0 %v356, 64
  %v588 = vpop.permute.xlu0 %587
  %589 = vrot.lane.b32.xlu0 %v361, 64
  %v590 = vpop.permute.xlu0 %589
  %591 = vrot.lane.b32.xlu0 %v366, 64
  %v592 = vpop.permute.xlu0 %591
  %593 = vrot.lane.b32.xlu0 %v371, 64
  %v594 = vpop.permute.xlu0 %593
  %v601 = vsel %vm529, %v580, 0
  %v604 = vsel %vm529, %v581, 0
  %v607 = vsel %vm529, %v582, 0
  %v610 = vsel %vm529, %v583, 0
  %v613 = vsel %vm529, %v584, 0
  %615 = vmatprep.subr.mxu0 0.0
  %616 = vmatpush1.msra.mxu0 0.0
  %617 = vmatprep.subr.mxu0 0.0
  %618 = vmatpush1.msra.mxu0 0.0
  %619 = vmatprep.subr.mxu0 0.0
  %620 = vmatpush1.msra.mxu0 0.0
  %621 = vmatprep.subr.mxu0 0.0
  %622 = vmatpush1.msra.mxu0 0.0
  %623 = vmatprep.subr.mxu0 0.0
  %624 = vmatpush1.msra.mxu0 0.0
  %625 = vmatprep.subr.mxu0 0.0
  %626 = vmatpush1.msra.mxu0 0.0
  %627 = vmatprep.subr.mxu0 0.0
  %628 = vmatpush1.msra.mxu0 0.0
  %629 = vmatprep.subr.mxu0 0.0
  %630 = vmatpush1.msra.mxu0 0.0
  %631 = vmatprep.subr.mxu0 0.0
  %632 = vmatpush1.msra.mxu0 0.0
  %633 = vmatprep.subr.mxu0 0.0
  %634 = vmatpush1.msra.mxu0 0.0
  %635 = vmatprep.subr.mxu0 0.0
  %636 = vmatpush1.msra.mxu0 0.0
  %637 = vmatprep.subr.mxu0 0.0
  %638 = vmatpush1.msra.mxu0 %v594
  %639 = vmatprep.subr.mxu0 0.0
  %640 = vmatpush1.msra.mxu0 %v592
  %641 = vmatprep.subr.mxu0 0.0
  %642 = vmatpush1.msra.mxu0 %v590
  %643 = vmatprep.subr.mxu0 0.0
  %644 = vmatpush1.msra.mxu0 %v588
  %645 = vmatprep.subr.mxu0 0.0
  %646 = vmatpush1.msra.mxu0 %v586
  %647 = vmatprep.subr.mxu0 0.0
  %648 = vmatpush2.msra.mxu0 0.0
  %649 = vmatprep.subr.mxu0 0.0
  %650 = vmatpush2.msra.mxu0 0.0
  %651 = vmatprep.subr.mxu0 0.0
  %652 = vmatpush2.msra.mxu0 0.0
  %653 = vmatprep.subr.mxu0 0.0
  %654 = vmatpush2.msra.mxu0 0.0
  %655 = vmatprep.subr.mxu0 0.0
  %656 = vmatpush2.msra.mxu0 0.0
  %657 = vmatprep.subr.mxu0 0.0
  %658 = vmatpush2.msra.mxu0 0.0
  %659 = vmatprep.subr.mxu0 0.0
  %660 = vmatpush2.msra.mxu0 0.0
  %661 = vmatprep.subr.mxu0 0.0
  %662 = vmatpush2.msra.mxu0 0.0
  %663 = vmatprep.subr.mxu0 0.0
  %664 = vmatpush2.msra.mxu0 0.0
  %665 = vmatprep.subr.mxu0 0.0
  %666 = vmatpush2.msra.mxu0 0.0
  %667 = vmatprep.subr.mxu0 0.0
  %668 = vmatpush2.msra.mxu0 0.0
  %669 = vmatprep.subr.mxu0 0.0
  %670 = vmatpush2.msra.mxu0 0.0
  %671 = vmatprep.subr.mxu0 0.0
  %672 = vmatpush2.msra.mxu0 0.0
  %673 = vmatprep.subr.mxu0 0.0
  %674 = vmatpush2.msra.mxu0 0.0
  %675 = vmatprep.subr.mxu0 0.0
  %676 = vmatpush2.msra.mxu0 0.0
  %677 = vmatprep.subr.mxu0 0.0
  %678 = vmatpush2.msra.mxu0 0.0
  %679 = vmatprep.mubr.f32.mxu0 0.0
  %680 = vmatmul.mubr.f32.gmra.mxu0 %v601
  %v681 = vpop.f32.mrf.mxu0
  %v682 = vadd.f32 0.0, %v681
  %v683 = vpop.f32.mrf.mxu0
  %684 = vmatprep.mubr.f32.mxu0 0.0
  %685 = vmatmul.mubr.f32.gmra.mxu0 %v604
  %v686 = vpop.f32.mrf.mxu0
  %v687 = vadd.f32 0.0, %v686
  %v688 = vpop.f32.mrf.mxu0
  %689 = vmatprep.mubr.f32.mxu0 0.0
  %690 = vmatmul.mubr.f32.gmra.mxu0 %v607
  %v691 = vpop.f32.mrf.mxu0
  %v692 = vadd.f32 0.0, %v691
  %v693 = vpop.f32.mrf.mxu0
  %694 = vmatprep.mubr.f32.mxu0 0.0
  %695 = vmatmul.mubr.f32.gmra.mxu0 %v610
  %v696 = vpop.f32.mrf.mxu0
  %v697 = vadd.f32 0.0, %v696
  %v698 = vpop.f32.mrf.mxu0
  %699 = vmatprep.mubr.f32.mxu0 0.0
  %700 = vmatmul.mubr.f32.gmra.mxu0 %v613
  %v701 = vpop.f32.mrf.mxu0
  %v702 = vadd.f32 0.0, %v701
  %v703 = vpop.f32.mrf.mxu0
  %704 = vdwg.mxu0
  %705 = vrot.lane.b32.xlu0 %v351, 120
  %v706 = vpop.permute.xlu0 %705
  %707 = vrot.lane.b32.xlu0 %v356, 120
  %v708 = vpop.permute.xlu0 %707
  %709 = vrot.lane.b32.xlu0 %v361, 120
  %v710 = vpop.permute.xlu0 %709
  %711 = vrot.lane.b32.xlu0 %v366, 120
  %v712 = vpop.permute.xlu0 %711
  %713 = vrot.lane.b32.xlu0 %v371, 120
  %v714 = vpop.permute.xlu0 %713
  %715 = vrot.lane.b32.xlu0 %v351, 88
  %v716 = vpop.permute.xlu0 %715
  %717 = vrot.lane.b32.xlu0 %v356, 88
  %v718 = vpop.permute.xlu0 %717
  %719 = vrot.lane.b32.xlu0 %v361, 88
  %v720 = vpop.permute.xlu0 %719
  %721 = vrot.lane.b32.xlu0 %v366, 88
  %v722 = vpop.permute.xlu0 %721
  %723 = vrot.lane.b32.xlu0 %v371, 88
  %v724 = vpop.permute.xlu0 %723
  %v725 = vsel %vm418, %v706, 0
  %v727 = vsel %vm418, %v708, 0
  %v729 = vsel %vm418, %v710, 0
  %v731 = vsel %vm418, %v712, 0
  %v733 = vsel %vm418, %v714, 0
  %v735 = vsel %vm418, %v716, 0
  %v737 = vsel %vm418, %v718, 0
  %v739 = vsel %vm418, %v720, 0
  %v741 = vsel %vm418, %v722, 0
  %v743 = vsel %vm418, %v724, 0
  %745 = vmatprep.subr.mxu0 0.0
  %746 = vmatpush1.xpose.msra.mxu0 0.0
  %747 = vmatprep.subr.mxu0 0.0
  %748 = vmatpush1.xpose.msra.mxu0 0.0
  %749 = vmatprep.subr.mxu0 0.0
  %750 = vmatpush1.xpose.msra.mxu0 0.0
  %751 = vmatprep.subr.mxu0 0.0
  %752 = vmatpush1.xpose.msra.mxu0 0.0
  %753 = vmatprep.subr.mxu0 0.0
  %754 = vmatpush1.xpose.msra.mxu0 0.0
  %755 = vmatprep.subr.mxu0 0.0
  %756 = vmatpush1.xpose.msra.mxu0 0.0
  %757 = vmatprep.subr.mxu0 0.0
  %758 = vmatpush1.xpose.msra.mxu0 0.0
  %759 = vmatprep.subr.mxu0 0.0
  %760 = vmatpush1.xpose.msra.mxu0 0.0
  %761 = vmatprep.subr.mxu0 0.0
  %762 = vmatpush1.xpose.msra.mxu0 0.0
  %763 = vmatprep.subr.mxu0 0.0
  %764 = vmatpush1.xpose.msra.mxu0 0.0
  %765 = vmatprep.subr.mxu0 0.0
  %766 = vmatpush1.xpose.msra.mxu0 0.0
  %767 = vmatprep.subr.mxu0 0.0
  %768 = vmatpush1.xpose.msra.mxu0 %v743
  %769 = vmatprep.subr.mxu0 0.0
  %770 = vmatpush1.xpose.msra.mxu0 %v741
  %771 = vmatprep.subr.mxu0 0.0
  %772 = vmatpush1.xpose.msra.mxu0 %v739
  %773 = vmatprep.subr.mxu0 0.0
  %774 = vmatpush1.xpose.msra.mxu0 %v737
  %775 = vmatprep.subr.mxu0 0.0
  %776 = vmatpush1.xpose.msra.mxu0 %v735
  %777 = vmatprep.subr.mxu0 0.0
  %778 = vmatpush2.xpose.msra.mxu0 0.0
  %779 = vmatprep.subr.mxu0 0.0
  %780 = vmatpush2.xpose.msra.mxu0 0.0
  %781 = vmatprep.subr.mxu0 0.0
  %782 = vmatpush2.xpose.msra.mxu0 0.0
  %783 = vmatprep.subr.mxu0 0.0
  %784 = vmatpush2.xpose.msra.mxu0 0.0
  %785 = vmatprep.subr.mxu0 0.0
  %786 = vmatpush2.xpose.msra.mxu0 0.0
  %787 = vmatprep.subr.mxu0 0.0
  %788 = vmatpush2.xpose.msra.mxu0 0.0
  %789 = vmatprep.subr.mxu0 0.0
  %790 = vmatpush2.xpose.msra.mxu0 0.0
  %791 = vmatprep.subr.mxu0 0.0
  %792 = vmatpush2.xpose.msra.mxu0 0.0
  %793 = vmatprep.subr.mxu0 0.0
  %794 = vmatpush2.xpose.msra.mxu0 0.0
  %795 = vmatprep.subr.mxu0 0.0
  %796 = vmatpush2.xpose.msra.mxu0 0.0
  %797 = vmatprep.subr.mxu0 0.0
  %798 = vmatpush2.xpose.msra.mxu0 0.0
  %799 = vmatprep.subr.mxu0 0.0
  %800 = vmatpush2.xpose.msra.mxu0 0.0
  %801 = vmatprep.subr.mxu0 0.0
  %802 = vmatpush2.xpose.msra.mxu0 0.0
  %803 = vmatprep.subr.mxu0 0.0
  %804 = vmatpush2.xpose.msra.mxu0 0.0
  %805 = vmatprep.subr.mxu0 0.0
  %806 = vmatpush2.xpose.msra.mxu0 0.0
  %807 = vmatprep.subr.mxu0 0.0
  %808 = vmatpush2.xpose.msra.mxu0 0.0
  %809 = vmatprep.mubr.f32.mxu0 0.0
  %810 = vmatmul.mubr.f32.gmra.mxu0 %v725
  %v811 = vpop.f32.mrf.mxu0
  %v812 = vadd.f32 %v402, %v811
  %v813 = vpop.f32.mrf.mxu0
  %814 = vmatprep.mubr.f32.mxu0 0.0
  %815 = vmatmul.mubr.f32.gmra.mxu0 %v727
  %v816 = vpop.f32.mrf.mxu0
  %v817 = vadd.f32 %v402, %v816
  %v818 = vpop.f32.mrf.mxu0
  %819 = vmatprep.mubr.f32.mxu0 0.0
  %820 = vmatmul.mubr.f32.gmra.mxu0 %v729
  %v821 = vpop.f32.mrf.mxu0
  %v822 = vadd.f32 %v402, %v821
  %v823 = vpop.f32.mrf.mxu0
  %824 = vmatprep.mubr.f32.mxu0 0.0
  %825 = vmatmul.mubr.f32.gmra.mxu0 %v731
  %v826 = vpop.f32.mrf.mxu0
  %v827 = vadd.f32 %v402, %v826
  %v828 = vpop.f32.mrf.mxu0
  %829 = vmatprep.mubr.f32.mxu0 0.0
  %830 = vmatmul.mubr.f32.gmra.mxu0 %v733
  %v831 = vpop.f32.mrf.mxu0
  %v832 = vadd.f32 %v402, %v831
  %v833 = vpop.f32.mrf.mxu0
  %834 = vdwg.mxu0
  %v835 = vsel %vm529, %v812, -inf
  %836 = vmax.xlane.f32.xlu0 %v835
  %v837 = vpop.xlane.xlu0 %836
  %v838 = vsel %vm529, %v817, -inf
  %839 = vmax.xlane.f32.xlu0 %v838
  %v840 = vpop.xlane.xlu0 %839
  %v841 = vsel %vm529, %v822, -inf
  %842 = vmax.xlane.f32.xlu0 %v841
  %v843 = vpop.xlane.xlu0 %842
  %v844 = vsel %vm529, %v827, -inf
  %845 = vmax.xlane.f32.xlu0 %v844
  %v846 = vpop.xlane.xlu0 %845
  %v847 = vsel %vm529, %v832, -inf
  %848 = vmax.xlane.f32.xlu0 %v847
  %v849 = vpop.xlane.xlu0 %848
  %v850 = vsub.f32 %v812, %v837
  %v851 = vsub.f32 %v817, %v840
  %v852 = vsub.f32 %v822, %v843
  %v853 = vsub.f32 %v827, %v846
  %v854 = vsub.f32 %v832, %v849
  %v855 = vmul.f32 %v850, 1.442695
  %v856 = vpow.pop %v855
  %v857 = vmul.f32 %v851, 1.442695
  %v858 = vpow.pop %v857
  %v859 = vmul.f32 %v852, 1.442695
  %v860 = vpow.pop %v859
  %v861 = vmul.f32 %v853, 1.442695
  %v862 = vpow.pop %v861
  %v863 = vmul.f32 %v854, 1.442695
  %v864 = vpow.pop %v863
  %v865 = vsel %vm529, %v856, 0.0
  %866 = vadd.xlane.f32.xlu0 %v865
  %v867 = vpop.xlane.xlu0 %866
  %v868 = vsel %vm529, %v858, 0.0
  %869 = vadd.xlane.f32.xlu0 %v868
  %v870 = vpop.xlane.xlu0 %869
  %v871 = vsel %vm529, %v860, 0.0
  %872 = vadd.xlane.f32.xlu0 %v871
  %v873 = vpop.xlane.xlu0 %872
  %v874 = vsel %vm529, %v862, 0.0
  %875 = vadd.xlane.f32.xlu0 %v874
  %v876 = vpop.xlane.xlu0 %875
  %v877 = vsel %vm529, %v864, 0.0
  %878 = vadd.xlane.f32.xlu0 %v877
  %v879 = vpop.xlane.xlu0 %878
  %v880 = vrcp.pop %v867
  %v881 = vrcp.pop %v870
  %v882 = vrcp.pop %v873
  %v883 = vrcp.pop %v876
  %v884 = vrcp.pop %v879
  %v885 = vmul.f32 %v856, %v880
  %v886 = vmul.f32 %v858, %v881
  %v887 = vmul.f32 %v860, %v882
  %v888 = vmul.f32 %v862, %v883
  %v889 = vmul.f32 %v864, %v884
  %890 = vrot.lane.b32.xlu0 %v351, 56
  %v891 = vpop.permute.xlu0 %890
  %892 = vrot.lane.b32.xlu0 %v356, 56
  %v893 = vpop.permute.xlu0 %892
  %894 = vrot.lane.b32.xlu0 %v361, 56
  %v895 = vpop.permute.xlu0 %894
  %896 = vrot.lane.b32.xlu0 %v366, 56
  %v897 = vpop.permute.xlu0 %896
  %898 = vrot.lane.b32.xlu0 %v371, 56
  %v899 = vpop.permute.xlu0 %898
  %v906 = vsel %vm529, %v885, 0
  %v909 = vsel %vm529, %v886, 0
  %v912 = vsel %vm529, %v887, 0
  %v915 = vsel %vm529, %v888, 0
  %v918 = vsel %vm529, %v889, 0
  %920 = vmatprep.subr.mxu0 0.0
  %921 = vmatpush1.msra.mxu0 0.0
  %922 = vmatprep.subr.mxu0 0.0
  %923 = vmatpush1.msra.mxu0 0.0
  %924 = vmatprep.subr.mxu0 0.0
  %925 = vmatpush1.msra.mxu0 0.0
  %926 = vmatprep.subr.mxu0 0.0
  %927 = vmatpush1.msra.mxu0 0.0
  %928 = vmatprep.subr.mxu0 0.0
  %929 = vmatpush1.msra.mxu0 0.0
  %930 = vmatprep.subr.mxu0 0.0
  %931 = vmatpush1.msra.mxu0 0.0
  %932 = vmatprep.subr.mxu0 0.0
  %933 = vmatpush1.msra.mxu0 0.0
  %934 = vmatprep.subr.mxu0 0.0
  %935 = vmatpush1.msra.mxu0 0.0
  %936 = vmatprep.subr.mxu0 0.0
  %937 = vmatpush1.msra.mxu0 0.0
  %938 = vmatprep.subr.mxu0 0.0
  %939 = vmatpush1.msra.mxu0 0.0
  %940 = vmatprep.subr.mxu0 0.0
  %941 = vmatpush1.msra.mxu0 0.0
  %942 = vmatprep.subr.mxu0 0.0
  %943 = vmatpush1.msra.mxu0 %v899
  %944 = vmatprep.subr.mxu0 0.0
  %945 = vmatpush1.msra.mxu0 %v897
  %946 = vmatprep.subr.mxu0 0.0
  %947 = vmatpush1.msra.mxu0 %v895
  %948 = vmatprep.subr.mxu0 0.0
  %949 = vmatpush1.msra.mxu0 %v893
  %950 = vmatprep.subr.mxu0 0.0
  %951 = vmatpush1.msra.mxu0 %v891
  %952 = vmatprep.subr.mxu0 0.0
  %953 = vmatpush2.msra.mxu0 0.0
  %954 = vmatprep.subr.mxu0 0.0
  %955 = vmatpush2.msra.mxu0 0.0
  %956 = vmatprep.subr.mxu0 0.0
  %957 = vmatpush2.msra.mxu0 0.0
  %958 = vmatprep.subr.mxu0 0.0
  %959 = vmatpush2.msra.mxu0 0.0
  %960 = vmatprep.subr.mxu0 0.0
  %961 = vmatpush2.msra.mxu0 0.0
  %962 = vmatprep.subr.mxu0 0.0
  %963 = vmatpush2.msra.mxu0 0.0
  %964 = vmatprep.subr.mxu0 0.0
  %965 = vmatpush2.msra.mxu0 0.0
  %966 = vmatprep.subr.mxu0 0.0
  %967 = vmatpush2.msra.mxu0 0.0
  %968 = vmatprep.subr.mxu0 0.0
  %969 = vmatpush2.msra.mxu0 0.0
  %970 = vmatprep.subr.mxu0 0.0
  %971 = vmatpush2.msra.mxu0 0.0
  %972 = vmatprep.subr.mxu0 0.0
  %973 = vmatpush2.msra.mxu0 0.0
  %974 = vmatprep.subr.mxu0 0.0
  %975 = vmatpush2.msra.mxu0 0.0
  %976 = vmatprep.subr.mxu0 0.0
  %977 = vmatpush2.msra.mxu0 0.0
  %978 = vmatprep.subr.mxu0 0.0
  %979 = vmatpush2.msra.mxu0 0.0
  %980 = vmatprep.subr.mxu0 0.0
  %981 = vmatpush2.msra.mxu0 0.0
  %982 = vmatprep.subr.mxu0 0.0
  %983 = vmatpush2.msra.mxu0 0.0
  %984 = vmatprep.mubr.f32.mxu0 0.0
  %985 = vmatmul.mubr.f32.gmra.mxu0 %v906
  %v986 = vpop.f32.mrf.mxu0
  %v987 = vadd.f32 0.0, %v986
  %v988 = vpop.f32.mrf.mxu0
  %989 = vmatprep.mubr.f32.mxu0 0.0
  %990 = vmatmul.mubr.f32.gmra.mxu0 %v909
  %v991 = vpop.f32.mrf.mxu0
  %v992 = vadd.f32 0.0, %v991
  %v993 = vpop.f32.mrf.mxu0
  %994 = vmatprep.mubr.f32.mxu0 0.0
  %995 = vmatmul.mubr.f32.gmra.mxu0 %v912
  %v996 = vpop.f32.mrf.mxu0
  %v997 = vadd.f32 0.0, %v996
  %v998 = vpop.f32.mrf.mxu0
  %999 = vmatprep.mubr.f32.mxu0 0.0
  %1000 = vmatmul.mubr.f32.gmra.mxu0 %v915
  %v1001 = vpop.f32.mrf.mxu0
  %v1002 = vadd.f32 0.0, %v1001
  %v1003 = vpop.f32.mrf.mxu0
  %1004 = vmatprep.mubr.f32.mxu0 0.0
  %1005 = vmatmul.mubr.f32.gmra.mxu0 %v918
  %v1006 = vpop.f32.mrf.mxu0
  %v1007 = vadd.f32 0.0, %v1006
  %v1008 = vpop.f32.mrf.mxu0
  %1009 = vdwg.mxu0
  %v1011 = vsel %vm418, %v987, 0
  %v1014 = vsel %vm418, %v992, 0
  %v1017 = vsel %vm418, %v997, 0
  %v1020 = vsel %vm418, %v1002, 0
  %v1023 = vsel %vm418, %v1007, 0
  %1025 = vmatprep.subr.mxu0 0.0
  %1026 = vmatpush1.msra.mxu0 0.0
  %1027 = vmatprep.subr.mxu0 0.0
  %1028 = vmatpush1.msra.mxu0 0.0
  %1029 = vmatprep.subr.mxu0 0.0
  %1030 = vmatpush1.msra.mxu0 0.0
  %1031 = vmatprep.subr.mxu0 0.0
  %1032 = vmatpush1.msra.mxu0 0.0
  %1033 = vmatprep.subr.mxu0 0.0
  %1034 = vmatpush1.msra.mxu0 0.0
  %1035 = vmatprep.subr.mxu0 0.0
  %1036 = vmatpush1.msra.mxu0 0.0
  %1037 = vmatprep.subr.mxu0 0.0
  %1038 = vmatpush1.msra.mxu0 0.0
  %1039 = vmatprep.subr.mxu0 0.0
  %1040 = vmatpush1.msra.mxu0 0.0
  %1041 = vmatprep.subr.mxu0 0.0
  %1042 = vmatpush1.msra.mxu0 0.0
  %1043 = vmatprep.subr.mxu0 0.0
  %1044 = vmatpush1.msra.mxu0 0.0
  %1045 = vmatprep.subr.mxu0 0.0
  %1046 = vmatpush1.msra.mxu0 0.0
  %1047 = vmatprep.subr.mxu0 0.0
  %1048 = vmatpush1.msra.mxu0 0.0
  %1049 = vmatprep.subr.mxu0 0.0
  %1050 = vmatpush1.msra.mxu0 0.0
  %1051 = vmatprep.subr.mxu0 0.0
  %1052 = vmatpush1.msra.mxu0 0.0
  %1053 = vmatprep.subr.mxu0 0.0
  %1054 = vmatpush1.msra.mxu0 0.0
  %1055 = vmatprep.subr.mxu0 0.0
  %1056 = vmatpush1.msra.mxu0 %v50
  %1057 = vmatprep.subr.mxu0 0.0
  %1058 = vmatpush2.msra.mxu0 0.0
  %1059 = vmatprep.subr.mxu0 0.0
  %1060 = vmatpush2.msra.mxu0 0.0
  %1061 = vmatprep.subr.mxu0 0.0
  %1062 = vmatpush2.msra.mxu0 0.0
  %1063 = vmatprep.subr.mxu0 0.0
  %1064 = vmatpush2.msra.mxu0 0.0
  %1065 = vmatprep.subr.mxu0 0.0
  %1066 = vmatpush2.msra.mxu0 0.0
  %1067 = vmatprep.subr.mxu0 0.0
  %1068 = vmatpush2.msra.mxu0 0.0
  %1069 = vmatprep.subr.mxu0 0.0
  %1070 = vmatpush2.msra.mxu0 0.0
  %1071 = vmatprep.subr.mxu0 0.0
  %1072 = vmatpush2.msra.mxu0 0.0
  %1073 = vmatprep.subr.mxu0 0.0
  %1074 = vmatpush2.msra.mxu0 0.0
  %1075 = vmatprep.subr.mxu0 0.0
  %1076 = vmatpush2.msra.mxu0 0.0
  %1077 = vmatprep.subr.mxu0 0.0
  %1078 = vmatpush2.msra.mxu0 0.0
  %1079 = vmatprep.subr.mxu0 0.0
  %1080 = vmatpush2.msra.mxu0 0.0
  %1081 = vmatprep.subr.mxu0 0.0
  %1082 = vmatpush2.msra.mxu0 0.0
  %1083 = vmatprep.subr.mxu0 0.0
  %1084 = vmatpush2.msra.mxu0 0.0
  %1085 = vmatprep.subr.mxu0 0.0
  %1086 = vmatpush2.msra.mxu0 0.0
  %1087 = vmatprep.subr.mxu0 0.0
  %1088 = vmatpush2.msra.mxu0 0.0
  %1089 = vmatprep.mubr.f32.mxu0 0.0
  %1090 = vmatmul.mubr.f32.gmra.mxu0 %v1011
  %v1091 = vpop.f32.mrf.mxu0
  %v1092 = vadd.f32 0.0, %v1091
  %v1093 = vpop.f32.mrf.mxu0
  %1094 = vmatprep.mubr.f32.mxu0 0.0
  %1095 = vmatmul.mubr.f32.gmra.mxu0 %v1014
  %v1096 = vpop.f32.mrf.mxu0
  %v1097 = vadd.f32 0.0, %v1096
  %v1098 = vpop.f32.mrf.mxu0
  %1099 = vmatprep.mubr.f32.mxu0 0.0
  %1100 = vmatmul.mubr.f32.gmra.mxu0 %v1017
  %v1101 = vpop.f32.mrf.mxu0
  %v1102 = vadd.f32 0.0, %v1101
  %v1103 = vpop.f32.mrf.mxu0
  %1104 = vmatprep.mubr.f32.mxu0 0.0
  %1105 = vmatmul.mubr.f32.gmra.mxu0 %v1020
  %v1106 = vpop.f32.mrf.mxu0
  %v1107 = vadd.f32 0.0, %v1106
  %v1108 = vpop.f32.mrf.mxu0
  %1109 = vmatprep.mubr.f32.mxu0 0.0
  %1110 = vmatmul.mubr.f32.gmra.mxu0 %v1023
  %v1111 = vpop.f32.mrf.mxu0
  %v1112 = vadd.f32 0.0, %v1111
  %v1113 = vpop.f32.mrf.mxu0
  %1114 = vdwg.mxu0
  %v1116 = vsel %vm418, %v682, 0
  %v1119 = vsel %vm418, %v687, 0
  %v1122 = vsel %vm418, %v692, 0
  %v1125 = vsel %vm418, %v697, 0
  %v1128 = vsel %vm418, %v702, 0
  %1130 = vmatprep.subr.mxu0 0.0
  %1131 = vmatpush1.msra.mxu0 0.0
  %1132 = vmatprep.subr.mxu0 0.0
  %1133 = vmatpush1.msra.mxu0 0.0
  %1134 = vmatprep.subr.mxu0 0.0
  %1135 = vmatpush1.msra.mxu0 0.0
  %1136 = vmatprep.subr.mxu0 0.0
  %1137 = vmatpush1.msra.mxu0 0.0
  %1138 = vmatprep.subr.mxu0 0.0
  %1139 = vmatpush1.msra.mxu0 0.0
  %1140 = vmatprep.subr.mxu0 0.0
  %1141 = vmatpush1.msra.mxu0 0.0
  %1142 = vmatprep.subr.mxu0 0.0
  %1143 = vmatpush1.msra.mxu0 0.0
  %1144 = vmatprep.subr.mxu0 0.0
  %1145 = vmatpush1.msra.mxu0 0.0
  %1146 = vmatprep.subr.mxu0 0.0
  %1147 = vmatpush1.msra.mxu0 0.0
  %1148 = vmatprep.subr.mxu0 0.0
  %1149 = vmatpush1.msra.mxu0 0.0
  %1150 = vmatprep.subr.mxu0 0.0
  %1151 = vmatpush1.msra.mxu0 0.0
  %1152 = vmatprep.subr.mxu0 0.0
  %1153 = vmatpush1.msra.mxu0 0.0
  %1154 = vmatprep.subr.mxu0 0.0
  %1155 = vmatpush1.msra.mxu0 0.0
  %1156 = vmatprep.subr.mxu0 0.0
  %1157 = vmatpush1.msra.mxu0 0.0
  %1158 = vmatprep.subr.mxu0 0.0
  %1159 = vmatpush1.msra.mxu0 0.0
  %1160 = vmatprep.subr.mxu0 0.0
  %1161 = vmatpush1.msra.mxu0 %v49
  %1162 = vmatprep.subr.mxu0 0.0
  %1163 = vmatpush2.msra.mxu0 0.0
  %1164 = vmatprep.subr.mxu0 0.0
  %1165 = vmatpush2.msra.mxu0 0.0
  %1166 = vmatprep.subr.mxu0 0.0
  %1167 = vmatpush2.msra.mxu0 0.0
  %1168 = vmatprep.subr.mxu0 0.0
  %1169 = vmatpush2.msra.mxu0 0.0
  %1170 = vmatprep.subr.mxu0 0.0
  %1171 = vmatpush2.msra.mxu0 0.0
  %1172 = vmatprep.subr.mxu0 0.0
  %1173 = vmatpush2.msra.mxu0 0.0
  %1174 = vmatprep.subr.mxu0 0.0
  %1175 = vmatpush2.msra.mxu0 0.0
  %1176 = vmatprep.subr.mxu0 0.0
  %1177 = vmatpush2.msra.mxu0 0.0
  %1178 = vmatprep.subr.mxu0 0.0
  %1179 = vmatpush2.msra.mxu0 0.0
  %1180 = vmatprep.subr.mxu0 0.0
  %1181 = vmatpush2.msra.mxu0 0.0
  %1182 = vmatprep.subr.mxu0 0.0
  %1183 = vmatpush2.msra.mxu0 0.0
  %1184 = vmatprep.subr.mxu0 0.0
  %1185 = vmatpush2.msra.mxu0 0.0
  %1186 = vmatprep.subr.mxu0 0.0
  %1187 = vmatpush2.msra.mxu0 0.0
  %1188 = vmatprep.subr.mxu0 0.0
  %1189 = vmatpush2.msra.mxu0 0.0
  %1190 = vmatprep.subr.mxu0 0.0
  %1191 = vmatpush2.msra.mxu0 0.0
  %1192 = vmatprep.subr.mxu0 0.0
  %1193 = vmatpush2.msra.mxu0 0.0
  %1194 = vmatprep.mubr.f32.mxu0 0.0
  %1195 = vmatmul.mubr.f32.gmra.mxu0 %v1116
  %v1196 = vpop.f32.mrf.mxu0
  %v1197 = vadd.f32 %v1092, %v1196
  %v1198 = vpop.f32.mrf.mxu0
  %1199 = vmatprep.mubr.f32.mxu0 0.0
  %1200 = vmatmul.mubr.f32.gmra.mxu0 %v1119
  %v1201 = vpop.f32.mrf.mxu0
  %v1202 = vadd.f32 %v1097, %v1201
  %v1203 = vpop.f32.mrf.mxu0
  %1204 = vmatprep.mubr.f32.mxu0 0.0
  %1205 = vmatmul.mubr.f32.gmra.mxu0 %v1122
  %v1206 = vpop.f32.mrf.mxu0
  %v1207 = vadd.f32 %v1102, %v1206
  %v1208 = vpop.f32.mrf.mxu0
  %1209 = vmatprep.mubr.f32.mxu0 0.0
  %1210 = vmatmul.mubr.f32.gmra.mxu0 %v1125
  %v1211 = vpop.f32.mrf.mxu0
  %v1212 = vadd.f32 %v1107, %v1211
  %v1213 = vpop.f32.mrf.mxu0
  %1214 = vmatprep.mubr.f32.mxu0 0.0
  %1215 = vmatmul.mubr.f32.gmra.mxu0 %v1128
  %v1216 = vpop.f32.mrf.mxu0
  %v1217 = vadd.f32 %v1112, %v1216
  %v1218 = vpop.f32.mrf.mxu0
  %1219 = vdwg.mxu0
  %1220 = vrot.lane.b32.xlu0 %v351, 112
  %v1221 = vpop.permute.xlu0 %1220
  %1222 = vrot.lane.b32.xlu0 %v356, 112
  %v1223 = vpop.permute.xlu0 %1222
  %1224 = vrot.lane.b32.xlu0 %v361, 112
  %v1225 = vpop.permute.xlu0 %1224
  %1226 = vrot.lane.b32.xlu0 %v366, 112
  %v1227 = vpop.permute.xlu0 %1226
  %1228 = vrot.lane.b32.xlu0 %v371, 112
  %v1229 = vpop.permute.xlu0 %1228
  %1230 = vrot.lane.b32.xlu0 %v351, 80
  %v1231 = vpop.permute.xlu0 %1230
  %1232 = vrot.lane.b32.xlu0 %v356, 80
  %v1233 = vpop.permute.xlu0 %1232
  %1234 = vrot.lane.b32.xlu0 %v361, 80
  %v1235 = vpop.permute.xlu0 %1234
  %1236 = vrot.lane.b32.xlu0 %v366, 80
  %v1237 = vpop.permute.xlu0 %1236
  %1238 = vrot.lane.b32.xlu0 %v371, 80
  %v1239 = vpop.permute.xlu0 %1238
  %v1240 = vsel %vm418, %v1221, 0
  %v1242 = vsel %vm418, %v1223, 0
  %v1244 = vsel %vm418, %v1225, 0
  %v1246 = vsel %vm418, %v1227, 0
  %v1248 = vsel %vm418, %v1229, 0
  %v1250 = vsel %vm418, %v1231, 0
  %v1252 = vsel %vm418, %v1233, 0
  %v1254 = vsel %vm418, %v1235, 0
  %v1256 = vsel %vm418, %v1237, 0
  %v1258 = vsel %vm418, %v1239, 0
  %1260 = vmatprep.subr.mxu0 0.0
  %1261 = vmatpush1.xpose.msra.mxu0 0.0
  %1262 = vmatprep.subr.mxu0 0.0
  %1263 = vmatpush1.xpose.msra.mxu0 0.0
  %1264 = vmatprep.subr.mxu0 0.0
  %1265 = vmatpush1.xpose.msra.mxu0 0.0
  %1266 = vmatprep.subr.mxu0 0.0
  %1267 = vmatpush1.xpose.msra.mxu0 0.0
  %1268 = vmatprep.subr.mxu0 0.0
  %1269 = vmatpush1.xpose.msra.mxu0 0.0
  %1270 = vmatprep.subr.mxu0 0.0
  %1271 = vmatpush1.xpose.msra.mxu0 0.0
  %1272 = vmatprep.subr.mxu0 0.0
  %1273 = vmatpush1.xpose.msra.mxu0 0.0
  %1274 = vmatprep.subr.mxu0 0.0
  %1275 = vmatpush1.xpose.msra.mxu0 0.0
  %1276 = vmatprep.subr.mxu0 0.0
  %1277 = vmatpush1.xpose.msra.mxu0 0.0
  %1278 = vmatprep.subr.mxu0 0.0
  %1279 = vmatpush1.xpose.msra.mxu0 0.0
  %1280 = vmatprep.subr.mxu0 0.0
  %1281 = vmatpush1.xpose.msra.mxu0 0.0
  %1282 = vmatprep.subr.mxu0 0.0
  %1283 = vmatpush1.xpose.msra.mxu0 %v1258
  %1284 = vmatprep.subr.mxu0 0.0
  %1285 = vmatpush1.xpose.msra.mxu0 %v1256
  %1286 = vmatprep.subr.mxu0 0.0
  %1287 = vmatpush1.xpose.msra.mxu0 %v1254
  %1288 = vmatprep.subr.mxu0 0.0
  %1289 = vmatpush1.xpose.msra.mxu0 %v1252
  %1290 = vmatprep.subr.mxu0 0.0
  %1291 = vmatpush1.xpose.msra.mxu0 %v1250
  %1292 = vmatprep.subr.mxu0 0.0
  %1293 = vmatpush2.xpose.msra.mxu0 0.0
  %1294 = vmatprep.subr.mxu0 0.0
  %1295 = vmatpush2.xpose.msra.mxu0 0.0
  %1296 = vmatprep.subr.mxu0 0.0
  %1297 = vmatpush2.xpose.msra.mxu0 0.0
  %1298 = vmatprep.subr.mxu0 0.0
  %1299 = vmatpush2.xpose.msra.mxu0 0.0
  %1300 = vmatprep.subr.mxu0 0.0
  %1301 = vmatpush2.xpose.msra.mxu0 0.0
  %1302 = vmatprep.subr.mxu0 0.0
  %1303 = vmatpush2.xpose.msra.mxu0 0.0
  %1304 = vmatprep.subr.mxu0 0.0
  %1305 = vmatpush2.xpose.msra.mxu0 0.0
  %1306 = vmatprep.subr.mxu0 0.0
  %1307 = vmatpush2.xpose.msra.mxu0 0.0
  %1308 = vmatprep.subr.mxu0 0.0
  %1309 = vmatpush2.xpose.msra.mxu0 0.0
  %1310 = vmatprep.subr.mxu0 0.0
  %1311 = vmatpush2.xpose.msra.mxu0 0.0
  %1312 = vmatprep.subr.mxu0 0.0
  %1313 = vmatpush2.xpose.msra.mxu0 0.0
  %1314 = vmatprep.subr.mxu0 0.0
  %1315 = vmatpush2.xpose.msra.mxu0 0.0
  %1316 = vmatprep.subr.mxu0 0.0
  %1317 = vmatpush2.xpose.msra.mxu0 0.0
  %1318 = vmatprep.subr.mxu0 0.0
  %1319 = vmatpush2.xpose.msra.mxu0 0.0
  %1320 = vmatprep.subr.mxu0 0.0
  %1321 = vmatpush2.xpose.msra.mxu0 0.0
  %1322 = vmatprep.subr.mxu0 0.0
  %1323 = vmatpush2.xpose.msra.mxu0 0.0
  %1324 = vmatprep.mubr.f32.mxu0 0.0
  %1325 = vmatmul.mubr.f32.gmra.mxu0 %v1240
  %v1326 = vpop.f32.mrf.mxu0
  %v1327 = vadd.f32 %v402, %v1326
  %v1328 = vpop.f32.mrf.mxu0
  %1329 = vmatprep.mubr.f32.mxu0 0.0
  %1330 = vmatmul.mubr.f32.gmra.mxu0 %v1242
  %v1331 = vpop.f32.mrf.mxu0
  %v1332 = vadd.f32 %v402, %v1331
  %v1333 = vpop.f32.mrf.mxu0
  %1334 = vmatprep.mubr.f32.mxu0 0.0
  %1335 = vmatmul.mubr.f32.gmra.mxu0 %v1244
  %v1336 = vpop.f32.mrf.mxu0
  %v1337 = vadd.f32 %v402, %v1336
  %v1338 = vpop.f32.mrf.mxu0
  %1339 = vmatprep.mubr.f32.mxu0 0.0
  %1340 = vmatmul.mubr.f32.gmra.mxu0 %v1246
  %v1341 = vpop.f32.mrf.mxu0
  %v1342 = vadd.f32 %v402, %v1341
  %v1343 = vpop.f32.mrf.mxu0
  %1344 = vmatprep.mubr.f32.mxu0 0.0
  %1345 = vmatmul.mubr.f32.gmra.mxu0 %v1248
  %v1346 = vpop.f32.mrf.mxu0
  %v1347 = vadd.f32 %v402, %v1346
  %v1348 = vpop.f32.mrf.mxu0
  %1349 = vdwg.mxu0
  %v1350 = vsel %vm529, %v1327, -inf
  %1351 = vmax.xlane.f32.xlu0 %v1350
  %v1352 = vpop.xlane.xlu0 %1351
  %v1353 = vsel %vm529, %v1332, -inf
  %1354 = vmax.xlane.f32.xlu0 %v1353
  %v1355 = vpop.xlane.xlu0 %1354
  %v1356 = vsel %vm529, %v1337, -inf
  %1357 = vmax.xlane.f32.xlu0 %v1356
  %v1358 = vpop.xlane.xlu0 %1357
  %v1359 = vsel %vm529, %v1342, -inf
  %1360 = vmax.xlane.f32.xlu0 %v1359
  %v1361 = vpop.xlane.xlu0 %1360
  %v1362 = vsel %vm529, %v1347, -inf
  %1363 = vmax.xlane.f32.xlu0 %v1362
  %v1364 = vpop.xlane.xlu0 %1363
  %v1365 = vsub.f32 %v1327, %v1352
  %v1366 = vsub.f32 %v1332, %v1355
  %v1367 = vsub.f32 %v1337, %v1358
  %v1368 = vsub.f32 %v1342, %v1361
  %v1369 = vsub.f32 %v1347, %v1364
  %v1370 = vmul.f32 %v1365, 1.442695
  %v1371 = vpow.pop %v1370
  %v1372 = vmul.f32 %v1366, 1.442695
  %v1373 = vpow.pop %v1372
  %v1374 = vmul.f32 %v1367, 1.442695
  %v1375 = vpow.pop %v1374
  %v1376 = vmul.f32 %v1368, 1.442695
  %v1377 = vpow.pop %v1376
  %v1378 = vmul.f32 %v1369, 1.442695
  %v1379 = vpow.pop %v1378
  %v1380 = vsel %vm529, %v1371, 0.0
  %1381 = vadd.xlane.f32.xlu0 %v1380
  %v1382 = vpop.xlane.xlu0 %1381
  %v1383 = vsel %vm529, %v1373, 0.0
  %1384 = vadd.xlane.f32.xlu0 %v1383
  %v1385 = vpop.xlane.xlu0 %1384
  %v1386 = vsel %vm529, %v1375, 0.0
  %1387 = vadd.xlane.f32.xlu0 %v1386
  %v1388 = vpop.xlane.xlu0 %1387
  %v1389 = vsel %vm529, %v1377, 0.0
  %1390 = vadd.xlane.f32.xlu0 %v1389
  %v1391 = vpop.xlane.xlu0 %1390
  %v1392 = vsel %vm529, %v1379, 0.0
  %1393 = vadd.xlane.f32.xlu0 %v1392
  %v1394 = vpop.xlane.xlu0 %1393
  %v1395 = vrcp.pop %v1382
  %v1396 = vrcp.pop %v1385
  %v1397 = vrcp.pop %v1388
  %v1398 = vrcp.pop %v1391
  %v1399 = vrcp.pop %v1394
  %v1400 = vmul.f32 %v1371, %v1395
  %v1401 = vmul.f32 %v1373, %v1396
  %v1402 = vmul.f32 %v1375, %v1397
  %v1403 = vmul.f32 %v1377, %v1398
  %v1404 = vmul.f32 %v1379, %v1399
  %1405 = vrot.lane.b32.xlu0 %v351, 48
  %v1406 = vpop.permute.xlu0 %1405
  %1407 = vrot.lane.b32.xlu0 %v356, 48
  %v1408 = vpop.permute.xlu0 %1407
  %1409 = vrot.lane.b32.xlu0 %v361, 48
  %v1410 = vpop.permute.xlu0 %1409
  %1411 = vrot.lane.b32.xlu0 %v366, 48
  %v1412 = vpop.permute.xlu0 %1411
  %1413 = vrot.lane.b32.xlu0 %v371, 48
  %v1414 = vpop.permute.xlu0 %1413
  %v1421 = vsel %vm529, %v1400, 0
  %v1424 = vsel %vm529, %v1401, 0
  %v1427 = vsel %vm529, %v1402, 0
  %v1430 = vsel %vm529, %v1403, 0
  %v1433 = vsel %vm529, %v1404, 0
  %1435 = vmatprep.subr.mxu0 0.0
  %1436 = vmatpush1.msra.mxu0 0.0
  %1437 = vmatprep.subr.mxu0 0.0
  %1438 = vmatpush1.msra.mxu0 0.0
  %1439 = vmatprep.subr.mxu0 0.0
  %1440 = vmatpush1.msra.mxu0 0.0
  %1441 = vmatprep.subr.mxu0 0.0
  %1442 = vmatpush1.msra.mxu0 0.0
  %1443 = vmatprep.subr.mxu0 0.0
  %1444 = vmatpush1.msra.mxu0 0.0
  %1445 = vmatprep.subr.mxu0 0.0
  %1446 = vmatpush1.msra.mxu0 0.0
  %1447 = vmatprep.subr.mxu0 0.0
  %1448 = vmatpush1.msra.mxu0 0.0
  %1449 = vmatprep.subr.mxu0 0.0
  %1450 = vmatpush1.msra.mxu0 0.0
  %1451 = vmatprep.subr.mxu0 0.0
  %1452 = vmatpush1.msra.mxu0 0.0
  %1453 = vmatprep.subr.mxu0 0.0
  %1454 = vmatpush1.msra.mxu0 0.0
  %1455 = vmatprep.subr.mxu0 0.0
  %1456 = vmatpush1.msra.mxu0 0.0
  %1457 = vmatprep.subr.mxu0 0.0
  %1458 = vmatpush1.msra.mxu0 %v1414
  %1459 = vmatprep.subr.mxu0 0.0
  %1460 = vmatpush1.msra.mxu0 %v1412
  %1461 = vmatprep.subr.mxu0 0.0
  %1462 = vmatpush1.msra.mxu0 %v1410
  %1463 = vmatprep.subr.mxu0 0.0
  %1464 = vmatpush1.msra.mxu0 %v1408
  %1465 = vmatprep.subr.mxu0 0.0
  %1466 = vmatpush1.msra.mxu0 %v1406
  %1467 = vmatprep.subr.mxu0 0.0
  %1468 = vmatpush2.msra.mxu0 0.0
  %1469 = vmatprep.subr.mxu0 0.0
  %1470 = vmatpush2.msra.mxu0 0.0
  %1471 = vmatprep.subr.mxu0 0.0
  %1472 = vmatpush2.msra.mxu0 0.0
  %1473 = vmatprep.subr.mxu0 0.0
  %1474 = vmatpush2.msra.mxu0 0.0
  %1475 = vmatprep.subr.mxu0 0.0
  %1476 = vmatpush2.msra.mxu0 0.0
  %1477 = vmatprep.subr.mxu0 0.0
  %1478 = vmatpush2.msra.mxu0 0.0
  %1479 = vmatprep.subr.mxu0 0.0
  %1480 = vmatpush2.msra.mxu0 0.0
  %1481 = vmatprep.subr.mxu0 0.0
  %1482 = vmatpush2.msra.mxu0 0.0
  %1483 = vmatprep.subr.mxu0 0.0
  %1484 = vmatpush2.msra.mxu0 0.0
  %1485 = vmatprep.subr.mxu0 0.0
  %1486 = vmatpush2.msra.mxu0 0.0
  %1487 = vmatprep.subr.mxu0 0.0
  %1488 = vmatpush2.msra.mxu0 0.0
  %1489 = vmatprep.subr.mxu0 0.0
  %1490 = vmatpush2.msra.mxu0 0.0
  %1491 = vmatprep.subr.mxu0 0.0
  %1492 = vmatpush2.msra.mxu0 0.0
  %1493 = vmatprep.subr.mxu0 0.0
  %1494 = vmatpush2.msra.mxu0 0.0
  %1495 = vmatprep.subr.mxu0 0.0
  %1496 = vmatpush2.msra.mxu0 0.0
  %1497 = vmatprep.subr.mxu0 0.0
  %1498 = vmatpush2.msra.mxu0 0.0
  %1499 = vmatprep.mubr.f32.mxu0 0.0
  %1500 = vmatmul.mubr.f32.gmra.mxu0 %v1421
  %v1501 = vpop.f32.mrf.mxu0
  %v1502 = vadd.f32 0.0, %v1501
  %v1503 = vpop.f32.mrf.mxu0
  %1504 = vmatprep.mubr.f32.mxu0 0.0
  %1505 = vmatmul.mubr.f32.gmra.mxu0 %v1424
  %v1506 = vpop.f32.mrf.mxu0
  %v1507 = vadd.f32 0.0, %v1506
  %v1508 = vpop.f32.mrf.mxu0
  %1509 = vmatprep.mubr.f32.mxu0 0.0
  %1510 = vmatmul.mubr.f32.gmra.mxu0 %v1427
  %v1511 = vpop.f32.mrf.mxu0
  %v1512 = vadd.f32 0.0, %v1511
  %v1513 = vpop.f32.mrf.mxu0
  %1514 = vmatprep.mubr.f32.mxu0 0.0
  %1515 = vmatmul.mubr.f32.gmra.mxu0 %v1430
  %v1516 = vpop.f32.mrf.mxu0
  %v1517 = vadd.f32 0.0, %v1516
  %v1518 = vpop.f32.mrf.mxu0
  %1519 = vmatprep.mubr.f32.mxu0 0.0
  %1520 = vmatmul.mubr.f32.gmra.mxu0 %v1433
  %v1521 = vpop.f32.mrf.mxu0
  %v1522 = vadd.f32 0.0, %v1521
  %v1523 = vpop.f32.mrf.mxu0
  %1524 = vdwg.mxu0
  %v1526 = vsel %vm418, %v1502, 0
  %v1529 = vsel %vm418, %v1507, 0
  %v1532 = vsel %vm418, %v1512, 0
  %v1535 = vsel %vm418, %v1517, 0
  %v1538 = vsel %vm418, %v1522, 0
  %1540 = vmatprep.subr.mxu0 0.0
  %1541 = vmatpush1.msra.mxu0 0.0
  %1542 = vmatprep.subr.mxu0 0.0
  %1543 = vmatpush1.msra.mxu0 0.0
  %1544 = vmatprep.subr.mxu0 0.0
  %1545 = vmatpush1.msra.mxu0 0.0
  %1546 = vmatprep.subr.mxu0 0.0
  %1547 = vmatpush1.msra.mxu0 0.0
  %1548 = vmatprep.subr.mxu0 0.0
  %1549 = vmatpush1.msra.mxu0 0.0
  %1550 = vmatprep.subr.mxu0 0.0
  %1551 = vmatpush1.msra.mxu0 0.0
  %1552 = vmatprep.subr.mxu0 0.0
  %1553 = vmatpush1.msra.mxu0 0.0
  %1554 = vmatprep.subr.mxu0 0.0
  %1555 = vmatpush1.msra.mxu0 0.0
  %1556 = vmatprep.subr.mxu0 0.0
  %1557 = vmatpush1.msra.mxu0 0.0
  %1558 = vmatprep.subr.mxu0 0.0
  %1559 = vmatpush1.msra.mxu0 0.0
  %1560 = vmatprep.subr.mxu0 0.0
  %1561 = vmatpush1.msra.mxu0 0.0
  %1562 = vmatprep.subr.mxu0 0.0
  %1563 = vmatpush1.msra.mxu0 0.0
  %1564 = vmatprep.subr.mxu0 0.0
  %1565 = vmatpush1.msra.mxu0 0.0
  %1566 = vmatprep.subr.mxu0 0.0
  %1567 = vmatpush1.msra.mxu0 0.0
  %1568 = vmatprep.subr.mxu0 0.0
  %1569 = vmatpush1.msra.mxu0 0.0
  %1570 = vmatprep.subr.mxu0 0.0
  %1571 = vmatpush1.msra.mxu0 %v51
  %1572 = vmatprep.subr.mxu0 0.0
  %1573 = vmatpush2.msra.mxu0 0.0
  %1574 = vmatprep.subr.mxu0 0.0
  %1575 = vmatpush2.msra.mxu0 0.0
  %1576 = vmatprep.subr.mxu0 0.0
  %1577 = vmatpush2.msra.mxu0 0.0
  %1578 = vmatprep.subr.mxu0 0.0
  %1579 = vmatpush2.msra.mxu0 0.0
  %1580 = vmatprep.subr.mxu0 0.0
  %1581 = vmatpush2.msra.mxu0 0.0
  %1582 = vmatprep.subr.mxu0 0.0
  %1583 = vmatpush2.msra.mxu0 0.0
  %1584 = vmatprep.subr.mxu0 0.0
  %1585 = vmatpush2.msra.mxu0 0.0
  %1586 = vmatprep.subr.mxu0 0.0
  %1587 = vmatpush2.msra.mxu0 0.0
  %1588 = vmatprep.subr.mxu0 0.0
  %1589 = vmatpush2.msra.mxu0 0.0
  %1590 = vmatprep.subr.mxu0 0.0
  %1591 = vmatpush2.msra.mxu0 0.0
  %1592 = vmatprep.subr.mxu0 0.0
  %1593 = vmatpush2.msra.mxu0 0.0
  %1594 = vmatprep.subr.mxu0 0.0
  %1595 = vmatpush2.msra.mxu0 0.0
  %1596 = vmatprep.subr.mxu0 0.0
  %1597 = vmatpush2.msra.mxu0 0.0
  %1598 = vmatprep.subr.mxu0 0.0
  %1599 = vmatpush2.msra.mxu0 0.0
  %1600 = vmatprep.subr.mxu0 0.0
  %1601 = vmatpush2.msra.mxu0 0.0
  %1602 = vmatprep.subr.mxu0 0.0
  %1603 = vmatpush2.msra.mxu0 0.0
  %1604 = vmatprep.mubr.f32.mxu0 0.0
  %1605 = vmatmul.mubr.f32.gmra.mxu0 %v1526
  %v1606 = vpop.f32.mrf.mxu0
  %v1607 = vadd.f32 0.0, %v1606
  %v1608 = vpop.f32.mrf.mxu0
  %1609 = vmatprep.mubr.f32.mxu0 0.0
  %1610 = vmatmul.mubr.f32.gmra.mxu0 %v1529
  %v1611 = vpop.f32.mrf.mxu0
  %v1612 = vadd.f32 0.0, %v1611
  %v1613 = vpop.f32.mrf.mxu0
  %1614 = vmatprep.mubr.f32.mxu0 0.0
  %1615 = vmatmul.mubr.f32.gmra.mxu0 %v1532
  %v1616 = vpop.f32.mrf.mxu0
  %v1617 = vadd.f32 0.0, %v1616
  %v1618 = vpop.f32.mrf.mxu0
  %1619 = vmatprep.mubr.f32.mxu0 0.0
  %1620 = vmatmul.mubr.f32.gmra.mxu0 %v1535
  %v1621 = vpop.f32.mrf.mxu0
  %v1622 = vadd.f32 0.0, %v1621
  %v1623 = vpop.f32.mrf.mxu0
  %1624 = vmatprep.mubr.f32.mxu0 0.0
  %1625 = vmatmul.mubr.f32.gmra.mxu0 %v1538
  %v1626 = vpop.f32.mrf.mxu0
  %v1627 = vadd.f32 0.0, %v1626
  %v1628 = vpop.f32.mrf.mxu0
  %1629 = vdwg.mxu0
  %v1630 = vadd.f32 %v1197, %v1607
  %v1631 = vadd.f32 %v1202, %v1612
  %v1632 = vadd.f32 %v1207, %v1617
  %v1633 = vadd.f32 %v1212, %v1622
  %v1634 = vadd.f32 %v1217, %v1627
  %1635 = vrot.lane.b32.xlu0 %v351, 104
  %v1636 = vpop.permute.xlu0 %1635
  %1637 = vrot.lane.b32.xlu0 %v356, 104
  %v1638 = vpop.permute.xlu0 %1637
  %1639 = vrot.lane.b32.xlu0 %v361, 104
  %v1640 = vpop.permute.xlu0 %1639
  %1641 = vrot.lane.b32.xlu0 %v366, 104
  %v1642 = vpop.permute.xlu0 %1641
  %1643 = vrot.lane.b32.xlu0 %v371, 104
  %v1644 = vpop.permute.xlu0 %1643
  %1645 = vrot.lane.b32.xlu0 %v351, 72
  %v1646 = vpop.permute.xlu0 %1645
  %1647 = vrot.lane.b32.xlu0 %v356, 72
  %v1648 = vpop.permute.xlu0 %1647
  %1649 = vrot.lane.b32.xlu0 %v361, 72
  %v1650 = vpop.permute.xlu0 %1649
  %1651 = vrot.lane.b32.xlu0 %v366, 72
  %v1652 = vpop.permute.xlu0 %1651
  %1653 = vrot.lane.b32.xlu0 %v371, 72
  %v1654 = vpop.permute.xlu0 %1653
  %v1655 = vsel %vm418, %v1636, 0
  %v1657 = vsel %vm418, %v1638, 0
  %v1659 = vsel %vm418, %v1640, 0
  %v1661 = vsel %vm418, %v1642, 0
  %v1663 = vsel %vm418, %v1644, 0
  %v1665 = vsel %vm418, %v1646, 0
  %v1667 = vsel %vm418, %v1648, 0
  %v1669 = vsel %vm418, %v1650, 0
  %v1671 = vsel %vm418, %v1652, 0
  %v1673 = vsel %vm418, %v1654, 0
  %1675 = vmatprep.subr.mxu0 0.0
  %1676 = vmatpush1.xpose.msra.mxu0 0.0
  %1677 = vmatprep.subr.mxu0 0.0
  %1678 = vmatpush1.xpose.msra.mxu0 0.0
  %1679 = vmatprep.subr.mxu0 0.0
  %1680 = vmatpush1.xpose.msra.mxu0 0.0
  %1681 = vmatprep.subr.mxu0 0.0
  %1682 = vmatpush1.xpose.msra.mxu0 0.0
  %1683 = vmatprep.subr.mxu0 0.0
  %1684 = vmatpush1.xpose.msra.mxu0 0.0
  %1685 = vmatprep.subr.mxu0 0.0
  %1686 = vmatpush1.xpose.msra.mxu0 0.0
  %1687 = vmatprep.subr.mxu0 0.0
  %1688 = vmatpush1.xpose.msra.mxu0 0.0
  %1689 = vmatprep.subr.mxu0 0.0
  %1690 = vmatpush1.xpose.msra.mxu0 0.0
  %1691 = vmatprep.subr.mxu0 0.0
  %1692 = vmatpush1.xpose.msra.mxu0 0.0
  %1693 = vmatprep.subr.mxu0 0.0
  %1694 = vmatpush1.xpose.msra.mxu0 0.0
  %1695 = vmatprep.subr.mxu0 0.0
  %1696 = vmatpush1.xpose.msra.mxu0 0.0
  %1697 = vmatprep.subr.mxu0 0.0
  %1698 = vmatpush1.xpose.msra.mxu0 %v1673
  %1699 = vmatprep.subr.mxu0 0.0
  %1700 = vmatpush1.xpose.msra.mxu0 %v1671
  %1701 = vmatprep.subr.mxu0 0.0
  %1702 = vmatpush1.xpose.msra.mxu0 %v1669
  %1703 = vmatprep.subr.mxu0 0.0
  %1704 = vmatpush1.xpose.msra.mxu0 %v1667
  %1705 = vmatprep.subr.mxu0 0.0
  %1706 = vmatpush1.xpose.msra.mxu0 %v1665
  %1707 = vmatprep.subr.mxu0 0.0
  %1708 = vmatpush2.xpose.msra.mxu0 0.0
  %1709 = vmatprep.subr.mxu0 0.0
  %1710 = vmatpush2.xpose.msra.mxu0 0.0
  %1711 = vmatprep.subr.mxu0 0.0
  %1712 = vmatpush2.xpose.msra.mxu0 0.0
  %1713 = vmatprep.subr.mxu0 0.0
  %1714 = vmatpush2.xpose.msra.mxu0 0.0
  %1715 = vmatprep.subr.mxu0 0.0
  %1716 = vmatpush2.xpose.msra.mxu0 0.0
  %1717 = vmatprep.subr.mxu0 0.0
  %1718 = vmatpush2.xpose.msra.mxu0 0.0
  %1719 = vmatprep.subr.mxu0 0.0
  %1720 = vmatpush2.xpose.msra.mxu0 0.0
  %1721 = vmatprep.subr.mxu0 0.0
  %1722 = vmatpush2.xpose.msra.mxu0 0.0
  %1723 = vmatprep.subr.mxu0 0.0
  %1724 = vmatpush2.xpose.msra.mxu0 0.0
  %1725 = vmatprep.subr.mxu0 0.0
  %1726 = vmatpush2.xpose.msra.mxu0 0.0
  %1727 = vmatprep.subr.mxu0 0.0
  %1728 = vmatpush2.xpose.msra.mxu0 0.0
  %1729 = vmatprep.subr.mxu0 0.0
  %1730 = vmatpush2.xpose.msra.mxu0 0.0
  %1731 = vmatprep.subr.mxu0 0.0
  %1732 = vmatpush2.xpose.msra.mxu0 0.0
  %1733 = vmatprep.subr.mxu0 0.0
  %1734 = vmatpush2.xpose.msra.mxu0 0.0
  %1735 = vmatprep.subr.mxu0 0.0
  %1736 = vmatpush2.xpose.msra.mxu0 0.0
  %1737 = vmatprep.subr.mxu0 0.0
  %1738 = vmatpush2.xpose.msra.mxu0 0.0
  %1739 = vmatprep.mubr.f32.mxu0 0.0
  %1740 = vmatmul.mubr.f32.gmra.mxu0 %v1655
  %v1741 = vpop.f32.mrf.mxu0
  %v1742 = vadd.f32 %v402, %v1741
  %v1743 = vpop.f32.mrf.mxu0
  %1744 = vmatprep.mubr.f32.mxu0 0.0
  %1745 = vmatmul.mubr.f32.gmra.mxu0 %v1657
  %v1746 = vpop.f32.mrf.mxu0
  %v1747 = vadd.f32 %v402, %v1746
  %v1748 = vpop.f32.mrf.mxu0
  %1749 = vmatprep.mubr.f32.mxu0 0.0
  %1750 = vmatmul.mubr.f32.gmra.mxu0 %v1659
  %v1751 = vpop.f32.mrf.mxu0
  %v1752 = vadd.f32 %v402, %v1751
  %v1753 = vpop.f32.mrf.mxu0
  %1754 = vmatprep.mubr.f32.mxu0 0.0
  %1755 = vmatmul.mubr.f32.gmra.mxu0 %v1661
  %v1756 = vpop.f32.mrf.mxu0
  %v1757 = vadd.f32 %v402, %v1756
  %v1758 = vpop.f32.mrf.mxu0
  %1759 = vmatprep.mubr.f32.mxu0 0.0
  %1760 = vmatmul.mubr.f32.gmra.mxu0 %v1663
  %v1761 = vpop.f32.mrf.mxu0
  %v1762 = vadd.f32 %v402, %v1761
  %v1763 = vpop.f32.mrf.mxu0
  %1764 = vdwg.mxu0
  %v1765 = vsel %vm529, %v1742, -inf
  %1766 = vmax.xlane.f32.xlu0 %v1765
  %v1767 = vpop.xlane.xlu0 %1766
  %v1768 = vsel %vm529, %v1747, -inf
  %1769 = vmax.xlane.f32.xlu0 %v1768
  %v1770 = vpop.xlane.xlu0 %1769
  %v1771 = vsel %vm529, %v1752, -inf
  %1772 = vmax.xlane.f32.xlu0 %v1771
  %v1773 = vpop.xlane.xlu0 %1772
  %v1774 = vsel %vm529, %v1757, -inf
  %1775 = vmax.xlane.f32.xlu0 %v1774
  %v1776 = vpop.xlane.xlu0 %1775
  %v1777 = vsel %vm529, %v1762, -inf
  %1778 = vmax.xlane.f32.xlu0 %v1777
  %v1779 = vpop.xlane.xlu0 %1778
  %v1780 = vsub.f32 %v1742, %v1767
  %v1781 = vsub.f32 %v1747, %v1770
  %v1782 = vsub.f32 %v1752, %v1773
  %v1783 = vsub.f32 %v1757, %v1776
  %v1784 = vsub.f32 %v1762, %v1779
  %v1785 = vmul.f32 %v1780, 1.442695
  %v1786 = vpow.pop %v1785
  %v1787 = vmul.f32 %v1781, 1.442695
  %v1788 = vpow.pop %v1787
  %v1789 = vmul.f32 %v1782, 1.442695
  %v1790 = vpow.pop %v1789
  %v1791 = vmul.f32 %v1783, 1.442695
  %v1792 = vpow.pop %v1791
  %v1793 = vmul.f32 %v1784, 1.442695
  %v1794 = vpow.pop %v1793
  %v1795 = vsel %vm529, %v1786, 0.0
  %1796 = vadd.xlane.f32.xlu0 %v1795
  %v1797 = vpop.xlane.xlu0 %1796
  %v1798 = vsel %vm529, %v1788, 0.0
  %1799 = vadd.xlane.f32.xlu0 %v1798
  %v1800 = vpop.xlane.xlu0 %1799
  %v1801 = vsel %vm529, %v1790, 0.0
  %1802 = vadd.xlane.f32.xlu0 %v1801
  %v1803 = vpop.xlane.xlu0 %1802
  %v1804 = vsel %vm529, %v1792, 0.0
  %1805 = vadd.xlane.f32.xlu0 %v1804
  %v1806 = vpop.xlane.xlu0 %1805
  %v1807 = vsel %vm529, %v1794, 0.0
  %1808 = vadd.xlane.f32.xlu0 %v1807
  %v1809 = vpop.xlane.xlu0 %1808
  %v1810 = vrcp.pop %v1797
  %v1811 = vrcp.pop %v1800
  %v1812 = vrcp.pop %v1803
  %v1813 = vrcp.pop %v1806
  %v1814 = vrcp.pop %v1809
  %v1815 = vmul.f32 %v1786, %v1810
  %v1816 = vmul.f32 %v1788, %v1811
  %v1817 = vmul.f32 %v1790, %v1812
  %v1818 = vmul.f32 %v1792, %v1813
  %v1819 = vmul.f32 %v1794, %v1814
  %1820 = vrot.lane.b32.xlu0 %v351, 40
  %v1821 = vpop.permute.xlu0 %1820
  %1822 = vrot.lane.b32.xlu0 %v356, 40
  %v1823 = vpop.permute.xlu0 %1822
  %1824 = vrot.lane.b32.xlu0 %v361, 40
  %v1825 = vpop.permute.xlu0 %1824
  %1826 = vrot.lane.b32.xlu0 %v366, 40
  %v1827 = vpop.permute.xlu0 %1826
  %1828 = vrot.lane.b32.xlu0 %v371, 40
  %v1829 = vpop.permute.xlu0 %1828
  %v1836 = vsel %vm529, %v1815, 0
  %v1839 = vsel %vm529, %v1816, 0
  %v1842 = vsel %vm529, %v1817, 0
  %v1845 = vsel %vm529, %v1818, 0
  %v1848 = vsel %vm529, %v1819, 0
  %1850 = vmatprep.subr.mxu0 0.0
  %1851 = vmatpush1.msra.mxu0 0.0
  %1852 = vmatprep.subr.mxu0 0.0
  %1853 = vmatpush1.msra.mxu0 0.0
  %1854 = vmatprep.subr.mxu0 0.0
  %1855 = vmatpush1.msra.mxu0 0.0
  %1856 = vmatprep.subr.mxu0 0.0
  %1857 = vmatpush1.msra.mxu0 0.0
  %1858 = vmatprep.subr.mxu0 0.0
  %1859 = vmatpush1.msra.mxu0 0.0
  %1860 = vmatprep.subr.mxu0 0.0
  %1861 = vmatpush1.msra.mxu0 0.0
  %1862 = vmatprep.subr.mxu0 0.0
  %1863 = vmatpush1.msra.mxu0 0.0
  %1864 = vmatprep.subr.mxu0 0.0
  %1865 = vmatpush1.msra.mxu0 0.0
  %1866 = vmatprep.subr.mxu0 0.0
  %1867 = vmatpush1.msra.mxu0 0.0
  %1868 = vmatprep.subr.mxu0 0.0
  %1869 = vmatpush1.msra.mxu0 0.0
  %1870 = vmatprep.subr.mxu0 0.0
  %1871 = vmatpush1.msra.mxu0 0.0
  %1872 = vmatprep.subr.mxu0 0.0
  %1873 = vmatpush1.msra.mxu0 %v1829
  %1874 = vmatprep.subr.mxu0 0.0
  %1875 = vmatpush1.msra.mxu0 %v1827
  %1876 = vmatprep.subr.mxu0 0.0
  %1877 = vmatpush1.msra.mxu0 %v1825
  %1878 = vmatprep.subr.mxu0 0.0
  %1879 = vmatpush1.msra.mxu0 %v1823
  %1880 = vmatprep.subr.mxu0 0.0
  %1881 = vmatpush1.msra.mxu0 %v1821
  %1882 = vmatprep.subr.mxu0 0.0
  %1883 = vmatpush2.msra.mxu0 0.0
  %1884 = vmatprep.subr.mxu0 0.0
  %1885 = vmatpush2.msra.mxu0 0.0
  %1886 = vmatprep.subr.mxu0 0.0
  %1887 = vmatpush2.msra.mxu0 0.0
  %1888 = vmatprep.subr.mxu0 0.0
  %1889 = vmatpush2.msra.mxu0 0.0
  %1890 = vmatprep.subr.mxu0 0.0
  %1891 = vmatpush2.msra.mxu0 0.0
  %1892 = vmatprep.subr.mxu0 0.0
  %1893 = vmatpush2.msra.mxu0 0.0
  %1894 = vmatprep.subr.mxu0 0.0
  %1895 = vmatpush2.msra.mxu0 0.0
  %1896 = vmatprep.subr.mxu0 0.0
  %1897 = vmatpush2.msra.mxu0 0.0
  %1898 = vmatprep.subr.mxu0 0.0
  %1899 = vmatpush2.msra.mxu0 0.0
  %1900 = vmatprep.subr.mxu0 0.0
  %1901 = vmatpush2.msra.mxu0 0.0
  %1902 = vmatprep.subr.mxu0 0.0
  %1903 = vmatpush2.msra.mxu0 0.0
  %1904 = vmatprep.subr.mxu0 0.0
  %1905 = vmatpush2.msra.mxu0 0.0
  %1906 = vmatprep.subr.mxu0 0.0
  %1907 = vmatpush2.msra.mxu0 0.0
  %1908 = vmatprep.subr.mxu0 0.0
  %1909 = vmatpush2.msra.mxu0 0.0
  %1910 = vmatprep.subr.mxu0 0.0
  %1911 = vmatpush2.msra.mxu0 0.0
  %1912 = vmatprep.subr.mxu0 0.0
  %1913 = vmatpush2.msra.mxu0 0.0
  %1914 = vmatprep.mubr.f32.mxu0 0.0
  %1915 = vmatmul.mubr.f32.gmra.mxu0 %v1836
  %v1916 = vpop.f32.mrf.mxu0
  %v1917 = vadd.f32 0.0, %v1916
  %v1918 = vpop.f32.mrf.mxu0
  %1919 = vmatprep.mubr.f32.mxu0 0.0
  %1920 = vmatmul.mubr.f32.gmra.mxu0 %v1839
  %v1921 = vpop.f32.mrf.mxu0
  %v1922 = vadd.f32 0.0, %v1921
  %v1923 = vpop.f32.mrf.mxu0
  %1924 = vmatprep.mubr.f32.mxu0 0.0
  %1925 = vmatmul.mubr.f32.gmra.mxu0 %v1842
  %v1926 = vpop.f32.mrf.mxu0
  %v1927 = vadd.f32 0.0, %v1926
  %v1928 = vpop.f32.mrf.mxu0
  %1929 = vmatprep.mubr.f32.mxu0 0.0
  %1930 = vmatmul.mubr.f32.gmra.mxu0 %v1845
  %v1931 = vpop.f32.mrf.mxu0
  %v1932 = vadd.f32 0.0, %v1931
  %v1933 = vpop.f32.mrf.mxu0
  %1934 = vmatprep.mubr.f32.mxu0 0.0
  %1935 = vmatmul.mubr.f32.gmra.mxu0 %v1848
  %v1936 = vpop.f32.mrf.mxu0
  %v1937 = vadd.f32 0.0, %v1936
  %v1938 = vpop.f32.mrf.mxu0
  %1939 = vdwg.mxu0
  %v1941 = vsel %vm418, %v1917, 0
  %v1944 = vsel %vm418, %v1922, 0
  %v1947 = vsel %vm418, %v1927, 0
  %v1950 = vsel %vm418, %v1932, 0
  %v1953 = vsel %vm418, %v1937, 0
  %1955 = vmatprep.subr.mxu0 0.0
  %1956 = vmatpush1.msra.mxu0 0.0
  %1957 = vmatprep.subr.mxu0 0.0
  %1958 = vmatpush1.msra.mxu0 0.0
  %1959 = vmatprep.subr.mxu0 0.0
  %1960 = vmatpush1.msra.mxu0 0.0
  %1961 = vmatprep.subr.mxu0 0.0
  %1962 = vmatpush1.msra.mxu0 0.0
  %1963 = vmatprep.subr.mxu0 0.0
  %1964 = vmatpush1.msra.mxu0 0.0
  %1965 = vmatprep.subr.mxu0 0.0
  %1966 = vmatpush1.msra.mxu0 0.0
  %1967 = vmatprep.subr.mxu0 0.0
  %1968 = vmatpush1.msra.mxu0 0.0
  %1969 = vmatprep.subr.mxu0 0.0
  %1970 = vmatpush1.msra.mxu0 0.0
  %1971 = vmatprep.subr.mxu0 0.0
  %1972 = vmatpush1.msra.mxu0 0.0
  %1973 = vmatprep.subr.mxu0 0.0
  %1974 = vmatpush1.msra.mxu0 0.0
  %1975 = vmatprep.subr.mxu0 0.0
  %1976 = vmatpush1.msra.mxu0 0.0
  %1977 = vmatprep.subr.mxu0 0.0
  %1978 = vmatpush1.msra.mxu0 0.0
  %1979 = vmatprep.subr.mxu0 0.0
  %1980 = vmatpush1.msra.mxu0 0.0
  %1981 = vmatprep.subr.mxu0 0.0
  %1982 = vmatpush1.msra.mxu0 0.0
  %1983 = vmatprep.subr.mxu0 0.0
  %1984 = vmatpush1.msra.mxu0 0.0
  %1985 = vmatprep.subr.mxu0 0.0
  %1986 = vmatpush1.msra.mxu0 %v52
  %1987 = vmatprep.subr.mxu0 0.0
  %1988 = vmatpush2.msra.mxu0 0.0
  %1989 = vmatprep.subr.mxu0 0.0
  %1990 = vmatpush2.msra.mxu0 0.0
  %1991 = vmatprep.subr.mxu0 0.0
  %1992 = vmatpush2.msra.mxu0 0.0
  %1993 = vmatprep.subr.mxu0 0.0
  %1994 = vmatpush2.msra.mxu0 0.0
  %1995 = vmatprep.subr.mxu0 0.0
  %1996 = vmatpush2.msra.mxu0 0.0
  %1997 = vmatprep.subr.mxu0 0.0
  %1998 = vmatpush2.msra.mxu0 0.0
  %1999 = vmatprep.subr.mxu0 0.0
  %2000 = vmatpush2.msra.mxu0 0.0
  %2001 = vmatprep.subr.mxu0 0.0
  %2002 = vmatpush2.msra.mxu0 0.0
  %2003 = vmatprep.subr.mxu0 0.0
  %2004 = vmatpush2.msra.mxu0 0.0
  %2005 = vmatprep.subr.mxu0 0.0
  %2006 = vmatpush2.msra.mxu0 0.0
  %2007 = vmatprep.subr.mxu0 0.0
  %2008 = vmatpush2.msra.mxu0 0.0
  %2009 = vmatprep.subr.mxu0 0.0
  %2010 = vmatpush2.msra.mxu0 0.0
  %2011 = vmatprep.subr.mxu0 0.0
  %2012 = vmatpush2.msra.mxu0 0.0
  %2013 = vmatprep.subr.mxu0 0.0
  %2014 = vmatpush2.msra.mxu0 0.0
  %2015 = vmatprep.subr.mxu0 0.0
  %2016 = vmatpush2.msra.mxu0 0.0
  %2017 = vmatprep.subr.mxu0 0.0
  %2018 = vmatpush2.msra.mxu0 0.0
  %2019 = vmatprep.mubr.f32.mxu0 0.0
  %2020 = vmatmul.mubr.f32.gmra.mxu0 %v1941
  %v2021 = vpop.f32.mrf.mxu0
  %v2022 = vadd.f32 0.0, %v2021
  %v2023 = vpop.f32.mrf.mxu0
  %2024 = vmatprep.mubr.f32.mxu0 0.0
  %2025 = vmatmul.mubr.f32.gmra.mxu0 %v1944
  %v2026 = vpop.f32.mrf.mxu0
  %v2027 = vadd.f32 0.0, %v2026
  %v2028 = vpop.f32.mrf.mxu0
  %2029 = vmatprep.mubr.f32.mxu0 0.0
  %2030 = vmatmul.mubr.f32.gmra.mxu0 %v1947
  %v2031 = vpop.f32.mrf.mxu0
  %v2032 = vadd.f32 0.0, %v2031
  %v2033 = vpop.f32.mrf.mxu0
  %2034 = vmatprep.mubr.f32.mxu0 0.0
  %2035 = vmatmul.mubr.f32.gmra.mxu0 %v1950
  %v2036 = vpop.f32.mrf.mxu0
  %v2037 = vadd.f32 0.0, %v2036
  %v2038 = vpop.f32.mrf.mxu0
  %2039 = vmatprep.mubr.f32.mxu0 0.0
  %2040 = vmatmul.mubr.f32.gmra.mxu0 %v1953
  %v2041 = vpop.f32.mrf.mxu0
  %v2042 = vadd.f32 0.0, %v2041
  %v2043 = vpop.f32.mrf.mxu0
  %2044 = vdwg.mxu0
  %v2045 = vadd.f32 %v1630, %v2022
  %v2046 = vadd.f32 %v1631, %v2027
  %v2047 = vadd.f32 %v1632, %v2032
  %v2048 = vadd.f32 %v1633, %v2037
  %v2049 = vadd.f32 %v1634, %v2042
  %2055 = vrot.lane.b32.xlu0 %v376, 96
  %v2056 = vpop.permute.xlu0 %2055
  %2057 = vrot.lane.b32.xlu0 %v381, 96
  %v2058 = vpop.permute.xlu0 %2057
  %2059 = vrot.lane.b32.xlu0 %v386, 96
  %v2060 = vpop.permute.xlu0 %2059
  %2061 = vrot.lane.b32.xlu0 %v391, 96
  %v2062 = vpop.permute.xlu0 %2061
  %2063 = vrot.lane.b32.xlu0 %v396, 96
  %v2064 = vpop.permute.xlu0 %2063
  %v2065 = vsel %vm418, %v376, 0
  %v2067 = vsel %vm418, %v381, 0
  %v2069 = vsel %vm418, %v386, 0
  %v2071 = vsel %vm418, %v391, 0
  %v2073 = vsel %vm418, %v396, 0
  %v2075 = vsel %vm418, %v2056, 0
  %v2077 = vsel %vm418, %v2058, 0
  %v2079 = vsel %vm418, %v2060, 0
  %v2081 = vsel %vm418, %v2062, 0
  %v2083 = vsel %vm418, %v2064, 0
  %2085 = vmatprep.subr.mxu0 0.0
  %2086 = vmatpush1.xpose.msra.mxu0 0.0
  %2087 = vmatprep.subr.mxu0 0.0
  %2088 = vmatpush1.xpose.msra.mxu0 0.0
  %2089 = vmatprep.subr.mxu0 0.0
  %2090 = vmatpush1.xpose.msra.mxu0 0.0
  %2091 = vmatprep.subr.mxu0 0.0
  %2092 = vmatpush1.xpose.msra.mxu0 0.0
  %2093 = vmatprep.subr.mxu0 0.0
  %2094 = vmatpush1.xpose.msra.mxu0 0.0
  %2095 = vmatprep.subr.mxu0 0.0
  %2096 = vmatpush1.xpose.msra.mxu0 0.0
  %2097 = vmatprep.subr.mxu0 0.0
  %2098 = vmatpush1.xpose.msra.mxu0 0.0
  %2099 = vmatprep.subr.mxu0 0.0
  %2100 = vmatpush1.xpose.msra.mxu0 0.0
  %2101 = vmatprep.subr.mxu0 0.0
  %2102 = vmatpush1.xpose.msra.mxu0 0.0
  %2103 = vmatprep.subr.mxu0 0.0
  %2104 = vmatpush1.xpose.msra.mxu0 0.0
  %2105 = vmatprep.subr.mxu0 0.0
  %2106 = vmatpush1.xpose.msra.mxu0 0.0
  %2107 = vmatprep.subr.mxu0 0.0
  %2108 = vmatpush1.xpose.msra.mxu0 %v2083
  %2109 = vmatprep.subr.mxu0 0.0
  %2110 = vmatpush1.xpose.msra.mxu0 %v2081
  %2111 = vmatprep.subr.mxu0 0.0
  %2112 = vmatpush1.xpose.msra.mxu0 %v2079
  %2113 = vmatprep.subr.mxu0 0.0
  %2114 = vmatpush1.xpose.msra.mxu0 %v2077
  %2115 = vmatprep.subr.mxu0 0.0
  %2116 = vmatpush1.xpose.msra.mxu0 %v2075
  %2117 = vmatprep.subr.mxu0 0.0
  %2118 = vmatpush2.xpose.msra.mxu0 0.0
  %2119 = vmatprep.subr.mxu0 0.0
  %2120 = vmatpush2.xpose.msra.mxu0 0.0
  %2121 = vmatprep.subr.mxu0 0.0
  %2122 = vmatpush2.xpose.msra.mxu0 0.0
  %2123 = vmatprep.subr.mxu0 0.0
  %2124 = vmatpush2.xpose.msra.mxu0 0.0
  %2125 = vmatprep.subr.mxu0 0.0
  %2126 = vmatpush2.xpose.msra.mxu0 0.0
  %2127 = vmatprep.subr.mxu0 0.0
  %2128 = vmatpush2.xpose.msra.mxu0 0.0
  %2129 = vmatprep.subr.mxu0 0.0
  %2130 = vmatpush2.xpose.msra.mxu0 0.0
  %2131 = vmatprep.subr.mxu0 0.0
  %2132 = vmatpush2.xpose.msra.mxu0 0.0
  %2133 = vmatprep.subr.mxu0 0.0
  %2134 = vmatpush2.xpose.msra.mxu0 0.0
  %2135 = vmatprep.subr.mxu0 0.0
  %2136 = vmatpush2.xpose.msra.mxu0 0.0
  %2137 = vmatprep.subr.mxu0 0.0
  %2138 = vmatpush2.xpose.msra.mxu0 0.0
  %2139 = vmatprep.subr.mxu0 0.0
  %2140 = vmatpush2.xpose.msra.mxu0 0.0
  %2141 = vmatprep.subr.mxu0 0.0
  %2142 = vmatpush2.xpose.msra.mxu0 0.0
  %2143 = vmatprep.subr.mxu0 0.0
  %2144 = vmatpush2.xpose.msra.mxu0 0.0
  %2145 = vmatprep.subr.mxu0 0.0
  %2146 = vmatpush2.xpose.msra.mxu0 0.0
  %2147 = vmatprep.subr.mxu0 0.0
  %2148 = vmatpush2.xpose.msra.mxu0 0.0
  %2149 = vmatprep.mubr.f32.mxu0 0.0
  %2150 = vmatmul.mubr.f32.gmra.mxu0 %v2065
  %v2151 = vpop.f32.mrf.mxu0
  %v2152 = vadd.f32 %v402, %v2151
  %v2153 = vpop.f32.mrf.mxu0
  %2154 = vmatprep.mubr.f32.mxu0 0.0
  %2155 = vmatmul.mubr.f32.gmra.mxu0 %v2067
  %v2156 = vpop.f32.mrf.mxu0
  %v2157 = vadd.f32 %v402, %v2156
  %v2158 = vpop.f32.mrf.mxu0
  %2159 = vmatprep.mubr.f32.mxu0 0.0
  %2160 = vmatmul.mubr.f32.gmra.mxu0 %v2069
  %v2161 = vpop.f32.mrf.mxu0
  %v2162 = vadd.f32 %v402, %v2161
  %v2163 = vpop.f32.mrf.mxu0
  %2164 = vmatprep.mubr.f32.mxu0 0.0
  %2165 = vmatmul.mubr.f32.gmra.mxu0 %v2071
  %v2166 = vpop.f32.mrf.mxu0
  %v2167 = vadd.f32 %v402, %v2166
  %v2168 = vpop.f32.mrf.mxu0
  %2169 = vmatprep.mubr.f32.mxu0 0.0
  %2170 = vmatmul.mubr.f32.gmra.mxu0 %v2073
  %v2171 = vpop.f32.mrf.mxu0
  %v2172 = vadd.f32 %v402, %v2171
  %v2173 = vpop.f32.mrf.mxu0
  %2174 = vdwg.mxu0
  %v2175 = vsel %vm529, %v2152, -inf
  %2176 = vmax.xlane.f32.xlu0 %v2175
  %v2177 = vpop.xlane.xlu0 %2176
  %v2178 = vsel %vm529, %v2157, -inf
  %2179 = vmax.xlane.f32.xlu0 %v2178
  %v2180 = vpop.xlane.xlu0 %2179
  %v2181 = vsel %vm529, %v2162, -inf
  %2182 = vmax.xlane.f32.xlu0 %v2181
  %v2183 = vpop.xlane.xlu0 %2182
  %v2184 = vsel %vm529, %v2167, -inf
  %2185 = vmax.xlane.f32.xlu0 %v2184
  %v2186 = vpop.xlane.xlu0 %2185
  %v2187 = vsel %vm529, %v2172, -inf
  %2188 = vmax.xlane.f32.xlu0 %v2187
  %v2189 = vpop.xlane.xlu0 %2188
  %v2190 = vsub.f32 %v2152, %v2177
  %v2191 = vsub.f32 %v2157, %v2180
  %v2192 = vsub.f32 %v2162, %v2183
  %v2193 = vsub.f32 %v2167, %v2186
  %v2194 = vsub.f32 %v2172, %v2189
  %v2195 = vmul.f32 %v2190, 1.442695
  %v2196 = vpow.pop %v2195
  %v2197 = vmul.f32 %v2191, 1.442695
  %v2198 = vpow.pop %v2197
  %v2199 = vmul.f32 %v2192, 1.442695
  %v2200 = vpow.pop %v2199
  %v2201 = vmul.f32 %v2193, 1.442695
  %v2202 = vpow.pop %v2201
  %v2203 = vmul.f32 %v2194, 1.442695
  %v2204 = vpow.pop %v2203
  %v2205 = vsel %vm529, %v2196, 0.0
  %2206 = vadd.xlane.f32.xlu0 %v2205
  %v2207 = vpop.xlane.xlu0 %2206
  %v2208 = vsel %vm529, %v2198, 0.0
  %2209 = vadd.xlane.f32.xlu0 %v2208
  %v2210 = vpop.xlane.xlu0 %2209
  %v2211 = vsel %vm529, %v2200, 0.0
  %2212 = vadd.xlane.f32.xlu0 %v2211
  %v2213 = vpop.xlane.xlu0 %2212
  %v2214 = vsel %vm529, %v2202, 0.0
  %2215 = vadd.xlane.f32.xlu0 %v2214
  %v2216 = vpop.xlane.xlu0 %2215
  %v2217 = vsel %vm529, %v2204, 0.0
  %2218 = vadd.xlane.f32.xlu0 %v2217
  %v2219 = vpop.xlane.xlu0 %2218
  %v2220 = vrcp.pop %v2207
  %v2221 = vrcp.pop %v2210
  %v2222 = vrcp.pop %v2213
  %v2223 = vrcp.pop %v2216
  %v2224 = vrcp.pop %v2219
  %v2225 = vmul.f32 %v2196, %v2220
  %v2226 = vmul.f32 %v2198, %v2221
  %v2227 = vmul.f32 %v2200, %v2222
  %v2228 = vmul.f32 %v2202, %v2223
  %v2229 = vmul.f32 %v2204, %v2224
  %2230 = vrot.lane.b32.xlu0 %v376, 64
  %v2231 = vpop.permute.xlu0 %2230
  %2232 = vrot.lane.b32.xlu0 %v381, 64
  %v2233 = vpop.permute.xlu0 %2232
  %2234 = vrot.lane.b32.xlu0 %v386, 64
  %v2235 = vpop.permute.xlu0 %2234
  %2236 = vrot.lane.b32.xlu0 %v391, 64
  %v2237 = vpop.permute.xlu0 %2236
  %2238 = vrot.lane.b32.xlu0 %v396, 64
  %v2239 = vpop.permute.xlu0 %2238
  %v2246 = vsel %vm529, %v2225, 0
  %v2249 = vsel %vm529, %v2226, 0
  %v2252 = vsel %vm529, %v2227, 0
  %v2255 = vsel %vm529, %v2228, 0
  %v2258 = vsel %vm529, %v2229, 0
  %2260 = vmatprep.subr.mxu0 0.0
  %2261 = vmatpush1.msra.mxu0 0.0
  %2262 = vmatprep.subr.mxu0 0.0
  %2263 = vmatpush1.msra.mxu0 0.0
  %2264 = vmatprep.subr.mxu0 0.0
  %2265 = vmatpush1.msra.mxu0 0.0
  %2266 = vmatprep.subr.mxu0 0.0
  %2267 = vmatpush1.msra.mxu0 0.0
  %2268 = vmatprep.subr.mxu0 0.0
  %2269 = vmatpush1.msra.mxu0 0.0
  %2270 = vmatprep.subr.mxu0 0.0
  %2271 = vmatpush1.msra.mxu0 0.0
  %2272 = vmatprep.subr.mxu0 0.0
  %2273 = vmatpush1.msra.mxu0 0.0
  %2274 = vmatprep.subr.mxu0 0.0
  %2275 = vmatpush1.msra.mxu0 0.0
  %2276 = vmatprep.subr.mxu0 0.0
  %2277 = vmatpush1.msra.mxu0 0.0
  %2278 = vmatprep.subr.mxu0 0.0
  %2279 = vmatpush1.msra.mxu0 0.0
  %2280 = vmatprep.subr.mxu0 0.0
  %2281 = vmatpush1.msra.mxu0 0.0
  %2282 = vmatprep.subr.mxu0 0.0
  %2283 = vmatpush1.msra.mxu0 %v2239
  %2284 = vmatprep.subr.mxu0 0.0
  %2285 = vmatpush1.msra.mxu0 %v2237
  %2286 = vmatprep.subr.mxu0 0.0
  %2287 = vmatpush1.msra.mxu0 %v2235
  %2288 = vmatprep.subr.mxu0 0.0
  %2289 = vmatpush1.msra.mxu0 %v2233
  %2290 = vmatprep.subr.mxu0 0.0
  %2291 = vmatpush1.msra.mxu0 %v2231
  %2292 = vmatprep.subr.mxu0 0.0
  %2293 = vmatpush2.msra.mxu0 0.0
  %2294 = vmatprep.subr.mxu0 0.0
  %2295 = vmatpush2.msra.mxu0 0.0
  %2296 = vmatprep.subr.mxu0 0.0
  %2297 = vmatpush2.msra.mxu0 0.0
  %2298 = vmatprep.subr.mxu0 0.0
  %2299 = vmatpush2.msra.mxu0 0.0
  %2300 = vmatprep.subr.mxu0 0.0
  %2301 = vmatpush2.msra.mxu0 0.0
  %2302 = vmatprep.subr.mxu0 0.0
  %2303 = vmatpush2.msra.mxu0 0.0
  %2304 = vmatprep.subr.mxu0 0.0
  %2305 = vmatpush2.msra.mxu0 0.0
  %2306 = vmatprep.subr.mxu0 0.0
  %2307 = vmatpush2.msra.mxu0 0.0
  %2308 = vmatprep.subr.mxu0 0.0
  %2309 = vmatpush2.msra.mxu0 0.0
  %2310 = vmatprep.subr.mxu0 0.0
  %2311 = vmatpush2.msra.mxu0 0.0
  %2312 = vmatprep.subr.mxu0 0.0
  %2313 = vmatpush2.msra.mxu0 0.0
  %2314 = vmatprep.subr.mxu0 0.0
  %2315 = vmatpush2.msra.mxu0 0.0
  %2316 = vmatprep.subr.mxu0 0.0
  %2317 = vmatpush2.msra.mxu0 0.0
  %2318 = vmatprep.subr.mxu0 0.0
  %2319 = vmatpush2.msra.mxu0 0.0
  %2320 = vmatprep.subr.mxu0 0.0
  %2321 = vmatpush2.msra.mxu0 0.0
  %2322 = vmatprep.subr.mxu0 0.0
  %2323 = vmatpush2.msra.mxu0 0.0
  %2324 = vmatprep.mubr.f32.mxu0 0.0
  %2325 = vmatmul.mubr.f32.gmra.mxu0 %v2246
  %v2326 = vpop.f32.mrf.mxu0
  %v2327 = vadd.f32 0.0, %v2326
  %v2328 = vpop.f32.mrf.mxu0
  %2329 = vmatprep.mubr.f32.mxu0 0.0
  %2330 = vmatmul.mubr.f32.gmra.mxu0 %v2249
  %v2331 = vpop.f32.mrf.mxu0
  %v2332 = vadd.f32 0.0, %v2331
  %v2333 = vpop.f32.mrf.mxu0
  %2334 = vmatprep.mubr.f32.mxu0 0.0
  %2335 = vmatmul.mubr.f32.gmra.mxu0 %v2252
  %v2336 = vpop.f32.mrf.mxu0
  %v2337 = vadd.f32 0.0, %v2336
  %v2338 = vpop.f32.mrf.mxu0
  %2339 = vmatprep.mubr.f32.mxu0 0.0
  %2340 = vmatmul.mubr.f32.gmra.mxu0 %v2255
  %v2341 = vpop.f32.mrf.mxu0
  %v2342 = vadd.f32 0.0, %v2341
  %v2343 = vpop.f32.mrf.mxu0
  %2344 = vmatprep.mubr.f32.mxu0 0.0
  %2345 = vmatmul.mubr.f32.gmra.mxu0 %v2258
  %v2346 = vpop.f32.mrf.mxu0
  %v2347 = vadd.f32 0.0, %v2346
  %v2348 = vpop.f32.mrf.mxu0
  %2349 = vdwg.mxu0
  %2350 = vrot.lane.b32.xlu0 %v376, 120
  %v2351 = vpop.permute.xlu0 %2350
  %2352 = vrot.lane.b32.xlu0 %v381, 120
  %v2353 = vpop.permute.xlu0 %2352
  %2354 = vrot.lane.b32.xlu0 %v386, 120
  %v2355 = vpop.permute.xlu0 %2354
  %2356 = vrot.lane.b32.xlu0 %v391, 120
  %v2357 = vpop.permute.xlu0 %2356
  %2358 = vrot.lane.b32.xlu0 %v396, 120
  %v2359 = vpop.permute.xlu0 %2358
  %2360 = vrot.lane.b32.xlu0 %v376, 88
  %v2361 = vpop.permute.xlu0 %2360
  %2362 = vrot.lane.b32.xlu0 %v381, 88
  %v2363 = vpop.permute.xlu0 %2362
  %2364 = vrot.lane.b32.xlu0 %v386, 88
  %v2365 = vpop.permute.xlu0 %2364
  %2366 = vrot.lane.b32.xlu0 %v391, 88
  %v2367 = vpop.permute.xlu0 %2366
  %2368 = vrot.lane.b32.xlu0 %v396, 88
  %v2369 = vpop.permute.xlu0 %2368
  %v2370 = vsel %vm418, %v2351, 0
  %v2372 = vsel %vm418, %v2353, 0
  %v2374 = vsel %vm418, %v2355, 0
  %v2376 = vsel %vm418, %v2357, 0
  %v2378 = vsel %vm418, %v2359, 0
  %v2380 = vsel %vm418, %v2361, 0
  %v2382 = vsel %vm418, %v2363, 0
  %v2384 = vsel %vm418, %v2365, 0
  %v2386 = vsel %vm418, %v2367, 0
  %v2388 = vsel %vm418, %v2369, 0
  %2390 = vmatprep.subr.mxu0 0.0
  %2391 = vmatpush1.xpose.msra.mxu0 0.0
  %2392 = vmatprep.subr.mxu0 0.0
  %2393 = vmatpush1.xpose.msra.mxu0 0.0
  %2394 = vmatprep.subr.mxu0 0.0
  %2395 = vmatpush1.xpose.msra.mxu0 0.0
  %2396 = vmatprep.subr.mxu0 0.0
  %2397 = vmatpush1.xpose.msra.mxu0 0.0
  %2398 = vmatprep.subr.mxu0 0.0
  %2399 = vmatpush1.xpose.msra.mxu0 0.0
  %2400 = vmatprep.subr.mxu0 0.0
  %2401 = vmatpush1.xpose.msra.mxu0 0.0
  %2402 = vmatprep.subr.mxu0 0.0
  %2403 = vmatpush1.xpose.msra.mxu0 0.0
  %2404 = vmatprep.subr.mxu0 0.0
  %2405 = vmatpush1.xpose.msra.mxu0 0.0
  %2406 = vmatprep.subr.mxu0 0.0
  %2407 = vmatpush1.xpose.msra.mxu0 0.0
  %2408 = vmatprep.subr.mxu0 0.0
  %2409 = vmatpush1.xpose.msra.mxu0 0.0
  %2410 = vmatprep.subr.mxu0 0.0
  %2411 = vmatpush1.xpose.msra.mxu0 0.0
  %2412 = vmatprep.subr.mxu0 0.0
  %2413 = vmatpush1.xpose.msra.mxu0 %v2388
  %2414 = vmatprep.subr.mxu0 0.0
  %2415 = vmatpush1.xpose.msra.mxu0 %v2386
  %2416 = vmatprep.subr.mxu0 0.0
  %2417 = vmatpush1.xpose.msra.mxu0 %v2384
  %2418 = vmatprep.subr.mxu0 0.0
  %2419 = vmatpush1.xpose.msra.mxu0 %v2382
  %2420 = vmatprep.subr.mxu0 0.0
  %2421 = vmatpush1.xpose.msra.mxu0 %v2380
  %2422 = vmatprep.subr.mxu0 0.0
  %2423 = vmatpush2.xpose.msra.mxu0 0.0
  %2424 = vmatprep.subr.mxu0 0.0
  %2425 = vmatpush2.xpose.msra.mxu0 0.0
  %2426 = vmatprep.subr.mxu0 0.0
  %2427 = vmatpush2.xpose.msra.mxu0 0.0
  %2428 = vmatprep.subr.mxu0 0.0
  %2429 = vmatpush2.xpose.msra.mxu0 0.0
  %2430 = vmatprep.subr.mxu0 0.0
  %2431 = vmatpush2.xpose.msra.mxu0 0.0
  %2432 = vmatprep.subr.mxu0 0.0
  %2433 = vmatpush2.xpose.msra.mxu0 0.0
  %2434 = vmatprep.subr.mxu0 0.0
  %2435 = vmatpush2.xpose.msra.mxu0 0.0
  %2436 = vmatprep.subr.mxu0 0.0
  %2437 = vmatpush2.xpose.msra.mxu0 0.0
  %2438 = vmatprep.subr.mxu0 0.0
  %2439 = vmatpush2.xpose.msra.mxu0 0.0
  %2440 = vmatprep.subr.mxu0 0.0
  %2441 = vmatpush2.xpose.msra.mxu0 0.0
  %2442 = vmatprep.subr.mxu0 0.0
  %2443 = vmatpush2.xpose.msra.mxu0 0.0
  %2444 = vmatprep.subr.mxu0 0.0
  %2445 = vmatpush2.xpose.msra.mxu0 0.0
  %2446 = vmatprep.subr.mxu0 0.0
  %2447 = vmatpush2.xpose.msra.mxu0 0.0
  %2448 = vmatprep.subr.mxu0 0.0
  %2449 = vmatpush2.xpose.msra.mxu0 0.0
  %2450 = vmatprep.subr.mxu0 0.0
  %2451 = vmatpush2.xpose.msra.mxu0 0.0
  %2452 = vmatprep.subr.mxu0 0.0
  %2453 = vmatpush2.xpose.msra.mxu0 0.0
  %2454 = vmatprep.mubr.f32.mxu0 0.0
  %2455 = vmatmul.mubr.f32.gmra.mxu0 %v2370
  %v2456 = vpop.f32.mrf.mxu0
  %v2457 = vadd.f32 %v402, %v2456
  %v2458 = vpop.f32.mrf.mxu0
  %2459 = vmatprep.mubr.f32.mxu0 0.0
  %2460 = vmatmul.mubr.f32.gmra.mxu0 %v2372
  %v2461 = vpop.f32.mrf.mxu0
  %v2462 = vadd.f32 %v402, %v2461
  %v2463 = vpop.f32.mrf.mxu0
  %2464 = vmatprep.mubr.f32.mxu0 0.0
  %2465 = vmatmul.mubr.f32.gmra.mxu0 %v2374
  %v2466 = vpop.f32.mrf.mxu0
  %v2467 = vadd.f32 %v402, %v2466
  %v2468 = vpop.f32.mrf.mxu0
  %2469 = vmatprep.mubr.f32.mxu0 0.0
  %2470 = vmatmul.mubr.f32.gmra.mxu0 %v2376
  %v2471 = vpop.f32.mrf.mxu0
  %v2472 = vadd.f32 %v402, %v2471
  %v2473 = vpop.f32.mrf.mxu0
  %2474 = vmatprep.mubr.f32.mxu0 0.0
  %2475 = vmatmul.mubr.f32.gmra.mxu0 %v2378
  %v2476 = vpop.f32.mrf.mxu0
  %v2477 = vadd.f32 %v402, %v2476
  %v2478 = vpop.f32.mrf.mxu0
  %2479 = vdwg.mxu0
  %v2480 = vsel %vm529, %v2457, -inf
  %2481 = vmax.xlane.f32.xlu0 %v2480
  %v2482 = vpop.xlane.xlu0 %2481
  %v2483 = vsel %vm529, %v2462, -inf
  %2484 = vmax.xlane.f32.xlu0 %v2483
  %v2485 = vpop.xlane.xlu0 %2484
  %v2486 = vsel %vm529, %v2467, -inf
  %2487 = vmax.xlane.f32.xlu0 %v2486
  %v2488 = vpop.xlane.xlu0 %2487
  %v2489 = vsel %vm529, %v2472, -inf
  %2490 = vmax.xlane.f32.xlu0 %v2489
  %v2491 = vpop.xlane.xlu0 %2490
  %v2492 = vsel %vm529, %v2477, -inf
  %2493 = vmax.xlane.f32.xlu0 %v2492
  %v2494 = vpop.xlane.xlu0 %2493
  %v2495 = vsub.f32 %v2457, %v2482
  %v2496 = vsub.f32 %v2462, %v2485
  %v2497 = vsub.f32 %v2467, %v2488
  %v2498 = vsub.f32 %v2472, %v2491
  %v2499 = vsub.f32 %v2477, %v2494
  %v2500 = vmul.f32 %v2495, 1.442695
  %v2501 = vpow.pop %v2500
  %v2502 = vmul.f32 %v2496, 1.442695
  %v2503 = vpow.pop %v2502
  %v2504 = vmul.f32 %v2497, 1.442695
  %v2505 = vpow.pop %v2504
  %v2506 = vmul.f32 %v2498, 1.442695
  %v2507 = vpow.pop %v2506
  %v2508 = vmul.f32 %v2499, 1.442695
  %v2509 = vpow.pop %v2508
  %v2510 = vsel %vm529, %v2501, 0.0
  %2511 = vadd.xlane.f32.xlu0 %v2510
  %v2512 = vpop.xlane.xlu0 %2511
  %v2513 = vsel %vm529, %v2503, 0.0
  %2514 = vadd.xlane.f32.xlu0 %v2513
  %v2515 = vpop.xlane.xlu0 %2514
  %v2516 = vsel %vm529, %v2505, 0.0
  %2517 = vadd.xlane.f32.xlu0 %v2516
  %v2518 = vpop.xlane.xlu0 %2517
  %v2519 = vsel %vm529, %v2507, 0.0
  %2520 = vadd.xlane.f32.xlu0 %v2519
  %v2521 = vpop.xlane.xlu0 %2520
  %v2522 = vsel %vm529, %v2509, 0.0
  %2523 = vadd.xlane.f32.xlu0 %v2522
  %v2524 = vpop.xlane.xlu0 %2523
  %v2525 = vrcp.pop %v2512
  %v2526 = vrcp.pop %v2515
  %v2527 = vrcp.pop %v2518
  %v2528 = vrcp.pop %v2521
  %v2529 = vrcp.pop %v2524
  %v2530 = vmul.f32 %v2501, %v2525
  %v2531 = vmul.f32 %v2503, %v2526
  %v2532 = vmul.f32 %v2505, %v2527
  %v2533 = vmul.f32 %v2507, %v2528
  %v2534 = vmul.f32 %v2509, %v2529
  %2535 = vrot.lane.b32.xlu0 %v376, 56
  %v2536 = vpop.permute.xlu0 %2535
  %2537 = vrot.lane.b32.xlu0 %v381, 56
  %v2538 = vpop.permute.xlu0 %2537
  %2539 = vrot.lane.b32.xlu0 %v386, 56
  %v2540 = vpop.permute.xlu0 %2539
  %2541 = vrot.lane.b32.xlu0 %v391, 56
  %v2542 = vpop.permute.xlu0 %2541
  %2543 = vrot.lane.b32.xlu0 %v396, 56
  %v2544 = vpop.permute.xlu0 %2543
  %v2551 = vsel %vm529, %v2530, 0
  %v2554 = vsel %vm529, %v2531, 0
  %v2557 = vsel %vm529, %v2532, 0
  %v2560 = vsel %vm529, %v2533, 0
  %v2563 = vsel %vm529, %v2534, 0
  %2565 = vmatprep.subr.mxu0 0.0
  %2566 = vmatpush1.msra.mxu0 0.0
  %2567 = vmatprep.subr.mxu0 0.0
  %2568 = vmatpush1.msra.mxu0 0.0
  %2569 = vmatprep.subr.mxu0 0.0
  %2570 = vmatpush1.msra.mxu0 0.0
  %2571 = vmatprep.subr.mxu0 0.0
  %2572 = vmatpush1.msra.mxu0 0.0
  %2573 = vmatprep.subr.mxu0 0.0
  %2574 = vmatpush1.msra.mxu0 0.0
  %2575 = vmatprep.subr.mxu0 0.0
  %2576 = vmatpush1.msra.mxu0 0.0
  %2577 = vmatprep.subr.mxu0 0.0
  %2578 = vmatpush1.msra.mxu0 0.0
  %2579 = vmatprep.subr.mxu0 0.0
  %2580 = vmatpush1.msra.mxu0 0.0
  %2581 = vmatprep.subr.mxu0 0.0
  %2582 = vmatpush1.msra.mxu0 0.0
  %2583 = vmatprep.subr.mxu0 0.0
  %2584 = vmatpush1.msra.mxu0 0.0
  %2585 = vmatprep.subr.mxu0 0.0
  %2586 = vmatpush1.msra.mxu0 0.0
  %2587 = vmatprep.subr.mxu0 0.0
  %2588 = vmatpush1.msra.mxu0 %v2544
  %2589 = vmatprep.subr.mxu0 0.0
  %2590 = vmatpush1.msra.mxu0 %v2542
  %2591 = vmatprep.subr.mxu0 0.0
  %2592 = vmatpush1.msra.mxu0 %v2540
  %2593 = vmatprep.subr.mxu0 0.0
  %2594 = vmatpush1.msra.mxu0 %v2538
  %2595 = vmatprep.subr.mxu0 0.0
  %2596 = vmatpush1.msra.mxu0 %v2536
  %2597 = vmatprep.subr.mxu0 0.0
  %2598 = vmatpush2.msra.mxu0 0.0
  %2599 = vmatprep.subr.mxu0 0.0
  %2600 = vmatpush2.msra.mxu0 0.0
  %2601 = vmatprep.subr.mxu0 0.0
  %2602 = vmatpush2.msra.mxu0 0.0
  %2603 = vmatprep.subr.mxu0 0.0
  %2604 = vmatpush2.msra.mxu0 0.0
  %2605 = vmatprep.subr.mxu0 0.0
  %2606 = vmatpush2.msra.mxu0 0.0
  %2607 = vmatprep.subr.mxu0 0.0
  %2608 = vmatpush2.msra.mxu0 0.0
  %2609 = vmatprep.subr.mxu0 0.0
  %2610 = vmatpush2.msra.mxu0 0.0
  %2611 = vmatprep.subr.mxu0 0.0
  %2612 = vmatpush2.msra.mxu0 0.0
  %2613 = vmatprep.subr.mxu0 0.0
  %2614 = vmatpush2.msra.mxu0 0.0
  %2615 = vmatprep.subr.mxu0 0.0
  %2616 = vmatpush2.msra.mxu0 0.0
  %2617 = vmatprep.subr.mxu0 0.0
  %2618 = vmatpush2.msra.mxu0 0.0
  %2619 = vmatprep.subr.mxu0 0.0
  %2620 = vmatpush2.msra.mxu0 0.0
  %2621 = vmatprep.subr.mxu0 0.0
  %2622 = vmatpush2.msra.mxu0 0.0
  %2623 = vmatprep.subr.mxu0 0.0
  %2624 = vmatpush2.msra.mxu0 0.0
  %2625 = vmatprep.subr.mxu0 0.0
  %2626 = vmatpush2.msra.mxu0 0.0
  %2627 = vmatprep.subr.mxu0 0.0
  %2628 = vmatpush2.msra.mxu0 0.0
  %2629 = vmatprep.mubr.f32.mxu0 0.0
  %2630 = vmatmul.mubr.f32.gmra.mxu0 %v2551
  %v2631 = vpop.f32.mrf.mxu0
  %v2632 = vadd.f32 0.0, %v2631
  %v2633 = vpop.f32.mrf.mxu0
  %2634 = vmatprep.mubr.f32.mxu0 0.0
  %2635 = vmatmul.mubr.f32.gmra.mxu0 %v2554
  %v2636 = vpop.f32.mrf.mxu0
  %v2637 = vadd.f32 0.0, %v2636
  %v2638 = vpop.f32.mrf.mxu0
  %2639 = vmatprep.mubr.f32.mxu0 0.0
  %2640 = vmatmul.mubr.f32.gmra.mxu0 %v2557
  %v2641 = vpop.f32.mrf.mxu0
  %v2642 = vadd.f32 0.0, %v2641
  %v2643 = vpop.f32.mrf.mxu0
  %2644 = vmatprep.mubr.f32.mxu0 0.0
  %2645 = vmatmul.mubr.f32.gmra.mxu0 %v2560
  %v2646 = vpop.f32.mrf.mxu0
  %v2647 = vadd.f32 0.0, %v2646
  %v2648 = vpop.f32.mrf.mxu0
  %2649 = vmatprep.mubr.f32.mxu0 0.0
  %2650 = vmatmul.mubr.f32.gmra.mxu0 %v2563
  %v2651 = vpop.f32.mrf.mxu0
  %v2652 = vadd.f32 0.0, %v2651
  %v2653 = vpop.f32.mrf.mxu0
  %2654 = vdwg.mxu0
  %v2656 = vsel %vm418, %v2632, 0
  %v2659 = vsel %vm418, %v2637, 0
  %v2662 = vsel %vm418, %v2642, 0
  %v2665 = vsel %vm418, %v2647, 0
  %v2668 = vsel %vm418, %v2652, 0
  %2670 = vmatprep.subr.mxu0 0.0
  %2671 = vmatpush1.msra.mxu0 0.0
  %2672 = vmatprep.subr.mxu0 0.0
  %2673 = vmatpush1.msra.mxu0 0.0
  %2674 = vmatprep.subr.mxu0 0.0
  %2675 = vmatpush1.msra.mxu0 0.0
  %2676 = vmatprep.subr.mxu0 0.0
  %2677 = vmatpush1.msra.mxu0 0.0
  %2678 = vmatprep.subr.mxu0 0.0
  %2679 = vmatpush1.msra.mxu0 0.0
  %2680 = vmatprep.subr.mxu0 0.0
  %2681 = vmatpush1.msra.mxu0 0.0
  %2682 = vmatprep.subr.mxu0 0.0
  %2683 = vmatpush1.msra.mxu0 0.0
  %2684 = vmatprep.subr.mxu0 0.0
  %2685 = vmatpush1.msra.mxu0 0.0
  %2686 = vmatprep.subr.mxu0 0.0
  %2687 = vmatpush1.msra.mxu0 0.0
  %2688 = vmatprep.subr.mxu0 0.0
  %2689 = vmatpush1.msra.mxu0 0.0
  %2690 = vmatprep.subr.mxu0 0.0
  %2691 = vmatpush1.msra.mxu0 0.0
  %2692 = vmatprep.subr.mxu0 0.0
  %2693 = vmatpush1.msra.mxu0 0.0
  %2694 = vmatprep.subr.mxu0 0.0
  %2695 = vmatpush1.msra.mxu0 0.0
  %2696 = vmatprep.subr.mxu0 0.0
  %2697 = vmatpush1.msra.mxu0 0.0
  %2698 = vmatprep.subr.mxu0 0.0
  %2699 = vmatpush1.msra.mxu0 0.0
  %2700 = vmatprep.subr.mxu0 0.0
  %2701 = vmatpush1.msra.mxu0 %v50
  %2702 = vmatprep.subr.mxu0 0.0
  %2703 = vmatpush2.msra.mxu0 0.0
  %2704 = vmatprep.subr.mxu0 0.0
  %2705 = vmatpush2.msra.mxu0 0.0
  %2706 = vmatprep.subr.mxu0 0.0
  %2707 = vmatpush2.msra.mxu0 0.0
  %2708 = vmatprep.subr.mxu0 0.0
  %2709 = vmatpush2.msra.mxu0 0.0
  %2710 = vmatprep.subr.mxu0 0.0
  %2711 = vmatpush2.msra.mxu0 0.0
  %2712 = vmatprep.subr.mxu0 0.0
  %2713 = vmatpush2.msra.mxu0 0.0
  %2714 = vmatprep.subr.mxu0 0.0
  %2715 = vmatpush2.msra.mxu0 0.0
  %2716 = vmatprep.subr.mxu0 0.0
  %2717 = vmatpush2.msra.mxu0 0.0
  %2718 = vmatprep.subr.mxu0 0.0
  %2719 = vmatpush2.msra.mxu0 0.0
  %2720 = vmatprep.subr.mxu0 0.0
  %2721 = vmatpush2.msra.mxu0 0.0
  %2722 = vmatprep.subr.mxu0 0.0
  %2723 = vmatpush2.msra.mxu0 0.0
  %2724 = vmatprep.subr.mxu0 0.0
  %2725 = vmatpush2.msra.mxu0 0.0
  %2726 = vmatprep.subr.mxu0 0.0
  %2727 = vmatpush2.msra.mxu0 0.0
  %2728 = vmatprep.subr.mxu0 0.0
  %2729 = vmatpush2.msra.mxu0 0.0
  %2730 = vmatprep.subr.mxu0 0.0
  %2731 = vmatpush2.msra.mxu0 0.0
  %2732 = vmatprep.subr.mxu0 0.0
  %2733 = vmatpush2.msra.mxu0 0.0
  %2734 = vmatprep.mubr.f32.mxu0 0.0
  %2735 = vmatmul.mubr.f32.gmra.mxu0 %v2656
  %v2736 = vpop.f32.mrf.mxu0
  %v2737 = vadd.f32 0.0, %v2736
  %v2738 = vpop.f32.mrf.mxu0
  %2739 = vmatprep.mubr.f32.mxu0 0.0
  %2740 = vmatmul.mubr.f32.gmra.mxu0 %v2659
  %v2741 = vpop.f32.mrf.mxu0
  %v2742 = vadd.f32 0.0, %v2741
  %v2743 = vpop.f32.mrf.mxu0
  %2744 = vmatprep.mubr.f32.mxu0 0.0
  %2745 = vmatmul.mubr.f32.gmra.mxu0 %v2662
  %v2746 = vpop.f32.mrf.mxu0
  %v2747 = vadd.f32 0.0, %v2746
  %v2748 = vpop.f32.mrf.mxu0
  %2749 = vmatprep.mubr.f32.mxu0 0.0
  %2750 = vmatmul.mubr.f32.gmra.mxu0 %v2665
  %v2751 = vpop.f32.mrf.mxu0
  %v2752 = vadd.f32 0.0, %v2751
  %v2753 = vpop.f32.mrf.mxu0
  %2754 = vmatprep.mubr.f32.mxu0 0.0
  %2755 = vmatmul.mubr.f32.gmra.mxu0 %v2668
  %v2756 = vpop.f32.mrf.mxu0
  %v2757 = vadd.f32 0.0, %v2756
  %v2758 = vpop.f32.mrf.mxu0
  %2759 = vdwg.mxu0
  %v2761 = vsel %vm418, %v2327, 0
  %v2764 = vsel %vm418, %v2332, 0
  %v2767 = vsel %vm418, %v2337, 0
  %v2770 = vsel %vm418, %v2342, 0
  %v2773 = vsel %vm418, %v2347, 0
  %2775 = vmatprep.subr.mxu0 0.0
  %2776 = vmatpush1.msra.mxu0 0.0
  %2777 = vmatprep.subr.mxu0 0.0
  %2778 = vmatpush1.msra.mxu0 0.0
  %2779 = vmatprep.subr.mxu0 0.0
  %2780 = vmatpush1.msra.mxu0 0.0
  %2781 = vmatprep.subr.mxu0 0.0
  %2782 = vmatpush1.msra.mxu0 0.0
  %2783 = vmatprep.subr.mxu0 0.0
  %2784 = vmatpush1.msra.mxu0 0.0
  %2785 = vmatprep.subr.mxu0 0.0
  %2786 = vmatpush1.msra.mxu0 0.0
  %2787 = vmatprep.subr.mxu0 0.0
  %2788 = vmatpush1.msra.mxu0 0.0
  %2789 = vmatprep.subr.mxu0 0.0
  %2790 = vmatpush1.msra.mxu0 0.0
  %2791 = vmatprep.subr.mxu0 0.0
  %2792 = vmatpush1.msra.mxu0 0.0
  %2793 = vmatprep.subr.mxu0 0.0
  %2794 = vmatpush1.msra.mxu0 0.0
  %2795 = vmatprep.subr.mxu0 0.0
  %2796 = vmatpush1.msra.mxu0 0.0
  %2797 = vmatprep.subr.mxu0 0.0
  %2798 = vmatpush1.msra.mxu0 0.0
  %2799 = vmatprep.subr.mxu0 0.0
  %2800 = vmatpush1.msra.mxu0 0.0
  %2801 = vmatprep.subr.mxu0 0.0
  %2802 = vmatpush1.msra.mxu0 0.0
  %2803 = vmatprep.subr.mxu0 0.0
  %2804 = vmatpush1.msra.mxu0 0.0
  %2805 = vmatprep.subr.mxu0 0.0
  %2806 = vmatpush1.msra.mxu0 %v49
  %2807 = vmatprep.subr.mxu0 0.0
  %2808 = vmatpush2.msra.mxu0 0.0
  %2809 = vmatprep.subr.mxu0 0.0
  %2810 = vmatpush2.msra.mxu0 0.0
  %2811 = vmatprep.subr.mxu0 0.0
  %2812 = vmatpush2.msra.mxu0 0.0
  %2813 = vmatprep.subr.mxu0 0.0
  %2814 = vmatpush2.msra.mxu0 0.0
  %2815 = vmatprep.subr.mxu0 0.0
  %2816 = vmatpush2.msra.mxu0 0.0
  %2817 = vmatprep.subr.mxu0 0.0
  %2818 = vmatpush2.msra.mxu0 0.0
  %2819 = vmatprep.subr.mxu0 0.0
  %2820 = vmatpush2.msra.mxu0 0.0
  %2821 = vmatprep.subr.mxu0 0.0
  %2822 = vmatpush2.msra.mxu0 0.0
  %2823 = vmatprep.subr.mxu0 0.0
  %2824 = vmatpush2.msra.mxu0 0.0
  %2825 = vmatprep.subr.mxu0 0.0
  %2826 = vmatpush2.msra.mxu0 0.0
  %2827 = vmatprep.subr.mxu0 0.0
  %2828 = vmatpush2.msra.mxu0 0.0
  %2829 = vmatprep.subr.mxu0 0.0
  %2830 = vmatpush2.msra.mxu0 0.0
  %2831 = vmatprep.subr.mxu0 0.0
  %2832 = vmatpush2.msra.mxu0 0.0
  %2833 = vmatprep.subr.mxu0 0.0
  %2834 = vmatpush2.msra.mxu0 0.0
  %2835 = vmatprep.subr.mxu0 0.0
  %2836 = vmatpush2.msra.mxu0 0.0
  %2837 = vmatprep.subr.mxu0 0.0
  %2838 = vmatpush2.msra.mxu0 0.0
  %2839 = vmatprep.mubr.f32.mxu0 0.0
  %2840 = vmatmul.mubr.f32.gmra.mxu0 %v2761
  %v2841 = vpop.f32.mrf.mxu0
  %v2842 = vadd.f32 %v2737, %v2841
  %v2843 = vpop.f32.mrf.mxu0
  %2844 = vmatprep.mubr.f32.mxu0 0.0
  %2845 = vmatmul.mubr.f32.gmra.mxu0 %v2764
  %v2846 = vpop.f32.mrf.mxu0
  %v2847 = vadd.f32 %v2742, %v2846
  %v2848 = vpop.f32.mrf.mxu0
  %2849 = vmatprep.mubr.f32.mxu0 0.0
  %2850 = vmatmul.mubr.f32.gmra.mxu0 %v2767
  %v2851 = vpop.f32.mrf.mxu0
  %v2852 = vadd.f32 %v2747, %v2851
  %v2853 = vpop.f32.mrf.mxu0
  %2854 = vmatprep.mubr.f32.mxu0 0.0
  %2855 = vmatmul.mubr.f32.gmra.mxu0 %v2770
  %v2856 = vpop.f32.mrf.mxu0
  %v2857 = vadd.f32 %v2752, %v2856
  %v2858 = vpop.f32.mrf.mxu0
  %2859 = vmatprep.mubr.f32.mxu0 0.0
  %2860 = vmatmul.mubr.f32.gmra.mxu0 %v2773
  %v2861 = vpop.f32.mrf.mxu0
  %v2862 = vadd.f32 %v2757, %v2861
  %v2863 = vpop.f32.mrf.mxu0
  %2864 = vdwg.mxu0
  %2865 = vrot.lane.b32.xlu0 %v376, 112
  %v2866 = vpop.permute.xlu0 %2865
  %2867 = vrot.lane.b32.xlu0 %v381, 112
  %v2868 = vpop.permute.xlu0 %2867
  %2869 = vrot.lane.b32.xlu0 %v386, 112
  %v2870 = vpop.permute.xlu0 %2869
  %2871 = vrot.lane.b32.xlu0 %v391, 112
  %v2872 = vpop.permute.xlu0 %2871
  %2873 = vrot.lane.b32.xlu0 %v396, 112
  %v2874 = vpop.permute.xlu0 %2873
  %2875 = vrot.lane.b32.xlu0 %v376, 80
  %v2876 = vpop.permute.xlu0 %2875
  %2877 = vrot.lane.b32.xlu0 %v381, 80
  %v2878 = vpop.permute.xlu0 %2877
  %2879 = vrot.lane.b32.xlu0 %v386, 80
  %v2880 = vpop.permute.xlu0 %2879
  %2881 = vrot.lane.b32.xlu0 %v391, 80
  %v2882 = vpop.permute.xlu0 %2881
  %2883 = vrot.lane.b32.xlu0 %v396, 80
  %v2884 = vpop.permute.xlu0 %2883
  %v2885 = vsel %vm418, %v2866, 0
  %v2887 = vsel %vm418, %v2868, 0
  %v2889 = vsel %vm418, %v2870, 0
  %v2891 = vsel %vm418, %v2872, 0
  %v2893 = vsel %vm418, %v2874, 0
  %v2895 = vsel %vm418, %v2876, 0
  %v2897 = vsel %vm418, %v2878, 0
  %v2899 = vsel %vm418, %v2880, 0
  %v2901 = vsel %vm418, %v2882, 0
  %v2903 = vsel %vm418, %v2884, 0
  %2905 = vmatprep.subr.mxu0 0.0
  %2906 = vmatpush1.xpose.msra.mxu0 0.0
  %2907 = vmatprep.subr.mxu0 0.0
  %2908 = vmatpush1.xpose.msra.mxu0 0.0
  %2909 = vmatprep.subr.mxu0 0.0
  %2910 = vmatpush1.xpose.msra.mxu0 0.0
  %2911 = vmatprep.subr.mxu0 0.0
  %2912 = vmatpush1.xpose.msra.mxu0 0.0
  %2913 = vmatprep.subr.mxu0 0.0
  %2914 = vmatpush1.xpose.msra.mxu0 0.0
  %2915 = vmatprep.subr.mxu0 0.0
  %2916 = vmatpush1.xpose.msra.mxu0 0.0
  %2917 = vmatprep.subr.mxu0 0.0
  %2918 = vmatpush1.xpose.msra.mxu0 0.0
  %2919 = vmatprep.subr.mxu0 0.0
  %2920 = vmatpush1.xpose.msra.mxu0 0.0
  %2921 = vmatprep.subr.mxu0 0.0
  %2922 = vmatpush1.xpose.msra.mxu0 0.0
  %2923 = vmatprep.subr.mxu0 0.0
  %2924 = vmatpush1.xpose.msra.mxu0 0.0
  %2925 = vmatprep.subr.mxu0 0.0
  %2926 = vmatpush1.xpose.msra.mxu0 0.0
  %2927 = vmatprep.subr.mxu0 0.0
  %2928 = vmatpush1.xpose.msra.mxu0 %v2903
  %2929 = vmatprep.subr.mxu0 0.0
  %2930 = vmatpush1.xpose.msra.mxu0 %v2901
  %2931 = vmatprep.subr.mxu0 0.0
  %2932 = vmatpush1.xpose.msra.mxu0 %v2899
  %2933 = vmatprep.subr.mxu0 0.0
  %2934 = vmatpush1.xpose.msra.mxu0 %v2897
  %2935 = vmatprep.subr.mxu0 0.0
  %2936 = vmatpush1.xpose.msra.mxu0 %v2895
  %2937 = vmatprep.subr.mxu0 0.0
  %2938 = vmatpush2.xpose.msra.mxu0 0.0
  %2939 = vmatprep.subr.mxu0 0.0
  %2940 = vmatpush2.xpose.msra.mxu0 0.0
  %2941 = vmatprep.subr.mxu0 0.0
  %2942 = vmatpush2.xpose.msra.mxu0 0.0
  %2943 = vmatprep.subr.mxu0 0.0
  %2944 = vmatpush2.xpose.msra.mxu0 0.0
  %2945 = vmatprep.subr.mxu0 0.0
  %2946 = vmatpush2.xpose.msra.mxu0 0.0
  %2947 = vmatprep.subr.mxu0 0.0
  %2948 = vmatpush2.xpose.msra.mxu0 0.0
  %2949 = vmatprep.subr.mxu0 0.0
  %2950 = vmatpush2.xpose.msra.mxu0 0.0
  %2951 = vmatprep.subr.mxu0 0.0
  %2952 = vmatpush2.xpose.msra.mxu0 0.0
  %2953 = vmatprep.subr.mxu0 0.0
  %2954 = vmatpush2.xpose.msra.mxu0 0.0
  %2955 = vmatprep.subr.mxu0 0.0
  %2956 = vmatpush2.xpose.msra.mxu0 0.0
  %2957 = vmatprep.subr.mxu0 0.0
  %2958 = vmatpush2.xpose.msra.mxu0 0.0
  %2959 = vmatprep.subr.mxu0 0.0
  %2960 = vmatpush2.xpose.msra.mxu0 0.0
  %2961 = vmatprep.subr.mxu0 0.0
  %2962 = vmatpush2.xpose.msra.mxu0 0.0
  %2963 = vmatprep.subr.mxu0 0.0
  %2964 = vmatpush2.xpose.msra.mxu0 0.0
  %2965 = vmatprep.subr.mxu0 0.0
  %2966 = vmatpush2.xpose.msra.mxu0 0.0
  %2967 = vmatprep.subr.mxu0 0.0
  %2968 = vmatpush2.xpose.msra.mxu0 0.0
  %2969 = vmatprep.mubr.f32.mxu0 0.0
  %2970 = vmatmul.mubr.f32.gmra.mxu0 %v2885
  %v2971 = vpop.f32.mrf.mxu0
  %v2972 = vadd.f32 %v402, %v2971
  %v2973 = vpop.f32.mrf.mxu0
  %2974 = vmatprep.mubr.f32.mxu0 0.0
  %2975 = vmatmul.mubr.f32.gmra.mxu0 %v2887
  %v2976 = vpop.f32.mrf.mxu0
  %v2977 = vadd.f32 %v402, %v2976
  %v2978 = vpop.f32.mrf.mxu0
  %2979 = vmatprep.mubr.f32.mxu0 0.0
  %2980 = vmatmul.mubr.f32.gmra.mxu0 %v2889
  %v2981 = vpop.f32.mrf.mxu0
  %v2982 = vadd.f32 %v402, %v2981
  %v2983 = vpop.f32.mrf.mxu0
  %2984 = vmatprep.mubr.f32.mxu0 0.0
  %2985 = vmatmul.mubr.f32.gmra.mxu0 %v2891
  %v2986 = vpop.f32.mrf.mxu0
  %v2987 = vadd.f32 %v402, %v2986
  %v2988 = vpop.f32.mrf.mxu0
  %2989 = vmatprep.mubr.f32.mxu0 0.0
  %2990 = vmatmul.mubr.f32.gmra.mxu0 %v2893
  %v2991 = vpop.f32.mrf.mxu0
  %v2992 = vadd.f32 %v402, %v2991
  %v2993 = vpop.f32.mrf.mxu0
  %2994 = vdwg.mxu0
  %v2995 = vsel %vm529, %v2972, -inf
  %2996 = vmax.xlane.f32.xlu0 %v2995
  %v2997 = vpop.xlane.xlu0 %2996
  %v2998 = vsel %vm529, %v2977, -inf
  %2999 = vmax.xlane.f32.xlu0 %v2998
  %v3000 = vpop.xlane.xlu0 %2999
  %v3001 = vsel %vm529, %v2982, -inf
  %3002 = vmax.xlane.f32.xlu0 %v3001
  %v3003 = vpop.xlane.xlu0 %3002
  %v3004 = vsel %vm529, %v2987, -inf
  %3005 = vmax.xlane.f32.xlu0 %v3004
  %v3006 = vpop.xlane.xlu0 %3005
  %v3007 = vsel %vm529, %v2992, -inf
  %3008 = vmax.xlane.f32.xlu0 %v3007
  %v3009 = vpop.xlane.xlu0 %3008
  %v3010 = vsub.f32 %v2972, %v2997
  %v3011 = vsub.f32 %v2977, %v3000
  %v3012 = vsub.f32 %v2982, %v3003
  %v3013 = vsub.f32 %v2987, %v3006
  %v3014 = vsub.f32 %v2992, %v3009
  %v3015 = vmul.f32 %v3010, 1.442695
  %v3016 = vpow.pop %v3015
  %v3017 = vmul.f32 %v3011, 1.442695
  %v3018 = vpow.pop %v3017
  %v3019 = vmul.f32 %v3012, 1.442695
  %v3020 = vpow.pop %v3019
  %v3021 = vmul.f32 %v3013, 1.442695
  %v3022 = vpow.pop %v3021
  %v3023 = vmul.f32 %v3014, 1.442695
  %v3024 = vpow.pop %v3023
  %v3025 = vsel %vm529, %v3016, 0.0
  %3026 = vadd.xlane.f32.xlu0 %v3025
  %v3027 = vpop.xlane.xlu0 %3026
  %v3028 = vsel %vm529, %v3018, 0.0
  %3029 = vadd.xlane.f32.xlu0 %v3028
  %v3030 = vpop.xlane.xlu0 %3029
  %v3031 = vsel %vm529, %v3020, 0.0
  %3032 = vadd.xlane.f32.xlu0 %v3031
  %v3033 = vpop.xlane.xlu0 %3032
  %v3034 = vsel %vm529, %v3022, 0.0
  %3035 = vadd.xlane.f32.xlu0 %v3034
  %v3036 = vpop.xlane.xlu0 %3035
  %v3037 = vsel %vm529, %v3024, 0.0
  %3038 = vadd.xlane.f32.xlu0 %v3037
  %v3039 = vpop.xlane.xlu0 %3038
  %v3040 = vrcp.pop %v3027
  %v3041 = vrcp.pop %v3030
  %v3042 = vrcp.pop %v3033
  %v3043 = vrcp.pop %v3036
  %v3044 = vrcp.pop %v3039
  %v3045 = vmul.f32 %v3016, %v3040
  %v3046 = vmul.f32 %v3018, %v3041
  %v3047 = vmul.f32 %v3020, %v3042
  %v3048 = vmul.f32 %v3022, %v3043
  %v3049 = vmul.f32 %v3024, %v3044
  %3050 = vrot.lane.b32.xlu0 %v376, 48
  %v3051 = vpop.permute.xlu0 %3050
  %3052 = vrot.lane.b32.xlu0 %v381, 48
  %v3053 = vpop.permute.xlu0 %3052
  %3054 = vrot.lane.b32.xlu0 %v386, 48
  %v3055 = vpop.permute.xlu0 %3054
  %3056 = vrot.lane.b32.xlu0 %v391, 48
  %v3057 = vpop.permute.xlu0 %3056
  %3058 = vrot.lane.b32.xlu0 %v396, 48
  %v3059 = vpop.permute.xlu0 %3058
  %v3066 = vsel %vm529, %v3045, 0
  %v3069 = vsel %vm529, %v3046, 0
  %v3072 = vsel %vm529, %v3047, 0
  %v3075 = vsel %vm529, %v3048, 0
  %v3078 = vsel %vm529, %v3049, 0
  %3080 = vmatprep.subr.mxu0 0.0
  %3081 = vmatpush1.msra.mxu0 0.0
  %3082 = vmatprep.subr.mxu0 0.0
  %3083 = vmatpush1.msra.mxu0 0.0
  %3084 = vmatprep.subr.mxu0 0.0
  %3085 = vmatpush1.msra.mxu0 0.0
  %3086 = vmatprep.subr.mxu0 0.0
  %3087 = vmatpush1.msra.mxu0 0.0
  %3088 = vmatprep.subr.mxu0 0.0
  %3089 = vmatpush1.msra.mxu0 0.0
  %3090 = vmatprep.subr.mxu0 0.0
  %3091 = vmatpush1.msra.mxu0 0.0
  %3092 = vmatprep.subr.mxu0 0.0
  %3093 = vmatpush1.msra.mxu0 0.0
  %3094 = vmatprep.subr.mxu0 0.0
  %3095 = vmatpush1.msra.mxu0 0.0
  %3096 = vmatprep.subr.mxu0 0.0
  %3097 = vmatpush1.msra.mxu0 0.0
  %3098 = vmatprep.subr.mxu0 0.0
  %3099 = vmatpush1.msra.mxu0 0.0
  %3100 = vmatprep.subr.mxu0 0.0
  %3101 = vmatpush1.msra.mxu0 0.0
  %3102 = vmatprep.subr.mxu0 0.0
  %3103 = vmatpush1.msra.mxu0 %v3059
  %3104 = vmatprep.subr.mxu0 0.0
  %3105 = vmatpush1.msra.mxu0 %v3057
  %3106 = vmatprep.subr.mxu0 0.0
  %3107 = vmatpush1.msra.mxu0 %v3055
  %3108 = vmatprep.subr.mxu0 0.0
  %3109 = vmatpush1.msra.mxu0 %v3053
  %3110 = vmatprep.subr.mxu0 0.0
  %3111 = vmatpush1.msra.mxu0 %v3051
  %3112 = vmatprep.subr.mxu0 0.0
  %3113 = vmatpush2.msra.mxu0 0.0
  %3114 = vmatprep.subr.mxu0 0.0
  %3115 = vmatpush2.msra.mxu0 0.0
  %3116 = vmatprep.subr.mxu0 0.0
  %3117 = vmatpush2.msra.mxu0 0.0
  %3118 = vmatprep.subr.mxu0 0.0
  %3119 = vmatpush2.msra.mxu0 0.0
  %3120 = vmatprep.subr.mxu0 0.0
  %3121 = vmatpush2.msra.mxu0 0.0
  %3122 = vmatprep.subr.mxu0 0.0
  %3123 = vmatpush2.msra.mxu0 0.0
  %3124 = vmatprep.subr.mxu0 0.0
  %3125 = vmatpush2.msra.mxu0 0.0
  %3126 = vmatprep.subr.mxu0 0.0
  %3127 = vmatpush2.msra.mxu0 0.0
  %3128 = vmatprep.subr.mxu0 0.0
  %3129 = vmatpush2.msra.mxu0 0.0
  %3130 = vmatprep.subr.mxu0 0.0
  %3131 = vmatpush2.msra.mxu0 0.0
  %3132 = vmatprep.subr.mxu0 0.0
  %3133 = vmatpush2.msra.mxu0 0.0
  %3134 = vmatprep.subr.mxu0 0.0
  %3135 = vmatpush2.msra.mxu0 0.0
  %3136 = vmatprep.subr.mxu0 0.0
  %3137 = vmatpush2.msra.mxu0 0.0
  %3138 = vmatprep.subr.mxu0 0.0
  %3139 = vmatpush2.msra.mxu0 0.0
  %3140 = vmatprep.subr.mxu0 0.0
  %3141 = vmatpush2.msra.mxu0 0.0
  %3142 = vmatprep.subr.mxu0 0.0
  %3143 = vmatpush2.msra.mxu0 0.0
  %3144 = vmatprep.mubr.f32.mxu0 0.0
  %3145 = vmatmul.mubr.f32.gmra.mxu0 %v3066
  %v3146 = vpop.f32.mrf.mxu0
  %v3147 = vadd.f32 0.0, %v3146
  %v3148 = vpop.f32.mrf.mxu0
  %3149 = vmatprep.mubr.f32.mxu0 0.0
  %3150 = vmatmul.mubr.f32.gmra.mxu0 %v3069
  %v3151 = vpop.f32.mrf.mxu0
  %v3152 = vadd.f32 0.0, %v3151
  %v3153 = vpop.f32.mrf.mxu0
  %3154 = vmatprep.mubr.f32.mxu0 0.0
  %3155 = vmatmul.mubr.f32.gmra.mxu0 %v3072
  %v3156 = vpop.f32.mrf.mxu0
  %v3157 = vadd.f32 0.0, %v3156
  %v3158 = vpop.f32.mrf.mxu0
  %3159 = vmatprep.mubr.f32.mxu0 0.0
  %3160 = vmatmul.mubr.f32.gmra.mxu0 %v3075
  %v3161 = vpop.f32.mrf.mxu0
  %v3162 = vadd.f32 0.0, %v3161
  %v3163 = vpop.f32.mrf.mxu0
  %3164 = vmatprep.mubr.f32.mxu0 0.0
  %3165 = vmatmul.mubr.f32.gmra.mxu0 %v3078
  %v3166 = vpop.f32.mrf.mxu0
  %v3167 = vadd.f32 0.0, %v3166
  %v3168 = vpop.f32.mrf.mxu0
  %3169 = vdwg.mxu0
  %v3171 = vsel %vm418, %v3147, 0
  %v3174 = vsel %vm418, %v3152, 0
  %v3177 = vsel %vm418, %v3157, 0
  %v3180 = vsel %vm418, %v3162, 0
  %v3183 = vsel %vm418, %v3167, 0
  %3185 = vmatprep.subr.mxu0 0.0
  %3186 = vmatpush1.msra.mxu0 0.0
  %3187 = vmatprep.subr.mxu0 0.0
  %3188 = vmatpush1.msra.mxu0 0.0
  %3189 = vmatprep.subr.mxu0 0.0
  %3190 = vmatpush1.msra.mxu0 0.0
  %3191 = vmatprep.subr.mxu0 0.0
  %3192 = vmatpush1.msra.mxu0 0.0
  %3193 = vmatprep.subr.mxu0 0.0
  %3194 = vmatpush1.msra.mxu0 0.0
  %3195 = vmatprep.subr.mxu0 0.0
  %3196 = vmatpush1.msra.mxu0 0.0
  %3197 = vmatprep.subr.mxu0 0.0
  %3198 = vmatpush1.msra.mxu0 0.0
  %3199 = vmatprep.subr.mxu0 0.0
  %3200 = vmatpush1.msra.mxu0 0.0
  %3201 = vmatprep.subr.mxu0 0.0
  %3202 = vmatpush1.msra.mxu0 0.0
  %3203 = vmatprep.subr.mxu0 0.0
  %3204 = vmatpush1.msra.mxu0 0.0
  %3205 = vmatprep.subr.mxu0 0.0
  %3206 = vmatpush1.msra.mxu0 0.0
  %3207 = vmatprep.subr.mxu0 0.0
  %3208 = vmatpush1.msra.mxu0 0.0
  %3209 = vmatprep.subr.mxu0 0.0
  %3210 = vmatpush1.msra.mxu0 0.0
  %3211 = vmatprep.subr.mxu0 0.0
  %3212 = vmatpush1.msra.mxu0 0.0
  %3213 = vmatprep.subr.mxu0 0.0
  %3214 = vmatpush1.msra.mxu0 0.0
  %3215 = vmatprep.subr.mxu0 0.0
  %3216 = vmatpush1.msra.mxu0 %v51
  %3217 = vmatprep.subr.mxu0 0.0
  %3218 = vmatpush2.msra.mxu0 0.0
  %3219 = vmatprep.subr.mxu0 0.0
  %3220 = vmatpush2.msra.mxu0 0.0
  %3221 = vmatprep.subr.mxu0 0.0
  %3222 = vmatpush2.msra.mxu0 0.0
  %3223 = vmatprep.subr.mxu0 0.0
  %3224 = vmatpush2.msra.mxu0 0.0
  %3225 = vmatprep.subr.mxu0 0.0
  %3226 = vmatpush2.msra.mxu0 0.0
  %3227 = vmatprep.subr.mxu0 0.0
  %3228 = vmatpush2.msra.mxu0 0.0
  %3229 = vmatprep.subr.mxu0 0.0
  %3230 = vmatpush2.msra.mxu0 0.0
  %3231 = vmatprep.subr.mxu0 0.0
  %3232 = vmatpush2.msra.mxu0 0.0
  %3233 = vmatprep.subr.mxu0 0.0
  %3234 = vmatpush2.msra.mxu0 0.0
  %3235 = vmatprep.subr.mxu0 0.0
  %3236 = vmatpush2.msra.mxu0 0.0
  %3237 = vmatprep.subr.mxu0 0.0
  %3238 = vmatpush2.msra.mxu0 0.0
  %3239 = vmatprep.subr.mxu0 0.0
  %3240 = vmatpush2.msra.mxu0 0.0
  %3241 = vmatprep.subr.mxu0 0.0
  %3242 = vmatpush2.msra.mxu0 0.0
  %3243 = vmatprep.subr.mxu0 0.0
  %3244 = vmatpush2.msra.mxu0 0.0
  %3245 = vmatprep.subr.mxu0 0.0
  %3246 = vmatpush2.msra.mxu0 0.0
  %3247 = vmatprep.subr.mxu0 0.0
  %3248 = vmatpush2.msra.mxu0 0.0
  %3249 = vmatprep.mubr.f32.mxu0 0.0
  %3250 = vmatmul.mubr.f32.gmra.mxu0 %v3171
  %v3251 = vpop.f32.mrf.mxu0
  %v3252 = vadd.f32 0.0, %v3251
  %v3253 = vpop.f32.mrf.mxu0
  %3254 = vmatprep.mubr.f32.mxu0 0.0
  %3255 = vmatmul.mubr.f32.gmra.mxu0 %v3174
  %v3256 = vpop.f32.mrf.mxu0
  %v3257 = vadd.f32 0.0, %v3256
  %v3258 = vpop.f32.mrf.mxu0
  %3259 = vmatprep.mubr.f32.mxu0 0.0
  %3260 = vmatmul.mubr.f32.gmra.mxu0 %v3177
  %v3261 = vpop.f32.mrf.mxu0
  %v3262 = vadd.f32 0.0, %v3261
  %v3263 = vpop.f32.mrf.mxu0
  %3264 = vmatprep.mubr.f32.mxu0 0.0
  %3265 = vmatmul.mubr.f32.gmra.mxu0 %v3180
  %v3266 = vpop.f32.mrf.mxu0
  %v3267 = vadd.f32 0.0, %v3266
  %v3268 = vpop.f32.mrf.mxu0
  %3269 = vmatprep.mubr.f32.mxu0 0.0
  %3270 = vmatmul.mubr.f32.gmra.mxu0 %v3183
  %v3271 = vpop.f32.mrf.mxu0
  %v3272 = vadd.f32 0.0, %v3271
  %v3273 = vpop.f32.mrf.mxu0
  %3274 = vdwg.mxu0
  %v3275 = vadd.f32 %v2842, %v3252
  %v3276 = vadd.f32 %v2847, %v3257
  %v3277 = vadd.f32 %v2852, %v3262
  %v3278 = vadd.f32 %v2857, %v3267
  %v3279 = vadd.f32 %v2862, %v3272
  %3280 = vrot.lane.b32.xlu0 %v376, 104
  %v3281 = vpop.permute.xlu0 %3280
  %3282 = vrot.lane.b32.xlu0 %v381, 104
  %v3283 = vpop.permute.xlu0 %3282
  %3284 = vrot.lane.b32.xlu0 %v386, 104
  %v3285 = vpop.permute.xlu0 %3284
  %3286 = vrot.lane.b32.xlu0 %v391, 104
  %v3287 = vpop.permute.xlu0 %3286
  %3288 = vrot.lane.b32.xlu0 %v396, 104
  %v3289 = vpop.permute.xlu0 %3288
  %3290 = vrot.lane.b32.xlu0 %v376, 72
  %v3291 = vpop.permute.xlu0 %3290
  %3292 = vrot.lane.b32.xlu0 %v381, 72
  %v3293 = vpop.permute.xlu0 %3292
  %3294 = vrot.lane.b32.xlu0 %v386, 72
  %v3295 = vpop.permute.xlu0 %3294
  %3296 = vrot.lane.b32.xlu0 %v391, 72
  %v3297 = vpop.permute.xlu0 %3296
  %3298 = vrot.lane.b32.xlu0 %v396, 72
  %v3299 = vpop.permute.xlu0 %3298
  %v3300 = vsel %vm418, %v3281, 0
  %v3302 = vsel %vm418, %v3283, 0
  %v3304 = vsel %vm418, %v3285, 0
  %v3306 = vsel %vm418, %v3287, 0
  %v3308 = vsel %vm418, %v3289, 0
  %v3310 = vsel %vm418, %v3291, 0
  %v3312 = vsel %vm418, %v3293, 0
  %v3314 = vsel %vm418, %v3295, 0
  %v3316 = vsel %vm418, %v3297, 0
  %v3318 = vsel %vm418, %v3299, 0
  %3320 = vmatprep.subr.mxu0 0.0
  %3321 = vmatpush1.xpose.msra.mxu0 0.0
  %3322 = vmatprep.subr.mxu0 0.0
  %3323 = vmatpush1.xpose.msra.mxu0 0.0
  %3324 = vmatprep.subr.mxu0 0.0
  %3325 = vmatpush1.xpose.msra.mxu0 0.0
  %3326 = vmatprep.subr.mxu0 0.0
  %3327 = vmatpush1.xpose.msra.mxu0 0.0
  %3328 = vmatprep.subr.mxu0 0.0
  %3329 = vmatpush1.xpose.msra.mxu0 0.0
  %3330 = vmatprep.subr.mxu0 0.0
  %3331 = vmatpush1.xpose.msra.mxu0 0.0
  %3332 = vmatprep.subr.mxu0 0.0
  %3333 = vmatpush1.xpose.msra.mxu0 0.0
  %3334 = vmatprep.subr.mxu0 0.0
  %3335 = vmatpush1.xpose.msra.mxu0 0.0
  %3336 = vmatprep.subr.mxu0 0.0
  %3337 = vmatpush1.xpose.msra.mxu0 0.0
  %3338 = vmatprep.subr.mxu0 0.0
  %3339 = vmatpush1.xpose.msra.mxu0 0.0
  %3340 = vmatprep.subr.mxu0 0.0
  %3341 = vmatpush1.xpose.msra.mxu0 0.0
  %3342 = vmatprep.subr.mxu0 0.0
  %3343 = vmatpush1.xpose.msra.mxu0 %v3318
  %3344 = vmatprep.subr.mxu0 0.0
  %3345 = vmatpush1.xpose.msra.mxu0 %v3316
  %3346 = vmatprep.subr.mxu0 0.0
  %3347 = vmatpush1.xpose.msra.mxu0 %v3314
  %3348 = vmatprep.subr.mxu0 0.0
  %3349 = vmatpush1.xpose.msra.mxu0 %v3312
  %3350 = vmatprep.subr.mxu0 0.0
  %3351 = vmatpush1.xpose.msra.mxu0 %v3310
  %3352 = vmatprep.subr.mxu0 0.0
  %3353 = vmatpush2.xpose.msra.mxu0 0.0
  %3354 = vmatprep.subr.mxu0 0.0
  %3355 = vmatpush2.xpose.msra.mxu0 0.0
  %3356 = vmatprep.subr.mxu0 0.0
  %3357 = vmatpush2.xpose.msra.mxu0 0.0
  %3358 = vmatprep.subr.mxu0 0.0
  %3359 = vmatpush2.xpose.msra.mxu0 0.0
  %3360 = vmatprep.subr.mxu0 0.0
  %3361 = vmatpush2.xpose.msra.mxu0 0.0
  %3362 = vmatprep.subr.mxu0 0.0
  %3363 = vmatpush2.xpose.msra.mxu0 0.0
  %3364 = vmatprep.subr.mxu0 0.0
  %3365 = vmatpush2.xpose.msra.mxu0 0.0
  %3366 = vmatprep.subr.mxu0 0.0
  %3367 = vmatpush2.xpose.msra.mxu0 0.0
  %3368 = vmatprep.subr.mxu0 0.0
  %3369 = vmatpush2.xpose.msra.mxu0 0.0
  %3370 = vmatprep.subr.mxu0 0.0
  %3371 = vmatpush2.xpose.msra.mxu0 0.0
  %3372 = vmatprep.subr.mxu0 0.0
  %3373 = vmatpush2.xpose.msra.mxu0 0.0
  %3374 = vmatprep.subr.mxu0 0.0
  %3375 = vmatpush2.xpose.msra.mxu0 0.0
  %3376 = vmatprep.subr.mxu0 0.0
  %3377 = vmatpush2.xpose.msra.mxu0 0.0
  %3378 = vmatprep.subr.mxu0 0.0
  %3379 = vmatpush2.xpose.msra.mxu0 0.0
  %3380 = vmatprep.subr.mxu0 0.0
  %3381 = vmatpush2.xpose.msra.mxu0 0.0
  %3382 = vmatprep.subr.mxu0 0.0
  %3383 = vmatpush2.xpose.msra.mxu0 0.0
  %3384 = vmatprep.mubr.f32.mxu0 0.0
  %3385 = vmatmul.mubr.f32.gmra.mxu0 %v3300
  %v3386 = vpop.f32.mrf.mxu0
  %v3387 = vadd.f32 %v402, %v3386
  %v3388 = vpop.f32.mrf.mxu0
  %3389 = vmatprep.mubr.f32.mxu0 0.0
  %3390 = vmatmul.mubr.f32.gmra.mxu0 %v3302
  %v3391 = vpop.f32.mrf.mxu0
  %v3392 = vadd.f32 %v402, %v3391
  %v3393 = vpop.f32.mrf.mxu0
  %3394 = vmatprep.mubr.f32.mxu0 0.0
  %3395 = vmatmul.mubr.f32.gmra.mxu0 %v3304
  %v3396 = vpop.f32.mrf.mxu0
  %v3397 = vadd.f32 %v402, %v3396
  %v3398 = vpop.f32.mrf.mxu0
  %3399 = vmatprep.mubr.f32.mxu0 0.0
  %3400 = vmatmul.mubr.f32.gmra.mxu0 %v3306
  %v3401 = vpop.f32.mrf.mxu0
  %v3402 = vadd.f32 %v402, %v3401
  %v3403 = vpop.f32.mrf.mxu0
  %3404 = vmatprep.mubr.f32.mxu0 0.0
  %3405 = vmatmul.mubr.f32.gmra.mxu0 %v3308
  %v3406 = vpop.f32.mrf.mxu0
  %v3407 = vadd.f32 %v402, %v3406
  %v3408 = vpop.f32.mrf.mxu0
  %3409 = vdwg.mxu0
  %v3410 = vsel %vm529, %v3387, -inf
  %3411 = vmax.xlane.f32.xlu0 %v3410
  %v3412 = vpop.xlane.xlu0 %3411
  %v3413 = vsel %vm529, %v3392, -inf
  %3414 = vmax.xlane.f32.xlu0 %v3413
  %v3415 = vpop.xlane.xlu0 %3414
  %v3416 = vsel %vm529, %v3397, -inf
  %3417 = vmax.xlane.f32.xlu0 %v3416
  %v3418 = vpop.xlane.xlu0 %3417
  %v3419 = vsel %vm529, %v3402, -inf
  %3420 = vmax.xlane.f32.xlu0 %v3419
  %v3421 = vpop.xlane.xlu0 %3420
  %v3422 = vsel %vm529, %v3407, -inf
  %3423 = vmax.xlane.f32.xlu0 %v3422
  %v3424 = vpop.xlane.xlu0 %3423
  %v3425 = vsub.f32 %v3387, %v3412
  %v3426 = vsub.f32 %v3392, %v3415
  %v3427 = vsub.f32 %v3397, %v3418
  %v3428 = vsub.f32 %v3402, %v3421
  %v3429 = vsub.f32 %v3407, %v3424
  %v3430 = vmul.f32 %v3425, 1.442695
  %v3431 = vpow.pop %v3430
  %v3432 = vmul.f32 %v3426, 1.442695
  %v3433 = vpow.pop %v3432
  %v3434 = vmul.f32 %v3427, 1.442695
  %v3435 = vpow.pop %v3434
  %v3436 = vmul.f32 %v3428, 1.442695
  %v3437 = vpow.pop %v3436
  %v3438 = vmul.f32 %v3429, 1.442695
  %v3439 = vpow.pop %v3438
  %v3440 = vsel %vm529, %v3431, 0.0
  %3441 = vadd.xlane.f32.xlu0 %v3440
  %v3442 = vpop.xlane.xlu0 %3441
  %v3443 = vsel %vm529, %v3433, 0.0
  %3444 = vadd.xlane.f32.xlu0 %v3443
  %v3445 = vpop.xlane.xlu0 %3444
  %v3446 = vsel %vm529, %v3435, 0.0
  %3447 = vadd.xlane.f32.xlu0 %v3446
  %v3448 = vpop.xlane.xlu0 %3447
  %v3449 = vsel %vm529, %v3437, 0.0
  %3450 = vadd.xlane.f32.xlu0 %v3449
  %v3451 = vpop.xlane.xlu0 %3450
  %v3452 = vsel %vm529, %v3439, 0.0
  %3453 = vadd.xlane.f32.xlu0 %v3452
  %v3454 = vpop.xlane.xlu0 %3453
  %v3455 = vrcp.pop %v3442
  %v3456 = vrcp.pop %v3445
  %v3457 = vrcp.pop %v3448
  %v3458 = vrcp.pop %v3451
  %v3459 = vrcp.pop %v3454
  %v3460 = vmul.f32 %v3431, %v3455
  %v3461 = vmul.f32 %v3433, %v3456
  %v3462 = vmul.f32 %v3435, %v3457
  %v3463 = vmul.f32 %v3437, %v3458
  %v3464 = vmul.f32 %v3439, %v3459
  %3465 = vrot.lane.b32.xlu0 %v376, 40
  %v3466 = vpop.permute.xlu0 %3465
  %3467 = vrot.lane.b32.xlu0 %v381, 40
  %v3468 = vpop.permute.xlu0 %3467
  %3469 = vrot.lane.b32.xlu0 %v386, 40
  %v3470 = vpop.permute.xlu0 %3469
  %3471 = vrot.lane.b32.xlu0 %v391, 40
  %v3472 = vpop.permute.xlu0 %3471
  %3473 = vrot.lane.b32.xlu0 %v396, 40
  %v3474 = vpop.permute.xlu0 %3473
  %v3481 = vsel %vm529, %v3460, 0
  %v3484 = vsel %vm529, %v3461, 0
  %v3487 = vsel %vm529, %v3462, 0
  %v3490 = vsel %vm529, %v3463, 0
  %v3493 = vsel %vm529, %v3464, 0
  %3495 = vmatprep.subr.mxu0 0.0
  %3496 = vmatpush1.msra.mxu0 0.0
  %3497 = vmatprep.subr.mxu0 0.0
  %3498 = vmatpush1.msra.mxu0 0.0
  %3499 = vmatprep.subr.mxu0 0.0
  %3500 = vmatpush1.msra.mxu0 0.0
  %3501 = vmatprep.subr.mxu0 0.0
  %3502 = vmatpush1.msra.mxu0 0.0
  %3503 = vmatprep.subr.mxu0 0.0
  %3504 = vmatpush1.msra.mxu0 0.0
  %3505 = vmatprep.subr.mxu0 0.0
  %3506 = vmatpush1.msra.mxu0 0.0
  %3507 = vmatprep.subr.mxu0 0.0
  %3508 = vmatpush1.msra.mxu0 0.0
  %3509 = vmatprep.subr.mxu0 0.0
  %3510 = vmatpush1.msra.mxu0 0.0
  %3511 = vmatprep.subr.mxu0 0.0
  %3512 = vmatpush1.msra.mxu0 0.0
  %3513 = vmatprep.subr.mxu0 0.0
  %3514 = vmatpush1.msra.mxu0 0.0
  %3515 = vmatprep.subr.mxu0 0.0
  %3516 = vmatpush1.msra.mxu0 0.0
  %3517 = vmatprep.subr.mxu0 0.0
  %3518 = vmatpush1.msra.mxu0 %v3474
  %3519 = vmatprep.subr.mxu0 0.0
  %3520 = vmatpush1.msra.mxu0 %v3472
  %3521 = vmatprep.subr.mxu0 0.0
  %3522 = vmatpush1.msra.mxu0 %v3470
  %3523 = vmatprep.subr.mxu0 0.0
  %3524 = vmatpush1.msra.mxu0 %v3468
  %3525 = vmatprep.subr.mxu0 0.0
  %3526 = vmatpush1.msra.mxu0 %v3466
  %3527 = vmatprep.subr.mxu0 0.0
  %3528 = vmatpush2.msra.mxu0 0.0
  %3529 = vmatprep.subr.mxu0 0.0
  %3530 = vmatpush2.msra.mxu0 0.0
  %3531 = vmatprep.subr.mxu0 0.0
  %3532 = vmatpush2.msra.mxu0 0.0
  %3533 = vmatprep.subr.mxu0 0.0
  %3534 = vmatpush2.msra.mxu0 0.0
  %3535 = vmatprep.subr.mxu0 0.0
  %3536 = vmatpush2.msra.mxu0 0.0
  %3537 = vmatprep.subr.mxu0 0.0
  %3538 = vmatpush2.msra.mxu0 0.0
  %3539 = vmatprep.subr.mxu0 0.0
  %3540 = vmatpush2.msra.mxu0 0.0
  %3541 = vmatprep.subr.mxu0 0.0
  %3542 = vmatpush2.msra.mxu0 0.0
  %3543 = vmatprep.subr.mxu0 0.0
  %3544 = vmatpush2.msra.mxu0 0.0
  %3545 = vmatprep.subr.mxu0 0.0
  %3546 = vmatpush2.msra.mxu0 0.0
  %3547 = vmatprep.subr.mxu0 0.0
  %3548 = vmatpush2.msra.mxu0 0.0
  %3549 = vmatprep.subr.mxu0 0.0
  %3550 = vmatpush2.msra.mxu0 0.0
  %3551 = vmatprep.subr.mxu0 0.0
  %3552 = vmatpush2.msra.mxu0 0.0
  %3553 = vmatprep.subr.mxu0 0.0
  %3554 = vmatpush2.msra.mxu0 0.0
  %3555 = vmatprep.subr.mxu0 0.0
  %3556 = vmatpush2.msra.mxu0 0.0
  %3557 = vmatprep.subr.mxu0 0.0
  %3558 = vmatpush2.msra.mxu0 0.0
  %3559 = vmatprep.mubr.f32.mxu0 0.0
  %3560 = vmatmul.mubr.f32.gmra.mxu0 %v3481
  %v3561 = vpop.f32.mrf.mxu0
  %v3562 = vadd.f32 0.0, %v3561
  %v3563 = vpop.f32.mrf.mxu0
  %3564 = vmatprep.mubr.f32.mxu0 0.0
  %3565 = vmatmul.mubr.f32.gmra.mxu0 %v3484
  %v3566 = vpop.f32.mrf.mxu0
  %v3567 = vadd.f32 0.0, %v3566
  %v3568 = vpop.f32.mrf.mxu0
  %3569 = vmatprep.mubr.f32.mxu0 0.0
  %3570 = vmatmul.mubr.f32.gmra.mxu0 %v3487
  %v3571 = vpop.f32.mrf.mxu0
  %v3572 = vadd.f32 0.0, %v3571
  %v3573 = vpop.f32.mrf.mxu0
  %3574 = vmatprep.mubr.f32.mxu0 0.0
  %3575 = vmatmul.mubr.f32.gmra.mxu0 %v3490
  %v3576 = vpop.f32.mrf.mxu0
  %v3577 = vadd.f32 0.0, %v3576
  %v3578 = vpop.f32.mrf.mxu0
  %3579 = vmatprep.mubr.f32.mxu0 0.0
  %3580 = vmatmul.mubr.f32.gmra.mxu0 %v3493
  %v3581 = vpop.f32.mrf.mxu0
  %v3582 = vadd.f32 0.0, %v3581
  %v3583 = vpop.f32.mrf.mxu0
  %3584 = vdwg.mxu0
  %v3586 = vsel %vm418, %v3562, 0
  %v3589 = vsel %vm418, %v3567, 0
  %v3592 = vsel %vm418, %v3572, 0
  %v3595 = vsel %vm418, %v3577, 0
  %v3598 = vsel %vm418, %v3582, 0
  %3600 = vmatprep.subr.mxu0 0.0
  %3601 = vmatpush1.msra.mxu0 0.0
  %3602 = vmatprep.subr.mxu0 0.0
  %3603 = vmatpush1.msra.mxu0 0.0
  %3604 = vmatprep.subr.mxu0 0.0
  %3605 = vmatpush1.msra.mxu0 0.0
  %3606 = vmatprep.subr.mxu0 0.0
  %3607 = vmatpush1.msra.mxu0 0.0
  %3608 = vmatprep.subr.mxu0 0.0
  %3609 = vmatpush1.msra.mxu0 0.0
  %3610 = vmatprep.subr.mxu0 0.0
  %3611 = vmatpush1.msra.mxu0 0.0
  %3612 = vmatprep.subr.mxu0 0.0
  %3613 = vmatpush1.msra.mxu0 0.0
  %3614 = vmatprep.subr.mxu0 0.0
  %3615 = vmatpush1.msra.mxu0 0.0
  %3616 = vmatprep.subr.mxu0 0.0
  %3617 = vmatpush1.msra.mxu0 0.0
  %3618 = vmatprep.subr.mxu0 0.0
  %3619 = vmatpush1.msra.mxu0 0.0
  %3620 = vmatprep.subr.mxu0 0.0
  %3621 = vmatpush1.msra.mxu0 0.0
  %3622 = vmatprep.subr.mxu0 0.0
  %3623 = vmatpush1.msra.mxu0 0.0
  %3624 = vmatprep.subr.mxu0 0.0
  %3625 = vmatpush1.msra.mxu0 0.0
  %3626 = vmatprep.subr.mxu0 0.0
  %3627 = vmatpush1.msra.mxu0 0.0
  %3628 = vmatprep.subr.mxu0 0.0
  %3629 = vmatpush1.msra.mxu0 0.0
  %3630 = vmatprep.subr.mxu0 0.0
  %3631 = vmatpush1.msra.mxu0 %v52
  %3632 = vmatprep.subr.mxu0 0.0
  %3633 = vmatpush2.msra.mxu0 0.0
  %3634 = vmatprep.subr.mxu0 0.0
  %3635 = vmatpush2.msra.mxu0 0.0
  %3636 = vmatprep.subr.mxu0 0.0
  %3637 = vmatpush2.msra.mxu0 0.0
  %3638 = vmatprep.subr.mxu0 0.0
  %3639 = vmatpush2.msra.mxu0 0.0
  %3640 = vmatprep.subr.mxu0 0.0
  %3641 = vmatpush2.msra.mxu0 0.0
  %3642 = vmatprep.subr.mxu0 0.0
  %3643 = vmatpush2.msra.mxu0 0.0
  %3644 = vmatprep.subr.mxu0 0.0
  %3645 = vmatpush2.msra.mxu0 0.0
  %3646 = vmatprep.subr.mxu0 0.0
  %3647 = vmatpush2.msra.mxu0 0.0
  %3648 = vmatprep.subr.mxu0 0.0
  %3649 = vmatpush2.msra.mxu0 0.0
  %3650 = vmatprep.subr.mxu0 0.0
  %3651 = vmatpush2.msra.mxu0 0.0
  %3652 = vmatprep.subr.mxu0 0.0
  %3653 = vmatpush2.msra.mxu0 0.0
  %3654 = vmatprep.subr.mxu0 0.0
  %3655 = vmatpush2.msra.mxu0 0.0
  %3656 = vmatprep.subr.mxu0 0.0
  %3657 = vmatpush2.msra.mxu0 0.0
  %3658 = vmatprep.subr.mxu0 0.0
  %3659 = vmatpush2.msra.mxu0 0.0
  %3660 = vmatprep.subr.mxu0 0.0
  %3661 = vmatpush2.msra.mxu0 0.0
  %3662 = vmatprep.subr.mxu0 0.0
  %3663 = vmatpush2.msra.mxu0 0.0
  %3664 = vmatprep.mubr.f32.mxu0 0.0
  %3665 = vmatmul.mubr.f32.gmra.mxu0 %v3586
  %v3666 = vpop.f32.mrf.mxu0
  %v3667 = vadd.f32 0.0, %v3666
  %v3668 = vpop.f32.mrf.mxu0
  %3669 = vmatprep.mubr.f32.mxu0 0.0
  %3670 = vmatmul.mubr.f32.gmra.mxu0 %v3589
  %v3671 = vpop.f32.mrf.mxu0
  %v3672 = vadd.f32 0.0, %v3671
  %v3673 = vpop.f32.mrf.mxu0
  %3674 = vmatprep.mubr.f32.mxu0 0.0
  %3675 = vmatmul.mubr.f32.gmra.mxu0 %v3592
  %v3676 = vpop.f32.mrf.mxu0
  %v3677 = vadd.f32 0.0, %v3676
  %v3678 = vpop.f32.mrf.mxu0
  %3679 = vmatprep.mubr.f32.mxu0 0.0
  %3680 = vmatmul.mubr.f32.gmra.mxu0 %v3595
  %v3681 = vpop.f32.mrf.mxu0
  %v3682 = vadd.f32 0.0, %v3681
  %v3683 = vpop.f32.mrf.mxu0
  %3684 = vmatprep.mubr.f32.mxu0 0.0
  %3685 = vmatmul.mubr.f32.gmra.mxu0 %v3598
  %v3686 = vpop.f32.mrf.mxu0
  %v3687 = vadd.f32 0.0, %v3686
  %v3688 = vpop.f32.mrf.mxu0
  %3689 = vdwg.mxu0
  %v3690 = vadd.f32 %v3275, %v3667
  %v3691 = vadd.f32 %v3276, %v3672
  %v3692 = vadd.f32 %v3277, %v3677
  %v3693 = vadd.f32 %v3278, %v3682
  %v3694 = vadd.f32 %v3279, %v3687
  %v3696 = vlaneseq
  %v3697 = vshrl.u32 %v3696, 7
  %v3698 = vsub.s32 0, %v3697
  %v3699 = vrot.slane %v53, %v3698
  %v3701 = vadd.f32 %v2045, %v3699
  %v3702 = vadd.f32 %v2046, %v3699
  %v3703 = vadd.f32 %v2047, %v3699
  %v3704 = vadd.f32 %v2048, %v3699
  %v3705 = vadd.f32 %v2049, %v3699
  %v3706 = vadd.f32 %v3690, %v3699
  %v3707 = vadd.f32 %v3691, %v3699
  %v3708 = vadd.f32 %v3692, %v3699
  %v3709 = vadd.f32 %v3693, %v3699
  %v3710 = vadd.f32 %v3694, %v3699
  %v3711 = vadd.f32 %v80, %v3701
  %v3712 = vadd.f32 %v81, %v3702
  %v3713 = vadd.f32 %v82, %v3703
  %v3714 = vadd.f32 %v83, %v3704
  %v3715 = vadd.f32 %v84, %v3705
  %v3716 = vadd.f32 %v85, %v3706
  %v3717 = vadd.f32 %v86, %v3707
  %v3718 = vadd.f32 %v87, %v3708
  %v3719 = vadd.f32 %v88, %v3709
  %v3720 = vadd.f32 %v89, %v3710
  %v3721 = vsel %vm90, %v3711, 0.0
  %3722 = vadd.xlane.f32.xlu0 %v3721
  %v3723 = vpop.xlane.xlu0 %3722
  %v3724 = vsel %vm90, %v3712, 0.0
  %3725 = vadd.xlane.f32.xlu0 %v3724
  %v3726 = vpop.xlane.xlu0 %3725
  %v3727 = vsel %vm90, %v3713, 0.0
  %3728 = vadd.xlane.f32.xlu0 %v3727
  %v3729 = vpop.xlane.xlu0 %3728
  %v3730 = vsel %vm90, %v3714, 0.0
  %3731 = vadd.xlane.f32.xlu0 %v3730
  %v3732 = vpop.xlane.xlu0 %3731
  %v3733 = vsel %vm90, %v3715, 0.0
  %3734 = vadd.xlane.f32.xlu0 %v3733
  %v3735 = vpop.xlane.xlu0 %3734
  %v3736 = vsel %vm90, %v3716, 0.0
  %3737 = vadd.xlane.f32.xlu0 %v3736
  %v3738 = vpop.xlane.xlu0 %3737
  %v3739 = vsel %vm90, %v3717, 0.0
  %3740 = vadd.xlane.f32.xlu0 %v3739
  %v3741 = vpop.xlane.xlu0 %3740
  %v3742 = vsel %vm90, %v3718, 0.0
  %3743 = vadd.xlane.f32.xlu0 %v3742
  %v3744 = vpop.xlane.xlu0 %3743
  %v3745 = vsel %vm90, %v3719, 0.0
  %3746 = vadd.xlane.f32.xlu0 %v3745
  %v3747 = vpop.xlane.xlu0 %3746
  %v3748 = vsel %vm90, %v3720, 0.0
  %3749 = vadd.xlane.f32.xlu0 %v3748
  %v3750 = vpop.xlane.xlu0 %3749
  %v3751 = vmul.f32 %v3723, %v121
  %v3752 = vmul.f32 %v3726, %v121
  %v3753 = vmul.f32 %v3729, %v121
  %v3754 = vmul.f32 %v3732, %v121
  %v3755 = vmul.f32 %v3735, %v121
  %v3756 = vmul.f32 %v3738, %v121
  %v3757 = vmul.f32 %v3741, %v121
  %v3758 = vmul.f32 %v3744, %v121
  %v3759 = vmul.f32 %v3747, %v121
  %v3760 = vmul.f32 %v3750, %v121
  %v3761 = vsub.f32 %v3711, %v3751
  %v3762 = vsub.f32 %v3712, %v3752
  %v3763 = vsub.f32 %v3713, %v3753
  %v3764 = vsub.f32 %v3714, %v3754
  %v3765 = vsub.f32 %v3715, %v3755
  %v3766 = vsub.f32 %v3716, %v3756
  %v3767 = vsub.f32 %v3717, %v3757
  %v3768 = vsub.f32 %v3718, %v3758
  %v3769 = vsub.f32 %v3719, %v3759
  %v3770 = vsub.f32 %v3720, %v3760
  %v3771 = vmul.f32 %v3761, %v3761
  %v3772 = vmul.f32 %v3762, %v3762
  %v3773 = vmul.f32 %v3763, %v3763
  %v3774 = vmul.f32 %v3764, %v3764
  %v3775 = vmul.f32 %v3765, %v3765
  %v3776 = vmul.f32 %v3766, %v3766
  %v3777 = vmul.f32 %v3767, %v3767
  %v3778 = vmul.f32 %v3768, %v3768
  %v3779 = vmul.f32 %v3769, %v3769
  %v3780 = vmul.f32 %v3770, %v3770
  %v3781 = vsel %vm90, %v3771, 0.0
  %3782 = vadd.xlane.f32.xlu0 %v3781
  %v3783 = vpop.xlane.xlu0 %3782
  %v3784 = vsel %vm90, %v3772, 0.0
  %3785 = vadd.xlane.f32.xlu0 %v3784
  %v3786 = vpop.xlane.xlu0 %3785
  %v3787 = vsel %vm90, %v3773, 0.0
  %3788 = vadd.xlane.f32.xlu0 %v3787
  %v3789 = vpop.xlane.xlu0 %3788
  %v3790 = vsel %vm90, %v3774, 0.0
  %3791 = vadd.xlane.f32.xlu0 %v3790
  %v3792 = vpop.xlane.xlu0 %3791
  %v3793 = vsel %vm90, %v3775, 0.0
  %3794 = vadd.xlane.f32.xlu0 %v3793
  %v3795 = vpop.xlane.xlu0 %3794
  %v3796 = vsel %vm90, %v3776, 0.0
  %3797 = vadd.xlane.f32.xlu0 %v3796
  %v3798 = vpop.xlane.xlu0 %3797
  %v3799 = vsel %vm90, %v3777, 0.0
  %3800 = vadd.xlane.f32.xlu0 %v3799
  %v3801 = vpop.xlane.xlu0 %3800
  %v3802 = vsel %vm90, %v3778, 0.0
  %3803 = vadd.xlane.f32.xlu0 %v3802
  %v3804 = vpop.xlane.xlu0 %3803
  %v3805 = vsel %vm90, %v3779, 0.0
  %3806 = vadd.xlane.f32.xlu0 %v3805
  %v3807 = vpop.xlane.xlu0 %3806
  %v3808 = vsel %vm90, %v3780, 0.0
  %3809 = vadd.xlane.f32.xlu0 %v3808
  %v3810 = vpop.xlane.xlu0 %3809
  %v3811 = vmul.f32 %v3783, %v121
  %v3812 = vmul.f32 %v3786, %v121
  %v3813 = vmul.f32 %v3789, %v121
  %v3814 = vmul.f32 %v3792, %v121
  %v3815 = vmul.f32 %v3795, %v121
  %v3816 = vmul.f32 %v3798, %v121
  %v3817 = vmul.f32 %v3801, %v121
  %v3818 = vmul.f32 %v3804, %v121
  %v3819 = vmul.f32 %v3807, %v121
  %v3820 = vmul.f32 %v3810, %v121
  %v3821 = vadd.f32 %v3811, 1e-05
  %v3822 = vadd.f32 %v3812, 1e-05
  %v3823 = vadd.f32 %v3813, 1e-05
  %v3824 = vadd.f32 %v3814, 1e-05
  %v3825 = vadd.f32 %v3815, 1e-05
  %v3826 = vadd.f32 %v3816, 1e-05
  %v3827 = vadd.f32 %v3817, 1e-05
  %v3828 = vadd.f32 %v3818, 1e-05
  %v3829 = vadd.f32 %v3819, 1e-05
  %v3830 = vadd.f32 %v3820, 1e-05
  %v3831 = vrsqrt.pop %v3821
  %v3832 = vrsqrt.pop %v3822
  %v3833 = vrsqrt.pop %v3823
  %v3834 = vrsqrt.pop %v3824
  %v3835 = vrsqrt.pop %v3825
  %v3836 = vrsqrt.pop %v3826
  %v3837 = vrsqrt.pop %v3827
  %v3838 = vrsqrt.pop %v3828
  %v3839 = vrsqrt.pop %v3829
  %v3840 = vrsqrt.pop %v3830
  %v3841 = vmul.f32 %v3761, %v3831
  %v3842 = vmul.f32 %v3762, %v3832
  %v3843 = vmul.f32 %v3763, %v3833
  %v3844 = vmul.f32 %v3764, %v3834
  %v3845 = vmul.f32 %v3765, %v3835
  %v3846 = vmul.f32 %v3766, %v3836
  %v3847 = vmul.f32 %v3767, %v3837
  %v3848 = vmul.f32 %v3768, %v3838
  %v3849 = vmul.f32 %v3769, %v3839
  %v3850 = vmul.f32 %v3770, %v3840
  %v3852 = vlaneseq
  %v3853 = vshrl.u32 %v3852, 7
  %v3854 = vsub.s32 0, %v3853
  %v3855 = vrot.slane %v43, %v3854
  %v3857 = vmul.f32 %v3841, %v3855
  %v3858 = vmul.f32 %v3842, %v3855
  %v3859 = vmul.f32 %v3843, %v3855
  %v3860 = vmul.f32 %v3844, %v3855
  %v3861 = vmul.f32 %v3845, %v3855
  %v3862 = vmul.f32 %v3846, %v3855
  %v3863 = vmul.f32 %v3847, %v3855
  %v3864 = vmul.f32 %v3848, %v3855
  %v3865 = vmul.f32 %v3849, %v3855
  %v3866 = vmul.f32 %v3850, %v3855
  %v3868 = vlaneseq
  %v3869 = vshrl.u32 %v3868, 7
  %v3870 = vsub.s32 0, %v3869
  %v3871 = vrot.slane %v44, %v3870
  %v3873 = vadd.f32 %v3857, %v3871
  %v3874 = vadd.f32 %v3858, %v3871
  %v3875 = vadd.f32 %v3859, %v3871
  %v3876 = vadd.f32 %v3860, %v3871
  %v3877 = vadd.f32 %v3861, %v3871
  %v3878 = vadd.f32 %v3862, %v3871
  %v3879 = vadd.f32 %v3863, %v3871
  %v3880 = vadd.f32 %v3864, %v3871
  %v3881 = vadd.f32 %v3865, %v3871
  %v3882 = vadd.f32 %v3866, %v3871
  %v3884 = vlaneseq
  %v3885 = vshrl.u32 %v3884, 7
  %v3886 = vsub.s32 0, %v3885
  %v3887 = vrot.slane %v62, %v3886
  %v3888 = vlaneseq
  %v3889 = vshrl.u32 %v3888, 7
  %v3890 = vsub.s32 1, %v3889
  %v3891 = vrot.slane %v62, %v3890
  %v3895 = vsel %vm90, %v3873, 0
  %v3898 = vsel %vm90, %v3874, 0
  %v3901 = vsel %vm90, %v3875, 0
  %v3904 = vsel %vm90, %v3876, 0
  %v3907 = vsel %vm90, %v3877, 0
  %v3910 = vsel %vm90, %v3878, 0
  %v3913 = vsel %vm90, %v3879, 0
  %v3916 = vsel %vm90, %v3880, 0
  %v3919 = vsel %vm90, %v3881, 0
  %v3922 = vsel %vm90, %v3882, 0
  %3924 = vmatprep.subr.mxu0 0.0
  %3925 = vmatpush1.msra.mxu0 0.0
  %3926 = vmatprep.subr.mxu0 0.0
  %3927 = vmatpush1.msra.mxu0 0.0
  %3928 = vmatprep.subr.mxu0 0.0
  %3929 = vmatpush1.msra.mxu0 0.0
  %3930 = vmatprep.subr.mxu0 0.0
  %3931 = vmatpush1.msra.mxu0 0.0
  %3932 = vmatprep.subr.mxu0 0.0
  %3933 = vmatpush1.msra.mxu0 0.0
  %3934 = vmatprep.subr.mxu0 0.0
  %3935 = vmatpush1.msra.mxu0 0.0
  %3936 = vmatprep.subr.mxu0 0.0
  %3937 = vmatpush1.msra.mxu0 0.0
  %3938 = vmatprep.subr.mxu0 0.0
  %3939 = vmatpush1.msra.mxu0 0.0
  %3940 = vmatprep.subr.mxu0 0.0
  %3941 = vmatpush1.msra.mxu0 0.0
  %3942 = vmatprep.subr.mxu0 0.0
  %3943 = vmatpush1.msra.mxu0 0.0
  %3944 = vmatprep.subr.mxu0 0.0
  %3945 = vmatpush1.msra.mxu0 0.0
  %3946 = vmatprep.subr.mxu0 0.0
  %3947 = vmatpush1.msra.mxu0 0.0
  %3948 = vmatprep.subr.mxu0 %v61
  %3949 = vmatpush1.msra.mxu0 %v60
  %3950 = vmatprep.subr.mxu0 %v59
  %3951 = vmatpush1.msra.mxu0 %v58
  %3952 = vmatprep.subr.mxu0 %v57
  %3953 = vmatpush1.msra.mxu0 %v56
  %3954 = vmatprep.subr.mxu0 %v55
  %3955 = vmatpush1.msra.mxu0 %v54
  %3956 = vmatprep.subr.mxu0 0.0
  %3957 = vmatpush2.msra.mxu0 0.0
  %3958 = vmatprep.subr.mxu0 0.0
  %3959 = vmatpush2.msra.mxu0 0.0
  %3960 = vmatprep.subr.mxu0 0.0
  %3961 = vmatpush2.msra.mxu0 0.0
  %3962 = vmatprep.subr.mxu0 0.0
  %3963 = vmatpush2.msra.mxu0 0.0
  %3964 = vmatprep.subr.mxu0 0.0
  %3965 = vmatpush2.msra.mxu0 0.0
  %3966 = vmatprep.subr.mxu0 0.0
  %3967 = vmatpush2.msra.mxu0 0.0
  %3968 = vmatprep.subr.mxu0 0.0
  %3969 = vmatpush2.msra.mxu0 0.0
  %3970 = vmatprep.subr.mxu0 0.0
  %3971 = vmatpush2.msra.mxu0 0.0
  %3972 = vmatprep.subr.mxu0 0.0
  %3973 = vmatpush2.msra.mxu0 0.0
  %3974 = vmatprep.subr.mxu0 0.0
  %3975 = vmatpush2.msra.mxu0 0.0
  %3976 = vmatprep.subr.mxu0 0.0
  %3977 = vmatpush2.msra.mxu0 0.0
  %3978 = vmatprep.subr.mxu0 0.0
  %3979 = vmatpush2.msra.mxu0 0.0
  %3980 = vmatprep.subr.mxu0 0.0
  %3981 = vmatpush2.msra.mxu0 0.0
  %3982 = vmatprep.subr.mxu0 0.0
  %3983 = vmatpush2.msra.mxu0 0.0
  %3984 = vmatprep.subr.mxu0 0.0
  %3985 = vmatpush2.msra.mxu0 0.0
  %3986 = vmatprep.subr.mxu0 0.0
  %3987 = vmatpush2.msra.mxu0 0.0
  %3988 = vmatprep.mubr.f32.mxu0 0.0
  %3989 = vmatmul.mubr.f32.gmra.mxu0 %v3895
  %v3990 = vpop.f32.mrf.mxu0
  %v3991 = vadd.f32 %v3887, %v3990
  %v3992 = vpop.f32.mrf.mxu0
  %v3993 = vadd.f32 %v3891, %v3992
  %3994 = vmatprep.mubr.f32.mxu0 0.0
  %3995 = vmatmul.mubr.f32.gmra.mxu0 %v3898
  %v3996 = vpop.f32.mrf.mxu0
  %v3997 = vadd.f32 %v3887, %v3996
  %v3998 = vpop.f32.mrf.mxu0
  %v3999 = vadd.f32 %v3891, %v3998
  %4000 = vmatprep.mubr.f32.mxu0 0.0
  %4001 = vmatmul.mubr.f32.gmra.mxu0 %v3901
  %v4002 = vpop.f32.mrf.mxu0
  %v4003 = vadd.f32 %v3887, %v4002
  %v4004 = vpop.f32.mrf.mxu0
  %v4005 = vadd.f32 %v3891, %v4004
  %4006 = vmatprep.mubr.f32.mxu0 0.0
  %4007 = vmatmul.mubr.f32.gmra.mxu0 %v3904
  %v4008 = vpop.f32.mrf.mxu0
  %v4009 = vadd.f32 %v3887, %v4008
  %v4010 = vpop.f32.mrf.mxu0
  %v4011 = vadd.f32 %v3891, %v4010
  %4012 = vmatprep.mubr.f32.mxu0 0.0
  %4013 = vmatmul.mubr.f32.gmra.mxu0 %v3907
  %v4014 = vpop.f32.mrf.mxu0
  %v4015 = vadd.f32 %v3887, %v4014
  %v4016 = vpop.f32.mrf.mxu0
  %v4017 = vadd.f32 %v3891, %v4016
  %4018 = vmatprep.mubr.f32.mxu0 0.0
  %4019 = vmatmul.mubr.f32.gmra.mxu0 %v3910
  %v4020 = vpop.f32.mrf.mxu0
  %v4021 = vadd.f32 %v3887, %v4020
  %v4022 = vpop.f32.mrf.mxu0
  %v4023 = vadd.f32 %v3891, %v4022
  %4024 = vmatprep.mubr.f32.mxu0 0.0
  %4025 = vmatmul.mubr.f32.gmra.mxu0 %v3913
  %v4026 = vpop.f32.mrf.mxu0
  %v4027 = vadd.f32 %v3887, %v4026
  %v4028 = vpop.f32.mrf.mxu0
  %v4029 = vadd.f32 %v3891, %v4028
  %4030 = vmatprep.mubr.f32.mxu0 0.0
  %4031 = vmatmul.mubr.f32.gmra.mxu0 %v3916
  %v4032 = vpop.f32.mrf.mxu0
  %v4033 = vadd.f32 %v3887, %v4032
  %v4034 = vpop.f32.mrf.mxu0
  %v4035 = vadd.f32 %v3891, %v4034
  %4036 = vmatprep.mubr.f32.mxu0 0.0
  %4037 = vmatmul.mubr.f32.gmra.mxu0 %v3919
  %v4038 = vpop.f32.mrf.mxu0
  %v4039 = vadd.f32 %v3887, %v4038
  %v4040 = vpop.f32.mrf.mxu0
  %v4041 = vadd.f32 %v3891, %v4040
  %4042 = vmatprep.mubr.f32.mxu0 0.0
  %4043 = vmatmul.mubr.f32.gmra.mxu0 %v3922
  %v4044 = vpop.f32.mrf.mxu0
  %v4045 = vadd.f32 %v3887, %v4044
  %v4046 = vpop.f32.mrf.mxu0
  %v4047 = vadd.f32 %v3891, %v4046
  %4048 = vdwg.mxu0
  %v4049 = vmul.f32 %v3991, 0.5
  %v4050 = vmul.f32 %v3997, 0.5
  %v4051 = vmul.f32 %v4003, 0.5
  %v4052 = vmul.f32 %v4009, 0.5
  %v4053 = vmul.f32 %v4015, 0.5
  %v4054 = vmul.f32 %v4021, 0.5
  %v4055 = vmul.f32 %v4027, 0.5
  %v4056 = vmul.f32 %v4033, 0.5
  %v4057 = vmul.f32 %v4039, 0.5
  %v4058 = vmul.f32 %v4045, 0.5
  %v4059 = vmul.f32 %v3991, 0.70710677
  %v4060 = vmul.f32 %v3997, 0.70710677
  %v4061 = vmul.f32 %v4003, 0.70710677
  %v4062 = vmul.f32 %v4009, 0.70710677
  %v4063 = vmul.f32 %v4015, 0.70710677
  %v4064 = vmul.f32 %v4021, 0.70710677
  %v4065 = vmul.f32 %v4027, 0.70710677
  %v4066 = vmul.f32 %v4033, 0.70710677
  %v4067 = vmul.f32 %v4039, 0.70710677
  %v4068 = vmul.f32 %v4045, 0.70710677
  %v4069 = verf.f32.pop %v4059
  %v4070 = verf.f32.pop %v4060
  %v4071 = verf.f32.pop %v4061
  %v4072 = verf.f32.pop %v4062
  %v4073 = verf.f32.pop %v4063
  %v4074 = verf.f32.pop %v4064
  %v4075 = verf.f32.pop %v4065
  %v4076 = verf.f32.pop %v4066
  %v4077 = verf.f32.pop %v4067
  %v4078 = verf.f32.pop %v4068
  %v4079 = vadd.f32 %v4069, 1.0
  %v4080 = vadd.f32 %v4070, 1.0
  %v4081 = vadd.f32 %v4071, 1.0
  %v4082 = vadd.f32 %v4072, 1.0
  %v4083 = vadd.f32 %v4073, 1.0
  %v4084 = vadd.f32 %v4074, 1.0
  %v4085 = vadd.f32 %v4075, 1.0
  %v4086 = vadd.f32 %v4076, 1.0
  %v4087 = vadd.f32 %v4077, 1.0
  %v4088 = vadd.f32 %v4078, 1.0
  %v4089 = vmul.f32 %v4049, %v4079
  %v4090 = vmul.f32 %v4050, %v4080
  %v4091 = vmul.f32 %v4051, %v4081
  %v4092 = vmul.f32 %v4052, %v4082
  %v4093 = vmul.f32 %v4053, %v4083
  %v4094 = vmul.f32 %v4054, %v4084
  %v4095 = vmul.f32 %v4055, %v4085
  %v4096 = vmul.f32 %v4056, %v4086
  %v4097 = vmul.f32 %v4057, %v4087
  %v4098 = vmul.f32 %v4058, %v4088
  %v4100 = vlaneseq
  %v4101 = vshrl.u32 %v4100, 7
  %v4102 = vsub.s32 0, %v4101
  %v4103 = vrot.slane %v79, %v4102
  %4105 = vmatprep.subr.mxu0 0.0
  %4106 = vmatpush1.msra.mxu0 %v78
  %4107 = vmatprep.subr.mxu0 0.0
  %4108 = vmatpush1.msra.mxu0 %v77
  %4109 = vmatprep.subr.mxu0 0.0
  %4110 = vmatpush1.msra.mxu0 %v76
  %4111 = vmatprep.subr.mxu0 0.0
  %4112 = vmatpush1.msra.mxu0 %v75
  %4113 = vmatprep.subr.mxu0 0.0
  %4114 = vmatpush1.msra.mxu0 %v74
  %4115 = vmatprep.subr.mxu0 0.0
  %4116 = vmatpush1.msra.mxu0 %v73
  %4117 = vmatprep.subr.mxu0 0.0
  %4118 = vmatpush1.msra.mxu0 %v72
  %4119 = vmatprep.subr.mxu0 0.0
  %4120 = vmatpush1.msra.mxu0 %v71
  %4121 = vmatprep.subr.mxu0 0.0
  %4122 = vmatpush1.msra.mxu0 %v70
  %4123 = vmatprep.subr.mxu0 0.0
  %4124 = vmatpush1.msra.mxu0 %v69
  %4125 = vmatprep.subr.mxu0 0.0
  %4126 = vmatpush1.msra.mxu0 %v68
  %4127 = vmatprep.subr.mxu0 0.0
  %4128 = vmatpush1.msra.mxu0 %v67
  %4129 = vmatprep.subr.mxu0 0.0
  %4130 = vmatpush1.msra.mxu0 %v66
  %4131 = vmatprep.subr.mxu0 0.0
  %4132 = vmatpush1.msra.mxu0 %v65
  %4133 = vmatprep.subr.mxu0 0.0
  %4134 = vmatpush1.msra.mxu0 %v64
  %4135 = vmatprep.subr.mxu0 0.0
  %4136 = vmatpush1.msra.mxu0 %v63
  %4137 = vmatprep.subr.mxu0 0.0
  %4138 = vmatpush2.msra.mxu0 0.0
  %4139 = vmatprep.subr.mxu0 0.0
  %4140 = vmatpush2.msra.mxu0 0.0
  %4141 = vmatprep.subr.mxu0 0.0
  %4142 = vmatpush2.msra.mxu0 0.0
  %4143 = vmatprep.subr.mxu0 0.0
  %4144 = vmatpush2.msra.mxu0 0.0
  %4145 = vmatprep.subr.mxu0 0.0
  %4146 = vmatpush2.msra.mxu0 0.0
  %4147 = vmatprep.subr.mxu0 0.0
  %4148 = vmatpush2.msra.mxu0 0.0
  %4149 = vmatprep.subr.mxu0 0.0
  %4150 = vmatpush2.msra.mxu0 0.0
  %4151 = vmatprep.subr.mxu0 0.0
  %4152 = vmatpush2.msra.mxu0 0.0
  %4153 = vmatprep.subr.mxu0 0.0
  %4154 = vmatpush2.msra.mxu0 0.0
  %4155 = vmatprep.subr.mxu0 0.0
  %4156 = vmatpush2.msra.mxu0 0.0
  %4157 = vmatprep.subr.mxu0 0.0
  %4158 = vmatpush2.msra.mxu0 0.0
  %4159 = vmatprep.subr.mxu0 0.0
  %4160 = vmatpush2.msra.mxu0 0.0
  %4161 = vmatprep.subr.mxu0 0.0
  %4162 = vmatpush2.msra.mxu0 0.0
  %4163 = vmatprep.subr.mxu0 0.0
  %4164 = vmatpush2.msra.mxu0 0.0
  %4165 = vmatprep.subr.mxu0 0.0
  %4166 = vmatpush2.msra.mxu0 0.0
  %4167 = vmatprep.subr.mxu0 0.0
  %4168 = vmatpush2.msra.mxu0 0.0
  %4169 = vmatprep.mubr.f32.mxu0 0.0
  %4170 = vmatmul.mubr.f32.gmra.mxu0 %v4089
  %v4171 = vpop.f32.mrf.mxu0
  %v4172 = vadd.f32 %v4103, %v4171
  %v4173 = vpop.f32.mrf.mxu0
  %4174 = vmatprep.mubr.f32.mxu0 0.0
  %4175 = vmatmul.mubr.f32.gmra.mxu0 %v4090
  %v4176 = vpop.f32.mrf.mxu0
  %v4177 = vadd.f32 %v4103, %v4176
  %v4178 = vpop.f32.mrf.mxu0
  %4179 = vmatprep.mubr.f32.mxu0 0.0
  %4180 = vmatmul.mubr.f32.gmra.mxu0 %v4091
  %v4181 = vpop.f32.mrf.mxu0
  %v4182 = vadd.f32 %v4103, %v4181
  %v4183 = vpop.f32.mrf.mxu0
  %4184 = vmatprep.mubr.f32.mxu0 0.0
  %4185 = vmatmul.mubr.f32.gmra.mxu0 %v4092
  %v4186 = vpop.f32.mrf.mxu0
  %v4187 = vadd.f32 %v4103, %v4186
  %v4188 = vpop.f32.mrf.mxu0
  %4189 = vmatprep.mubr.f32.mxu0 0.0
  %4190 = vmatmul.mubr.f32.gmra.mxu0 %v4093
  %v4191 = vpop.f32.mrf.mxu0
  %v4192 = vadd.f32 %v4103, %v4191
  %v4193 = vpop.f32.mrf.mxu0
  %4194 = vmatprep.mubr.f32.mxu0 0.0
  %4195 = vmatmul.mubr.f32.gmra.mxu0 %v4094
  %v4196 = vpop.f32.mrf.mxu0
  %v4197 = vadd.f32 %v4103, %v4196
  %v4198 = vpop.f32.mrf.mxu0
  %4199 = vmatprep.mubr.f32.mxu0 0.0
  %4200 = vmatmul.mubr.f32.gmra.mxu0 %v4095
  %v4201 = vpop.f32.mrf.mxu0
  %v4202 = vadd.f32 %v4103, %v4201
  %v4203 = vpop.f32.mrf.mxu0
  %4204 = vmatprep.mubr.f32.mxu0 0.0
  %4205 = vmatmul.mubr.f32.gmra.mxu0 %v4096
  %v4206 = vpop.f32.mrf.mxu0
  %v4207 = vadd.f32 %v4103, %v4206
  %v4208 = vpop.f32.mrf.mxu0
  %4209 = vmatprep.mubr.f32.mxu0 0.0
  %4210 = vmatmul.mubr.f32.gmra.mxu0 %v4097
  %v4211 = vpop.f32.mrf.mxu0
  %v4212 = vadd.f32 %v4103, %v4211
  %v4213 = vpop.f32.mrf.mxu0
  %4214 = vmatprep.mubr.f32.mxu0 0.0
  %4215 = vmatmul.mubr.f32.gmra.mxu0 %v4098
  %v4216 = vpop.f32.mrf.mxu0
  %v4217 = vadd.f32 %v4103, %v4216
  %v4218 = vpop.f32.mrf.mxu0
  %4219 = vdwg.mxu0
  %v4220 = vadd.f32 %v3993, %v4172
  %v4221 = vadd.f32 %v3999, %v4177
  %v4222 = vadd.f32 %v4005, %v4182
  %v4223 = vadd.f32 %v4011, %v4187
  %v4224 = vadd.f32 %v4017, %v4192
  %v4225 = vadd.f32 %v4023, %v4197
  %v4226 = vadd.f32 %v4029, %v4202
  %v4227 = vadd.f32 %v4035, %v4207
  %v4228 = vadd.f32 %v4041, %v4212
  %v4229 = vadd.f32 %v4047, %v4217
  %vm4230 = vcmask 523264
  %4231 = vst.msk [vmem:[%s12] sm:$0xff] %vm4230, %v4220
  %4232 = vst.msk [vmem:[%s12 + $0x8] sm:$0xff] %vm4230, %v4221
  %4233 = vst.msk [vmem:[%s12 + $0x10] sm:$0xff] %vm4230, %v4222
  %4234 = vst.msk [vmem:[%s12 + $0x18] sm:$0xff] %vm4230, %v4223
  %4235 = vst.msk [vmem:[%s12 + $0x20] sm:$0xff] %vm4230, %v4224
  %4236 = vst.msk [vmem:[%s12 + $0x28] sm:$0xff] %vm4230, %v4225
  %4237 = vst.msk [vmem:[%s12 + $0x30] sm:$0xff] %vm4230, %v4226
  %4238 = vst.msk [vmem:[%s12 + $0x38] sm:$0xff] %vm4230, %v4227
  %4239 = vst.msk [vmem:[%s12 + $0x40] sm:$0xff] %vm4230, %v4228
  %4240 = vst.msk [vmem:[%s12 + $0x48] sm:$0xff] %vm4230, %v4229
  // Predicated region
  $region50: #{tpu_custom_call.1} parent=0 // pred_check
    _
  $region51: #{tpu_custom_call.1} parent=0 // pred_check_branch
    %4242 = sbr.rel (0) target = $region53
  $region52: #{tpu_custom_call.1} parent=0 // pred_region
    _
  $region53: #{tpu_custom_call.1} parent=0 // pred_fallthru
    _
  // Predicated region
  $region54: #{tpu_custom_call.1} parent=0 // pred_check
    _
  $region55: #{tpu_custom_call.1} parent=0 // pred_check_branch
    %4244 = sbr.rel (0) target = $region57
  $region56: #{tpu_custom_call.1} parent=0 // pred_region
    _
  $region57: #{tpu_custom_call.1} parent=0 // pred_fallthru
    _

</llo_original>
